<compile_context>
chip_gen: v5e
topology: v5e:2x2
jax: 0.10.0
libtpu: 0.0.40
codegen_flags: <defaults>
</compile_context>

<pallas_src>
import numpy as np
import jax
import jax.numpy as jnp
from jax.experimental import pallas as pl
from jax.experimental.pallas import tpu as pltpu


# ----------------------------------------------------------------------------
# Host-side constants: align_corners=True bilinear operator and its 9 shifted
# copies (one per 3x3 conv tap, padding=1), K-concatenated.
# ----------------------------------------------------------------------------
def _bilinear_matrix(out_size, in_size):
    """align_corners=True bilinear interpolation matrix, shape (out, in)."""
    A = np.zeros((out_size, in_size), dtype=np.float32)
    if out_size == 1 or in_size == 1:
        A[:, 0] = 1.0
        return A
    scale = (in_size - 1) / (out_size - 1)
    for i in range(out_size):
        s = i * scale
        p0 = min(int(np.floor(s)), in_size - 1)
        p1 = min(p0 + 1, in_size - 1)
        w1 = s - p0
        A[i, p0] += 1.0 - w1
        A[i, p1] += w1
    return A


def _shifted_upsample_mats(S, H_in, W_in):
    """M_t = Shift_t @ kron(Ah, Aw) for the 9 taps of a 3x3 conv, padding=1.

    Row (i, j) of M_t equals row (i+di-1, j+dj-1) of the upsample matrix when
    in bounds and zero otherwise, so
        conv1(upsample(x)) = sum_t M_t @ x_flat @ w1[t].
    Shape: (9, S*S, H_in*W_in).
    """
    Ah = _bilinear_matrix(S, H_in)
    Aw = _bilinear_matrix(S, W_in)
    M = np.kron(Ah, Aw).reshape(S, S, H_in * W_in)   # [i, j, :] row-major
    mats = np.zeros((9, S * S, H_in * W_in), dtype=np.float32)
    for di in range(3):
        for dj in range(3):
            t = di * 3 + dj
            Mt = np.zeros((S, S, H_in * W_in), dtype=np.float32)
            for i in range(S):
                a = i + di - 1
                if a < 0 or a >= S:
                    continue
                for j in range(S):
                    b = j + dj - 1
                    if 0 <= b < S:
                        Mt[i, j] = M[a, b]
            mats[t] = Mt.reshape(S * S, H_in * W_in)
    return mats


# ----------------------------------------------------------------------------
# Kernel A: bilinear upsample + 3x3 conv (pad=1) + 1x1 conv + fused avg-pool.
# Grid: (batch blocks, C_in tiles).  f32 VMEM tap-product accumulator across
# the C_in axis; the big (S*S x 9*HW_pad) matmul runs once, in the finalize.
# ----------------------------------------------------------------------------
def _make_conv_kernel(nb, HW, HWp, SS, row_chunk):
    inv_hw = 1.0 / float(HW)

    def kernel(x_ref, m_ref, w1_ref, b1_ref, w2_ref, b2_ref,
               img_ref, pool_ref, xw_ref):
        k = pl.program_id(1)
        nk = pl.num_programs(1)

        xb = x_ref[...]                                   # (nb, HWp, tk) bf16

        # adaptive avg-pool to (1,1) for this channel slice (f32 accumulate;
        # padded spatial rows are zero so /HW stays exact).
        pool_ref[...] = (jnp.sum(xb.astype(jnp.float32), axis=1, keepdims=True)
                         * inv_hw)

        @pl.when(k == 0)
        def _():
            # also zeroes the HW..HWp padded rows (kept zero by the zero-padded
            # rows of x), which the zero columns of M_cat rely on.
            xw_ref[...] = jnp.zeros_like(xw_ref)

        # stage 1: accumulate per-tap products only (K = tk fills MXU depth);
        # each tap writes a disjoint, sublane-aligned row block of the scratch.
        for t in range(9):
            w1_t = w1_ref[t]                              # (tk, C_mid) bf16
            for b in range(nb):
                xw_ref[b, t * HWp:(t + 1) * HWp, :] += jnp.dot(
                    xb[b], w1_t, preferred_element_type=jnp.float32)

        # stage 2 (once per batch block): single K~=9*HWp matmul with the
        # K-concatenated upsample operator, then the 1x1 conv, row-chunked so
        # the (S*S, C_mid) intermediate is never fully resident.
        @pl.when(k == nk - 1)
        def _():
            b1 = b1_ref[...]                              # (1, C_mid) f32
            b2 = b2_ref[...]                              # (1, Cp)    f32
            w2 = w2_ref[...]                              # (C_mid, Cp) bf16
            for b in range(nb):
                xw_b = xw_ref[b].astype(jnp.bfloat16)     # (9*HWp, C_mid)
                for r0 in range(0, SS, row_chunk):
                    rc = min(row_chunk, SS - r0)
                    h = jnp.dot(m_ref[r0:r0 + rc, :], xw_b,
                                preferred_element_type=jnp.float32) + b1
                    y = jnp.dot(h.astype(jnp.bfloat16), w2,
                                preferred_element_type=jnp.float32) + b2
                    img_ref[b, r0:r0 + rc, :] = y.astype(img_ref.dtype)

    return kernel


# ----------------------------------------------------------------------------
# Kernel B: fc1, fc2, sigmoid on the (tiny) pooled matrix only.
# ----------------------------------------------------------------------------
def _fc_kernel(p_ref, w1_ref, b1_ref, w2_ref, b2_ref, fv_ref, out_ref):
    pooled = p_ref[...]                                              # (N, C) f32
    fv = jnp.dot(pooled.astype(jnp.bfloat16), w1_ref[...],
                 preferred_element_type=jnp.float32) + b1_ref[...]
    logits = jnp.dot(fv.astype(jnp.bfloat16), w2_ref[...],
                     preferred_element_type=jnp.float32) + b2_ref[...]
    fv_ref[...] = fv
    out_ref[...] = jax.nn.sigmoid(logits)


# ----------------------------------------------------------------------------
# Wrapper: NCHW in -> (NCHW img_features, (1,N,F) feature_vector, (N,12) out)
# ----------------------------------------------------------------------------
def encoder_forward(x_nchw, params, img_feature_size, *, tk=None, nb=None,
                    row_chunk=512):
    N, C_feat, H_in, W_in = x_nchw.shape
    S = int(img_feature_size)
    HW = H_in * W_in
    HWp = ((HW + 7) // 8) * 8           # sublane-aligned spatial length
    SS = S * S

    # channels-last, flattened spatial, zero-padded to HWp rows, bf16 (halves
    # the x DMA; pooling still accumulates in f32 inside the kernel).
    x = jnp.transpose(x_nchw, (0, 2, 3, 1)).astype(jnp.float32).reshape(N, HW, C_feat)
    x = jnp.pad(x, ((0, 0), (0, HWp - HW), (0, 0))).astype(jnp.bfloat16)

    # host-side constant: K-concatenated shifted upsample operators
    # (S*S, 9*HWp); padded columns are zero.
    mats = _shifted_upsample_mats(S, H_in, W_in)           # (9, SS, HW)
    m_cat = np.zeros((SS, 9 * HWp), dtype=np.float32)
    for t in range(9):
        m_cat[:, t * HWp:t * HWp + HW] = mats[t]
    m_dev = jnp.asarray(m_cat, dtype=jnp.bfloat16)

    conv1_w = params["conv1_w"]                     # (3, 3, C_feat, C_mid)
    C_mid = conv1_w.shape[-1]
    conv2_w = params["conv2_w"]                     # (C_mid, C_out)
    C_out = conv2_w.shape[-1]
    fc1_w = params["fc1_w"]                         # (C_feat, F)
    F = fc1_w.shape[-1]

    # weights to bf16; pad conv2 output channels to a lane-dense multiple of
    # 128 so every img store is an unmasked full-lane vst.
    w1r = conv1_w.reshape(9, C_feat, C_mid).astype(jnp.bfloat16)
    Cp = ((C_out + 127) // 128) * 128
    w2p = jnp.zeros((C_mid, Cp), jnp.bfloat16).at[:, :C_out].set(
        conv2_w.astype(jnp.bfloat16))
    b2p = jnp.zeros((1, Cp), jnp.float32).at[:, :C_out].set(
        params["conv2_b"].astype(jnp.float32))

    # C_in reduction tile: 256 fills the v6e/v7x MXU depth; 128 suffices on
    # v5e (128-deep MXU).  Overridable per generation via `tk=`.
    if tk is None:
        tk = next((t for t in (256, 128, 64, 32, 16, 8) if C_feat % t == 0),
                  C_feat)
    assert C_feat % tk == 0
    Kt = C_feat // tk

    # batch block: one streamed w1 tile serves nb samples (nb=4 good on
    # v5e/v6e, nb=2 on v7x's smaller VMEM).  Overridable via `nb=`.
    if nb is None:
        nb = next((b for b in (4, 2, 1) if N % b == 0), 1)
    assert N % nb == 0

    row_chunk = min(row_chunk, SS)

    kernel = _make_conv_kernel(nb, HW, HWp, SS, row_chunk)

    img_flat, pooled3 = pl.pallas_call(
        kernel,
        out_shape=(jax.ShapeDtypeStruct((N, SS, Cp), jnp.bfloat16),
                   jax.ShapeDtypeStruct((N, 1, C_feat), jnp.float32)),
        grid_spec=pltpu.PrefetchScalarGridSpec(
            num_scalar_prefetch=0,
            grid=(N // nb, Kt),
            in_specs=[
                pl.BlockSpec((nb, HWp, tk), lambda n, k: (n, 0, k)),
                pl.BlockSpec((SS, 9 * HWp), lambda n, k: (0, 0)),
                pl.BlockSpec((9, tk, C_mid), lambda n, k: (0, k, 0)),
                pl.BlockSpec((1, C_mid), lambda n, k: (0, 0)),
                pl.BlockSpec((C_mid, Cp), lambda n, k: (0, 0)),
                pl.BlockSpec((1, Cp), lambda n, k: (0, 0)),
            ],
            out_specs=[
                pl.BlockSpec((nb, SS, Cp), lambda n, k: (n, 0, 0)),
                pl.BlockSpec((nb, 1, tk), lambda n, k: (n, 0, k)),
            ],
            scratch_shapes=[pltpu.VMEM((nb, 9 * HWp, C_mid), jnp.float32)],
        ),
        compiler_params=pltpu.CompilerParams(
            dimension_semantics=("parallel", "arbitrary"),
            vmem_limit_bytes=48 * 1024 * 1024),
    )(x, m_dev, w1r, params["conv1_b"].astype(jnp.float32), w2p, b2p)

    pooled = pooled3.reshape(N, C_feat)

    feature_vector, out = pl.pallas_call(
        _fc_kernel,
        out_shape=(jax.ShapeDtypeStruct((N, F), jnp.float32),
                   jax.ShapeDtypeStruct((N, 12), jnp.float32)),
        grid=(1,),
        in_specs=[
            pl.BlockSpec((N, C_feat), lambda i: (0, 0)),
            pl.BlockSpec((C_feat, F), lambda i: (0, 0)),
            pl.BlockSpec((1, F), lambda i: (0, 0)),
            pl.BlockSpec((F, 12), lambda i: (0, 0)),
            pl.BlockSpec((1, 12), lambda i: (0, 0)),
        ],
        out_specs=[pl.BlockSpec((N, F), lambda i: (0, 0)),
                   pl.BlockSpec((N, 12), lambda i: (0, 0))],
    )(pooled, fc1_w.astype(jnp.bfloat16), params["fc1_b"].astype(jnp.float32),
      params["fc2_w"].astype(jnp.bfloat16), params["fc2_b"].astype(jnp.float32))

    # lane-dense bf16 (N, S*S, Cp) -> NCHW f32, dropping the channel padding
    img_features = jnp.transpose(
        img_flat.reshape(N, S, S, Cp)[..., :C_out].astype(jnp.float32),
        (0, 3, 1, 2))

    return (img_features,
            feature_vector.astype(jnp.float32)[None],   # unsqueeze(0)
            out.astype(jnp.float32))


# ----------------------------------------------------------------------------
# Pure NumPy f32 reference (post-backbone part of Encoder.forward).
# ----------------------------------------------------------------------------
def _reference_numpy(x_nchw, params, S):
    x = np.asarray(x_nchw, np.float32)
    p = {k: np.asarray(v, np.float32) for k, v in params.items()}
    N, C, H, W = x.shape
    Ah = _bilinear_matrix(S, H)
    Aw = _bilinear_matrix(S, W)
    up = np.einsum('ph,nchw,qw->ncpq', Ah, x, Aw)          # bilinear, align_corners
    upp = np.pad(up, ((0, 0), (0, 0), (1, 1), (1, 1)))
    w1 = p["conv1_w"]                                      # (3,3,C,Cm)
    Cm = w1.shape[-1]
    h = np.zeros((N, Cm, S, S), np.float32)
    for di in range(3):
        for dj in range(3):
            win = upp[:, :, di:di + S, dj:dj + S]          # (N,C,S,S)
            h += np.einsum('ncpq,cm->nmpq', win, w1[di, dj])
    h += p["conv1_b"].reshape(1, Cm, 1, 1)
    img = (np.einsum('nmpq,md->ndpq', h, p["conv2_w"])
           + p["conv2_b"].reshape(1, -1, 1, 1))
    pooled = x.mean(axis=(2, 3))
    fv = pooled @ p["fc1_w"] + p["fc1_b"]
    out = 1.0 / (1.0 + np.exp(-(fv @ p["fc2_w"] + p["fc2_b"])))
    return img, fv[None], out


if __name__ == "__main__":
    # small shapes standing in for the real module:
    #   backbone output 2048ch -> 256ch, conv1 1024ch -> 128ch,
    #   conv2 256ch -> 64ch, feature_vec_size 1024 -> 32, img_feature 50 -> 16
    N, C_feat, H_in, W_in = 2, 256, 7, 7
    C_mid, C_out, F, S = 128, 64, 32, 16

    key = jax.random.PRNGKey(0)
    ks = jax.random.split(key, 9)
    params = {
        "conv1_w": jax.random.normal(ks[0], (3, 3, C_feat, C_mid), jnp.float32) * 0.02,
        "conv1_b": jax.random.normal(ks[1], (1, C_mid), jnp.float32) * 0.02,
        "conv2_w": jax.random.normal(ks[2], (C_mid, C_out), jnp.float32) * 0.02,
        "conv2_b": jax.random.normal(ks[3], (1, C_out), jnp.float32) * 0.02,
        "fc1_w": jax.random.normal(ks[4], (C_feat, F), jnp.float32) * 0.02,
        "fc1_b": jax.random.normal(ks[5], (1, F), jnp.float32) * 0.02,
        "fc2_w": jax.random.normal(ks[6], (F, 12), jnp.float32) * 0.02,
        "fc2_b": jax.random.normal(ks[7], (1, 12), jnp.float32) * 0.02,
    }
    x = jax.random.normal(ks[8], (N, C_feat, H_in, W_in), jnp.float32)

    # tk=128 forces Kt=2 so the C_in-reduction accumulation path is exercised.
    img_features, feature_vector, out = encoder_forward(
        x, params, img_feature_size=S, tk=128)
    jax.block_until_ready((img_features, feature_vector, out))

    assert img_features.shape == (N, C_out, S, S)
    assert feature_vector.shape == (1, N, F)
    assert out.shape == (N, 12)
    assert img_features.dtype == jnp.float32
    assert feature_vector.dtype == jnp.float32
    assert out.dtype == jnp.float32

    # correctness vs. f32 NumPy reference (bf16 matmul operands -> loose tol)
    ref_img, ref_fv, ref_out = _reference_numpy(x, params, S)
    np.testing.assert_allclose(np.asarray(img_features), ref_img,
                               rtol=5e-2, atol=5e-2)
    np.testing.assert_allclose(np.asarray(feature_vector), ref_fv,
                               rtol=5e-2, atol=5e-2)
    np.testing.assert_allclose(np.asarray(out), ref_out,
                               rtol=5e-2, atol=5e-2)

    print("KERNEL_OK")
</pallas_src>

<mosaic_0001>
module attributes {stable_mosaic.version = 11 : i64} {
  func.func @kernel(%arg0: i32, %arg1: i32, %arg2: memref<2x56x128xbf16, #tpu.memory_space<vmem>>, %arg3: memref<256x504xbf16, #tpu.memory_space<vmem>>, %arg4: memref<9x128x128xbf16, #tpu.memory_space<vmem>>, %arg5: memref<1x128xf32, #tpu.memory_space<vmem>>, %arg6: memref<128x128xbf16, #tpu.memory_space<vmem>>, %arg7: memref<1x128xf32, #tpu.memory_space<vmem>>, %arg8: memref<2x256x128xbf16, #tpu.memory_space<vmem>>, %arg9: memref<2x1x128xf32, #tpu.memory_space<vmem>>, %arg10: memref<2x504x128xf32, #tpu.memory_space<vmem>>) attributes {dimension_semantics = [#tpu.dimension_semantics<parallel>, #tpu.dimension_semantics<arbitrary>], iteration_bounds = array<i64: 1, 2>, scalar_prefetch = 0 : i64, scratch_operands = 1 : i64, tpu.core_type = #tpu.core_type<tc>, window_params = [{transform_indices = @transform_0, window_bounds = array<i64: 2, 56, 128>}, {pipeline_mode = #tpu.pipeline_mode<synchronous>, transform_indices = @transform_1, window_bounds = array<i64: 256, 504>}, {transform_indices = @transform_2, window_bounds = array<i64: 9, 128, 128>}, {pipeline_mode = #tpu.pipeline_mode<synchronous>, transform_indices = @transform_3, window_bounds = array<i64: 1, 128>}, {pipeline_mode = #tpu.pipeline_mode<synchronous>, transform_indices = @transform_4, window_bounds = array<i64: 128, 128>}, {pipeline_mode = #tpu.pipeline_mode<synchronous>, transform_indices = @transform_5, window_bounds = array<i64: 1, 128>}, {transform_indices = @transform_6, window_bounds = array<i64: 2, 256, 128>}, {transform_indices = @transform_7, window_bounds = array<i64: 2, 1, 128>}]} {
    %c0 = arith.constant 0 : index
    %c0_0 = arith.constant 0 : index
    %c0_1 = arith.constant 0 : index
    %0 = vector.load %arg2[%c0, %c0_0, %c0_1] : memref<2x56x128xbf16, #tpu.memory_space<vmem>>, vector<2x56x128xbf16>
    %1 = arith.extf %0 : vector<2x56x128xbf16> to vector<2x56x128xf32>
    %cst = arith.constant dense<0.000000e+00> : vector<2x128xf32>
    %2 = vector.multi_reduction <add>, %1, %cst [1] : vector<2x56x128xf32> to vector<2x128xf32>
    %3 = vector.shape_cast %2 : vector<2x128xf32> to vector<2x1x128xf32>
    %cst_2 = arith.constant 0.0204081628 : f32
    %4 = vector.broadcast %cst_2 : f32 to vector<2x1x128xf32>
    %5 = arith.mulf %3, %4 : vector<2x1x128xf32>
    %c0_3 = arith.constant 0 : index
    %c0_4 = arith.constant 0 : index
    %c0_5 = arith.constant 0 : index
    %6 = vector.load %arg9[%c0_3, %c0_4, %c0_5] : memref<2x1x128xf32, #tpu.memory_space<vmem>>, vector<2x1x128xf32>
    tpu.vector_store %arg9[%c0_3, %c0_4, %c0_5], %5 {strides = array<i32>} : memref<2x1x128xf32, #tpu.memory_space<vmem>>, vector<2x1x128xf32>,
    %c0_i32 = arith.constant 0 : i32
    %7 = arith.cmpi eq, %arg1, %c0_i32 : i32
    %8 = arith.extui %7 : i1 to i32
    %c0_i32_6 = arith.constant 0 : i32
    %9 = arith.cmpi ne, %8, %c0_i32_6 : i32
    scf.if %9 {
      %cst_145 = arith.constant 0.000000e+00 : f32
      %193 = vector.broadcast %cst_145 : f32 to vector<2x504x128xf32>
      %c0_146 = arith.constant 0 : index
      %c0_147 = arith.constant 0 : index
      %c0_148 = arith.constant 0 : index
      %194 = vector.load %arg10[%c0_146, %c0_147, %c0_148] : memref<2x504x128xf32, #tpu.memory_space<vmem>>, vector<2x504x128xf32>
      tpu.vector_store %arg10[%c0_146, %c0_147, %c0_148], %193 {strides = array<i32>} : memref<2x504x128xf32, #tpu.memory_space<vmem>>, vector<2x504x128xf32>,
    } else {
    }
    %c0_7 = arith.constant 0 : index
    %c0_8 = arith.constant 0 : index
    %c0_9 = arith.constant 0 : index
    %10 = vector.load %arg4[%c0_7, %c0_8, %c0_9] : memref<9x128x128xbf16, #tpu.memory_space<vmem>>, vector<1x128x128xbf16>
    %11 = vector.shape_cast %10 : vector<1x128x128xbf16> to vector<128x128xbf16>
    %c0_10 = arith.constant 0 : index
    %c0_11 = arith.constant 0 : index
    %c0_12 = arith.constant 0 : index
    %12 = vector.load %arg10[%c0_10, %c0_11, %c0_12] : memref<2x504x128xf32, #tpu.memory_space<vmem>>, vector<1x56x128xf32>
    %13 = vector.shape_cast %12 : vector<1x56x128xf32> to vector<56x128xf32>
    %14 = vector.extract_strided_slice %0 {offsets = [0, 0, 0], sizes = [1, 56, 128], strides = [1, 1, 1]} : vector<2x56x128xbf16> to vector<1x56x128xbf16>
    %15 = vector.shape_cast %14 : vector<1x56x128xbf16> to vector<56x128xbf16>
    %cst_13 = arith.constant dense<0.000000e+00> : vector<56x128xf32>
    %16 = tpu.matmul %15, %11, %cst_13 {dimension_numbers = #tpu.dot_dimension_numbers<[1], [0], [0], [1], [0, 0, 1, 1], [], []>} : vector<56x128xbf16>, vector<128x128xbf16>, vector<56x128xf32> -> vector<56x128xf32>
    %17 = arith.addf %13, %16 : vector<56x128xf32>
    %c0_14 = arith.constant 0 : index
    %c0_15 = arith.constant 0 : index
    %c0_16 = arith.constant 0 : index
    %18 = vector.load %arg10[%c0_14, %c0_15, %c0_16] : memref<2x504x128xf32, #tpu.memory_space<vmem>>, vector<1x56x128xf32>
    %19 = vector.shape_cast %18 : vector<1x56x128xf32> to vector<56x128xf32>
    %20 = vector.shape_cast %17 : vector<56x128xf32> to vector<1x56x128xf32>
    tpu.vector_store %arg10[%c0_14, %c0_15, %c0_16], %20 {strides = array<i32>} : memref<2x504x128xf32, #tpu.memory_space<vmem>>, vector<1x56x128xf32>,
    %c1 = arith.constant 1 : index
    %c0_17 = arith.constant 0 : index
    %c0_18 = arith.constant 0 : index
    %21 = vector.load %arg10[%c1, %c0_17, %c0_18] : memref<2x504x128xf32, #tpu.memory_space<vmem>>, vector<1x56x128xf32>
    %22 = vector.shape_cast %21 : vector<1x56x128xf32> to vector<56x128xf32>
    %23 = vector.extract_strided_slice %0 {offsets = [1, 0, 0], sizes = [1, 56, 128], strides = [1, 1, 1]} : vector<2x56x128xbf16> to vector<1x56x128xbf16>
    %24 = vector.shape_cast %23 : vector<1x56x128xbf16> to vector<56x128xbf16>
    %cst_19 = arith.constant dense<0.000000e+00> : vector<56x128xf32>
    %25 = tpu.matmul %24, %11, %cst_19 {dimension_numbers = #tpu.dot_dimension_numbers<[1], [0], [0], [1], [0, 0, 1, 1], [], []>} : vector<56x128xbf16>, vector<128x128xbf16>, vector<56x128xf32> -> vector<56x128xf32>
    %26 = arith.addf %22, %25 : vector<56x128xf32>
    %c1_20 = arith.constant 1 : index
    %c0_21 = arith.constant 0 : index
    %c0_22 = arith.constant 0 : index
    %27 = vector.load %arg10[%c1_20, %c0_21, %c0_22] : memref<2x504x128xf32, #tpu.memory_space<vmem>>, vector<1x56x128xf32>
    %28 = vector.shape_cast %27 : vector<1x56x128xf32> to vector<56x128xf32>
    %29 = vector.shape_cast %26 : vector<56x128xf32> to vector<1x56x128xf32>
    tpu.vector_store %arg10[%c1_20, %c0_21, %c0_22], %29 {strides = array<i32>} : memref<2x504x128xf32, #tpu.memory_space<vmem>>, vector<1x56x128xf32>,
    %c1_23 = arith.constant 1 : index
    %c0_24 = arith.constant 0 : index
    %c0_25 = arith.constant 0 : index
    %30 = vector.load %arg4[%c1_23, %c0_24, %c0_25] : memref<9x128x128xbf16, #tpu.memory_space<vmem>>, vector<1x128x128xbf16>
    %31 = vector.shape_cast %30 : vector<1x128x128xbf16> to vector<128x128xbf16>
    %c0_26 = arith.constant 0 : index
    %c56 = arith.constant 56 : index
    %c0_27 = arith.constant 0 : index
    %32 = vector.load %arg10[%c0_26, %c56, %c0_27] : memref<2x504x128xf32, #tpu.memory_space<vmem>>, vector<1x56x128xf32>
    %33 = vector.shape_cast %32 : vector<1x56x128xf32> to vector<56x128xf32>
    %34 = vector.extract_strided_slice %0 {offsets = [0, 0, 0], sizes = [1, 56, 128], strides = [1, 1, 1]} : vector<2x56x128xbf16> to vector<1x56x128xbf16>
    %35 = vector.shape_cast %34 : vector<1x56x128xbf16> to vector<56x128xbf16>
    %cst_28 = arith.constant dense<0.000000e+00> : vector<56x128xf32>
    %36 = tpu.matmul %35, %31, %cst_28 {dimension_numbers = #tpu.dot_dimension_numbers<[1], [0], [0], [1], [0, 0, 1, 1], [], []>} : vector<56x128xbf16>, vector<128x128xbf16>, vector<56x128xf32> -> vector<56x128xf32>
    %37 = arith.addf %33, %36 : vector<56x128xf32>
    %c0_29 = arith.constant 0 : index
    %c56_30 = arith.constant 56 : index
    %c0_31 = arith.constant 0 : index
    %38 = vector.load %arg10[%c0_29, %c56_30, %c0_31] : memref<2x504x128xf32, #tpu.memory_space<vmem>>, vector<1x56x128xf32>
    %39 = vector.shape_cast %38 : vector<1x56x128xf32> to vector<56x128xf32>
    %40 = vector.shape_cast %37 : vector<56x128xf32> to vector<1x56x128xf32>
    tpu.vector_store %arg10[%c0_29, %c56_30, %c0_31], %40 {strides = array<i32>} : memref<2x504x128xf32, #tpu.memory_space<vmem>>, vector<1x56x128xf32>,
    %c1_32 = arith.constant 1 : index
    %c56_33 = arith.constant 56 : index
    %c0_34 = arith.constant 0 : index
    %41 = vector.load %arg10[%c1_32, %c56_33, %c0_34] : memref<2x504x128xf32, #tpu.memory_space<vmem>>, vector<1x56x128xf32>
    %42 = vector.shape_cast %41 : vector<1x56x128xf32> to vector<56x128xf32>
    %43 = vector.extract_strided_slice %0 {offsets = [1, 0, 0], sizes = [1, 56, 128], strides = [1, 1, 1]} : vector<2x56x128xbf16> to vector<1x56x128xbf16>
    %44 = vector.shape_cast %43 : vector<1x56x128xbf16> to vector<56x128xbf16>
    %cst_35 = arith.constant dense<0.000000e+00> : vector<56x128xf32>
    %45 = tpu.matmul %44, %31, %cst_35 {dimension_numbers = #tpu.dot_dimension_numbers<[1], [0], [0], [1], [0, 0, 1, 1], [], []>} : vector<56x128xbf16>, vector<128x128xbf16>, vector<56x128xf32> -> vector<56x128xf32>
    %46 = arith.addf %42, %45 : vector<56x128xf32>
    %c1_36 = arith.constant 1 : index
    %c56_37 = arith.constant 56 : index
    %c0_38 = arith.constant 0 : index
    %47 = vector.load %arg10[%c1_36, %c56_37, %c0_38] : memref<2x504x128xf32, #tpu.memory_space<vmem>>, vector<1x56x128xf32>
    %48 = vector.shape_cast %47 : vector<1x56x128xf32> to vector<56x128xf32>
    %49 = vector.shape_cast %46 : vector<56x128xf32> to vector<1x56x128xf32>
    tpu.vector_store %arg10[%c1_36, %c56_37, %c0_38], %49 {strides = array<i32>} : memref<2x504x128xf32, #tpu.memory_space<vmem>>, vector<1x56x128xf32>,
    %c2 = arith.constant 2 : index
    %c0_39 = arith.constant 0 : index
    %c0_40 = arith.constant 0 : index
    %50 = vector.load %arg4[%c2, %c0_39, %c0_40] : memref<9x128x128xbf16, #tpu.memory_space<vmem>>, vector<1x128x128xbf16>
    %51 = vector.shape_cast %50 : vector<1x128x128xbf16> to vector<128x128xbf16>
    %c0_41 = arith.constant 0 : index
    %c112 = arith.constant 112 : index
    %c0_42 = arith.constant 0 : index
    %52 = vector.load %arg10[%c0_41, %c112, %c0_42] : memref<2x504x128xf32, #tpu.memory_space<vmem>>, vector<1x56x128xf32>
    %53 = vector.shape_cast %52 : vector<1x56x128xf32> to vector<56x128xf32>
    %54 = vector.extract_strided_slice %0 {offsets = [0, 0, 0], sizes = [1, 56, 128], strides = [1, 1, 1]} : vector<2x56x128xbf16> to vector<1x56x128xbf16>
    %55 = vector.shape_cast %54 : vector<1x56x128xbf16> to vector<56x128xbf16>
    %cst_43 = arith.constant dense<0.000000e+00> : vector<56x128xf32>
    %56 = tpu.matmul %55, %51, %cst_43 {dimension_numbers = #tpu.dot_dimension_numbers<[1], [0], [0], [1], [0, 0, 1, 1], [], []>} : vector<56x128xbf16>, vector<128x128xbf16>, vector<56x128xf32> -> vector<56x128xf32>
    %57 = arith.addf %53, %56 : vector<56x128xf32>
    %c0_44 = arith.constant 0 : index
    %c112_45 = arith.constant 112 : index
    %c0_46 = arith.constant 0 : index
    %58 = vector.load %arg10[%c0_44, %c112_45, %c0_46] : memref<2x504x128xf32, #tpu.memory_space<vmem>>, vector<1x56x128xf32>
    %59 = vector.shape_cast %58 : vector<1x56x128xf32> to vector<56x128xf32>
    %60 = vector.shape_cast %57 : vector<56x128xf32> to vector<1x56x128xf32>
    tpu.vector_store %arg10[%c0_44, %c112_45, %c0_46], %60 {strides = array<i32>} : memref<2x504x128xf32, #tpu.memory_space<vmem>>, vector<1x56x128xf32>,
    %c1_47 = arith.constant 1 : index
    %c112_48 = arith.constant 112 : index
    %c0_49 = arith.constant 0 : index
    %61 = vector.load %arg10[%c1_47, %c112_48, %c0_49] : memref<2x504x128xf32, #tpu.memory_space<vmem>>, vector<1x56x128xf32>
    %62 = vector.shape_cast %61 : vector<1x56x128xf32> to vector<56x128xf32>
    %63 = vector.extract_strided_slice %0 {offsets = [1, 0, 0], sizes = [1, 56, 128], strides = [1, 1, 1]} : vector<2x56x128xbf16> to vector<1x56x128xbf16>
    %64 = vector.shape_cast %63 : vector<1x56x128xbf16> to vector<56x128xbf16>
    %cst_50 = arith.constant dense<0.000000e+00> : vector<56x128xf32>
    %65 = tpu.matmul %64, %51, %cst_50 {dimension_numbers = #tpu.dot_dimension_numbers<[1], [0], [0], [1], [0, 0, 1, 1], [], []>} : vector<56x128xbf16>, vector<128x128xbf16>, vector<56x128xf32> -> vector<56x128xf32>
    %66 = arith.addf %62, %65 : vector<56x128xf32>
    %c1_51 = arith.constant 1 : index
    %c112_52 = arith.constant 112 : index
    %c0_53 = arith.constant 0 : index
    %67 = vector.load %arg10[%c1_51, %c112_52, %c0_53] : memref<2x504x128xf32, #tpu.memory_space<vmem>>, vector<1x56x128xf32>
    %68 = vector.shape_cast %67 : vector<1x56x128xf32> to vector<56x128xf32>
    %69 = vector.shape_cast %66 : vector<56x128xf32> to vector<1x56x128xf32>
    tpu.vector_store %arg10[%c1_51, %c112_52, %c0_53], %69 {strides = array<i32>} : memref<2x504x128xf32, #tpu.memory_space<vmem>>, vector<1x56x128xf32>,
    %c3 = arith.constant 3 : index
    %c0_54 = arith.constant 0 : index
    %c0_55 = arith.constant 0 : index
    %70 = vector.load %arg4[%c3, %c0_54, %c0_55] : memref<9x128x128xbf16, #tpu.memory_space<vmem>>, vector<1x128x128xbf16>
    %71 = vector.shape_cast %70 : vector<1x128x128xbf16> to vector<128x128xbf16>
    %c0_56 = arith.constant 0 : index
    %c168 = arith.constant 168 : index
    %c0_57 = arith.constant 0 : index
    %72 = vector.load %arg10[%c0_56, %c168, %c0_57] : memref<2x504x128xf32, #tpu.memory_space<vmem>>, vector<1x56x128xf32>
    %73 = vector.shape_cast %72 : vector<1x56x128xf32> to vector<56x128xf32>
    %74 = vector.extract_strided_slice %0 {offsets = [0, 0, 0], sizes = [1, 56, 128], strides = [1, 1, 1]} : vector<2x56x128xbf16> to vector<1x56x128xbf16>
    %75 = vector.shape_cast %74 : vector<1x56x128xbf16> to vector<56x128xbf16>
    %cst_58 = arith.constant dense<0.000000e+00> : vector<56x128xf32>
    %76 = tpu.matmul %75, %71, %cst_58 {dimension_numbers = #tpu.dot_dimension_numbers<[1], [0], [0], [1], [0, 0, 1, 1], [], []>} : vector<56x128xbf16>, vector<128x128xbf16>, vector<56x128xf32> -> vector<56x128xf32>
    %77 = arith.addf %73, %76 : vector<56x128xf32>
    %c0_59 = arith.constant 0 : index
    %c168_60 = arith.constant 168 : index
    %c0_61 = arith.constant 0 : index
    %78 = vector.load %arg10[%c0_59, %c168_60, %c0_61] : memref<2x504x128xf32, #tpu.memory_space<vmem>>, vector<1x56x128xf32>
    %79 = vector.shape_cast %78 : vector<1x56x128xf32> to vector<56x128xf32>
    %80 = vector.shape_cast %77 : vector<56x128xf32> to vector<1x56x128xf32>
    tpu.vector_store %arg10[%c0_59, %c168_60, %c0_61], %80 {strides = array<i32>} : memref<2x504x128xf32, #tpu.memory_space<vmem>>, vector<1x56x128xf32>,
    %c1_62 = arith.constant 1 : index
    %c168_63 = arith.constant 168 : index
    %c0_64 = arith.constant 0 : index
    %81 = vector.load %arg10[%c1_62, %c168_63, %c0_64] : memref<2x504x128xf32, #tpu.memory_space<vmem>>, vector<1x56x128xf32>
    %82 = vector.shape_cast %81 : vector<1x56x128xf32> to vector<56x128xf32>
    %83 = vector.extract_strided_slice %0 {offsets = [1, 0, 0], sizes = [1, 56, 128], strides = [1, 1, 1]} : vector<2x56x128xbf16> to vector<1x56x128xbf16>
    %84 = vector.shape_cast %83 : vector<1x56x128xbf16> to vector<56x128xbf16>
    %cst_65 = arith.constant dense<0.000000e+00> : vector<56x128xf32>
    %85 = tpu.matmul %84, %71, %cst_65 {dimension_numbers = #tpu.dot_dimension_numbers<[1], [0], [0], [1], [0, 0, 1, 1], [], []>} : vector<56x128xbf16>, vector<128x128xbf16>, vector<56x128xf32> -> vector<56x128xf32>
    %86 = arith.addf %82, %85 : vector<56x128xf32>
    %c1_66 = arith.constant 1 : index
    %c168_67 = arith.constant 168 : index
    %c0_68 = arith.constant 0 : index
    %87 = vector.load %arg10[%c1_66, %c168_67, %c0_68] : memref<2x504x128xf32, #tpu.memory_space<vmem>>, vector<1x56x128xf32>
    %88 = vector.shape_cast %87 : vector<1x56x128xf32> to vector<56x128xf32>
    %89 = vector.shape_cast %86 : vector<56x128xf32> to vector<1x56x128xf32>
    tpu.vector_store %arg10[%c1_66, %c168_67, %c0_68], %89 {strides = array<i32>} : memref<2x504x128xf32, #tpu.memory_space<vmem>>, vector<1x56x128xf32>,
    %c4 = arith.constant 4 : index
    %c0_69 = arith.constant 0 : index
    %c0_70 = arith.constant 0 : index
    %90 = vector.load %arg4[%c4, %c0_69, %c0_70] : memref<9x128x128xbf16, #tpu.memory_space<vmem>>, vector<1x128x128xbf16>
    %91 = vector.shape_cast %90 : vector<1x128x128xbf16> to vector<128x128xbf16>
    %c0_71 = arith.constant 0 : index
    %c224 = arith.constant 224 : index
    %c0_72 = arith.constant 0 : index
    %92 = vector.load %arg10[%c0_71, %c224, %c0_72] : memref<2x504x128xf32, #tpu.memory_space<vmem>>, vector<1x56x128xf32>
    %93 = vector.shape_cast %92 : vector<1x56x128xf32> to vector<56x128xf32>
    %94 = vector.extract_strided_slice %0 {offsets = [0, 0, 0], sizes = [1, 56, 128], strides = [1, 1, 1]} : vector<2x56x128xbf16> to vector<1x56x128xbf16>
    %95 = vector.shape_cast %94 : vector<1x56x128xbf16> to vector<56x128xbf16>
    %cst_73 = arith.constant dense<0.000000e+00> : vector<56x128xf32>
    %96 = tpu.matmul %95, %91, %cst_73 {dimension_numbers = #tpu.dot_dimension_numbers<[1], [0], [0], [1], [0, 0, 1, 1], [], []>} : vector<56x128xbf16>, vector<128x128xbf16>, vector<56x128xf32> -> vector<56x128xf32>
    %97 = arith.addf %93, %96 : vector<56x128xf32>
    %c0_74 = arith.constant 0 : index
    %c224_75 = arith.constant 224 : index
    %c0_76 = arith.constant 0 : index
    %98 = vector.load %arg10[%c0_74, %c224_75, %c0_76] : memref<2x504x128xf32, #tpu.memory_space<vmem>>, vector<1x56x128xf32>
    %99 = vector.shape_cast %98 : vector<1x56x128xf32> to vector<56x128xf32>
    %100 = vector.shape_cast %97 : vector<56x128xf32> to vector<1x56x128xf32>
    tpu.vector_store %arg10[%c0_74, %c224_75, %c0_76], %100 {strides = array<i32>} : memref<2x504x128xf32, #tpu.memory_space<vmem>>, vector<1x56x128xf32>,
    %c1_77 = arith.constant 1 : index
    %c224_78 = arith.constant 224 : index
    %c0_79 = arith.constant 0 : index
    %101 = vector.load %arg10[%c1_77, %c224_78, %c0_79] : memref<2x504x128xf32, #tpu.memory_space<vmem>>, vector<1x56x128xf32>
    %102 = vector.shape_cast %101 : vector<1x56x128xf32> to vector<56x128xf32>
    %103 = vector.extract_strided_slice %0 {offsets = [1, 0, 0], sizes = [1, 56, 128], strides = [1, 1, 1]} : vector<2x56x128xbf16> to vector<1x56x128xbf16>
    %104 = vector.shape_cast %103 : vector<1x56x128xbf16> to vector<56x128xbf16>
    %cst_80 = arith.constant dense<0.000000e+00> : vector<56x128xf32>
    %105 = tpu.matmul %104, %91, %cst_80 {dimension_numbers = #tpu.dot_dimension_numbers<[1], [0], [0], [1], [0, 0, 1, 1], [], []>} : vector<56x128xbf16>, vector<128x128xbf16>, vector<56x128xf32> -> vector<56x128xf32>
    %106 = arith.addf %102, %105 : vector<56x128xf32>
    %c1_81 = arith.constant 1 : index
    %c224_82 = arith.constant 224 : index
    %c0_83 = arith.constant 0 : index
    %107 = vector.load %arg10[%c1_81, %c224_82, %c0_83] : memref<2x504x128xf32, #tpu.memory_space<vmem>>, vector<1x56x128xf32>
    %108 = vector.shape_cast %107 : vector<1x56x128xf32> to vector<56x128xf32>
    %109 = vector.shape_cast %106 : vector<56x128xf32> to vector<1x56x128xf32>
    tpu.vector_store %arg10[%c1_81, %c224_82, %c0_83], %109 {strides = array<i32>} : memref<2x504x128xf32, #tpu.memory_space<vmem>>, vector<1x56x128xf32>,
    %c5 = arith.constant 5 : index
    %c0_84 = arith.constant 0 : index
    %c0_85 = arith.constant 0 : index
    %110 = vector.load %arg4[%c5, %c0_84, %c0_85] : memref<9x128x128xbf16, #tpu.memory_space<vmem>>, vector<1x128x128xbf16>
    %111 = vector.shape_cast %110 : vector<1x128x128xbf16> to vector<128x128xbf16>
    %c0_86 = arith.constant 0 : index
    %c280 = arith.constant 280 : index
    %c0_87 = arith.constant 0 : index
    %112 = vector.load %arg10[%c0_86, %c280, %c0_87] : memref<2x504x128xf32, #tpu.memory_space<vmem>>, vector<1x56x128xf32>
    %113 = vector.shape_cast %112 : vector<1x56x128xf32> to vector<56x128xf32>
    %114 = vector.extract_strided_slice %0 {offsets = [0, 0, 0], sizes = [1, 56, 128], strides = [1, 1, 1]} : vector<2x56x128xbf16> to vector<1x56x128xbf16>
    %115 = vector.shape_cast %114 : vector<1x56x128xbf16> to vector<56x128xbf16>
    %cst_88 = arith.constant dense<0.000000e+00> : vector<56x128xf32>
    %116 = tpu.matmul %115, %111, %cst_88 {dimension_numbers = #tpu.dot_dimension_numbers<[1], [0], [0], [1], [0, 0, 1, 1], [], []>} : vector<56x128xbf16>, vector<128x128xbf16>, vector<56x128xf32> -> vector<56x128xf32>
    %117 = arith.addf %113, %116 : vector<56x128xf32>
    %c0_89 = arith.constant 0 : index
    %c280_90 = arith.constant 280 : index
    %c0_91 = arith.constant 0 : index
    %118 = vector.load %arg10[%c0_89, %c280_90, %c0_91] : memref<2x504x128xf32, #tpu.memory_space<vmem>>, vector<1x56x128xf32>
    %119 = vector.shape_cast %118 : vector<1x56x128xf32> to vector<56x128xf32>
    %120 = vector.shape_cast %117 : vector<56x128xf32> to vector<1x56x128xf32>
    tpu.vector_store %arg10[%c0_89, %c280_90, %c0_91], %120 {strides = array<i32>} : memref<2x504x128xf32, #tpu.memory_space<vmem>>, vector<1x56x128xf32>,
    %c1_92 = arith.constant 1 : index
    %c280_93 = arith.constant 280 : index
    %c0_94 = arith.constant 0 : index
    %121 = vector.load %arg10[%c1_92, %c280_93, %c0_94] : memref<2x504x128xf32, #tpu.memory_space<vmem>>, vector<1x56x128xf32>
    %122 = vector.shape_cast %121 : vector<1x56x128xf32> to vector<56x128xf32>
    %123 = vector.extract_strided_slice %0 {offsets = [1, 0, 0], sizes = [1, 56, 128], strides = [1, 1, 1]} : vector<2x56x128xbf16> to vector<1x56x128xbf16>
    %124 = vector.shape_cast %123 : vector<1x56x128xbf16> to vector<56x128xbf16>
    %cst_95 = arith.constant dense<0.000000e+00> : vector<56x128xf32>
    %125 = tpu.matmul %124, %111, %cst_95 {dimension_numbers = #tpu.dot_dimension_numbers<[1], [0], [0], [1], [0, 0, 1, 1], [], []>} : vector<56x128xbf16>, vector<128x128xbf16>, vector<56x128xf32> -> vector<56x128xf32>
    %126 = arith.addf %122, %125 : vector<56x128xf32>
    %c1_96 = arith.constant 1 : index
    %c280_97 = arith.constant 280 : index
    %c0_98 = arith.constant 0 : index
    %127 = vector.load %arg10[%c1_96, %c280_97, %c0_98] : memref<2x504x128xf32, #tpu.memory_space<vmem>>, vector<1x56x128xf32>
    %128 = vector.shape_cast %127 : vector<1x56x128xf32> to vector<56x128xf32>
    %129 = vector.shape_cast %126 : vector<56x128xf32> to vector<1x56x128xf32>
    tpu.vector_store %arg10[%c1_96, %c280_97, %c0_98], %129 {strides = array<i32>} : memref<2x504x128xf32, #tpu.memory_space<vmem>>, vector<1x56x128xf32>,
    %c6 = arith.constant 6 : index
    %c0_99 = arith.constant 0 : index
    %c0_100 = arith.constant 0 : index
    %130 = vector.load %arg4[%c6, %c0_99, %c0_100] : memref<9x128x128xbf16, #tpu.memory_space<vmem>>, vector<1x128x128xbf16>
    %131 = vector.shape_cast %130 : vector<1x128x128xbf16> to vector<128x128xbf16>
    %c0_101 = arith.constant 0 : index
    %c336 = arith.constant 336 : index
    %c0_102 = arith.constant 0 : index
    %132 = vector.load %arg10[%c0_101, %c336, %c0_102] : memref<2x504x128xf32, #tpu.memory_space<vmem>>, vector<1x56x128xf32>
    %133 = vector.shape_cast %132 : vector<1x56x128xf32> to vector<56x128xf32>
    %134 = vector.extract_strided_slice %0 {offsets = [0, 0, 0], sizes = [1, 56, 128], strides = [1, 1, 1]} : vector<2x56x128xbf16> to vector<1x56x128xbf16>
    %135 = vector.shape_cast %134 : vector<1x56x128xbf16> to vector<56x128xbf16>
    %cst_103 = arith.constant dense<0.000000e+00> : vector<56x128xf32>
    %136 = tpu.matmul %135, %131, %cst_103 {dimension_numbers = #tpu.dot_dimension_numbers<[1], [0], [0], [1], [0, 0, 1, 1], [], []>} : vector<56x128xbf16>, vector<128x128xbf16>, vector<56x128xf32> -> vector<56x128xf32>
    %137 = arith.addf %133, %136 : vector<56x128xf32>
    %c0_104 = arith.constant 0 : index
    %c336_105 = arith.constant 336 : index
    %c0_106 = arith.constant 0 : index
    %138 = vector.load %arg10[%c0_104, %c336_105, %c0_106] : memref<2x504x128xf32, #tpu.memory_space<vmem>>, vector<1x56x128xf32>
    %139 = vector.shape_cast %138 : vector<1x56x128xf32> to vector<56x128xf32>
    %140 = vector.shape_cast %137 : vector<56x128xf32> to vector<1x56x128xf32>
    tpu.vector_store %arg10[%c0_104, %c336_105, %c0_106], %140 {strides = array<i32>} : memref<2x504x128xf32, #tpu.memory_space<vmem>>, vector<1x56x128xf32>,
    %c1_107 = arith.constant 1 : index
    %c336_108 = arith.constant 336 : index
    %c0_109 = arith.constant 0 : index
    %141 = vector.load %arg10[%c1_107, %c336_108, %c0_109] : memref<2x504x128xf32, #tpu.memory_space<vmem>>, vector<1x56x128xf32>
    %142 = vector.shape_cast %141 : vector<1x56x128xf32> to vector<56x128xf32>
    %143 = vector.extract_strided_slice %0 {offsets = [1, 0, 0], sizes = [1, 56, 128], strides = [1, 1, 1]} : vector<2x56x128xbf16> to vector<1x56x128xbf16>
    %144 = vector.shape_cast %143 : vector<1x56x128xbf16> to vector<56x128xbf16>
    %cst_110 = arith.constant dense<0.000000e+00> : vector<56x128xf32>
    %145 = tpu.matmul %144, %131, %cst_110 {dimension_numbers = #tpu.dot_dimension_numbers<[1], [0], [0], [1], [0, 0, 1, 1], [], []>} : vector<56x128xbf16>, vector<128x128xbf16>, vector<56x128xf32> -> vector<56x128xf32>
    %146 = arith.addf %142, %145 : vector<56x128xf32>
    %c1_111 = arith.constant 1 : index
    %c336_112 = arith.constant 336 : index
    %c0_113 = arith.constant 0 : index
    %147 = vector.load %arg10[%c1_111, %c336_112, %c0_113] : memref<2x504x128xf32, #tpu.memory_space<vmem>>, vector<1x56x128xf32>
    %148 = vector.shape_cast %147 : vector<1x56x128xf32> to vector<56x128xf32>
    %149 = vector.shape_cast %146 : vector<56x128xf32> to vector<1x56x128xf32>
    tpu.vector_store %arg10[%c1_111, %c336_112, %c0_113], %149 {strides = array<i32>} : memref<2x504x128xf32, #tpu.memory_space<vmem>>, vector<1x56x128xf32>,
    %c7 = arith.constant 7 : index
    %c0_114 = arith.constant 0 : index
    %c0_115 = arith.constant 0 : index
    %150 = vector.load %arg4[%c7, %c0_114, %c0_115] : memref<9x128x128xbf16, #tpu.memory_space<vmem>>, vector<1x128x128xbf16>
    %151 = vector.shape_cast %150 : vector<1x128x128xbf16> to vector<128x128xbf16>
    %c0_116 = arith.constant 0 : index
    %c392 = arith.constant 392 : index
    %c0_117 = arith.constant 0 : index
    %152 = vector.load %arg10[%c0_116, %c392, %c0_117] : memref<2x504x128xf32, #tpu.memory_space<vmem>>, vector<1x56x128xf32>
    %153 = vector.shape_cast %152 : vector<1x56x128xf32> to vector<56x128xf32>
    %154 = vector.extract_strided_slice %0 {offsets = [0, 0, 0], sizes = [1, 56, 128], strides = [1, 1, 1]} : vector<2x56x128xbf16> to vector<1x56x128xbf16>
    %155 = vector.shape_cast %154 : vector<1x56x128xbf16> to vector<56x128xbf16>
    %cst_118 = arith.constant dense<0.000000e+00> : vector<56x128xf32>
    %156 = tpu.matmul %155, %151, %cst_118 {dimension_numbers = #tpu.dot_dimension_numbers<[1], [0], [0], [1], [0, 0, 1, 1], [], []>} : vector<56x128xbf16>, vector<128x128xbf16>, vector<56x128xf32> -> vector<56x128xf32>
    %157 = arith.addf %153, %156 : vector<56x128xf32>
    %c0_119 = arith.constant 0 : index
    %c392_120 = arith.constant 392 : index
    %c0_121 = arith.constant 0 : index
    %158 = vector.load %arg10[%c0_119, %c392_120, %c0_121] : memref<2x504x128xf32, #tpu.memory_space<vmem>>, vector<1x56x128xf32>
    %159 = vector.shape_cast %158 : vector<1x56x128xf32> to vector<56x128xf32>
    %160 = vector.shape_cast %157 : vector<56x128xf32> to vector<1x56x128xf32>
    tpu.vector_store %arg10[%c0_119, %c392_120, %c0_121], %160 {strides = array<i32>} : memref<2x504x128xf32, #tpu.memory_space<vmem>>, vector<1x56x128xf32>,
    %c1_122 = arith.constant 1 : index
    %c392_123 = arith.constant 392 : index
    %c0_124 = arith.constant 0 : index
    %161 = vector.load %arg10[%c1_122, %c392_123, %c0_124] : memref<2x504x128xf32, #tpu.memory_space<vmem>>, vector<1x56x128xf32>
    %162 = vector.shape_cast %161 : vector<1x56x128xf32> to vector<56x128xf32>
    %163 = vector.extract_strided_slice %0 {offsets = [1, 0, 0], sizes = [1, 56, 128], strides = [1, 1, 1]} : vector<2x56x128xbf16> to vector<1x56x128xbf16>
    %164 = vector.shape_cast %163 : vector<1x56x128xbf16> to vector<56x128xbf16>
    %cst_125 = arith.constant dense<0.000000e+00> : vector<56x128xf32>
    %165 = tpu.matmul %164, %151, %cst_125 {dimension_numbers = #tpu.dot_dimension_numbers<[1], [0], [0], [1], [0, 0, 1, 1], [], []>} : vector<56x128xbf16>, vector<128x128xbf16>, vector<56x128xf32> -> vector<56x128xf32>
    %166 = arith.addf %162, %165 : vector<56x128xf32>
    %c1_126 = arith.constant 1 : index
    %c392_127 = arith.constant 392 : index
    %c0_128 = arith.constant 0 : index
    %167 = vector.load %arg10[%c1_126, %c392_127, %c0_128] : memref<2x504x128xf32, #tpu.memory_space<vmem>>, vector<1x56x128xf32>
    %168 = vector.shape_cast %167 : vector<1x56x128xf32> to vector<56x128xf32>
    %169 = vector.shape_cast %166 : vector<56x128xf32> to vector<1x56x128xf32>
    tpu.vector_store %arg10[%c1_126, %c392_127, %c0_128], %169 {strides = array<i32>} : memref<2x504x128xf32, #tpu.memory_space<vmem>>, vector<1x56x128xf32>,
    %c8 = arith.constant 8 : index
    %c0_129 = arith.constant 0 : index
    %c0_130 = arith.constant 0 : index
    %170 = vector.load %arg4[%c8, %c0_129, %c0_130] : memref<9x128x128xbf16, #tpu.memory_space<vmem>>, vector<1x128x128xbf16>
    %171 = vector.shape_cast %170 : vector<1x128x128xbf16> to vector<128x128xbf16>
    %c0_131 = arith.constant 0 : index
    %c448 = arith.constant 448 : index
    %c0_132 = arith.constant 0 : index
    %172 = vector.load %arg10[%c0_131, %c448, %c0_132] : memref<2x504x128xf32, #tpu.memory_space<vmem>>, vector<1x56x128xf32>
    %173 = vector.shape_cast %172 : vector<1x56x128xf32> to vector<56x128xf32>
    %174 = vector.extract_strided_slice %0 {offsets = [0, 0, 0], sizes = [1, 56, 128], strides = [1, 1, 1]} : vector<2x56x128xbf16> to vector<1x56x128xbf16>
    %175 = vector.shape_cast %174 : vector<1x56x128xbf16> to vector<56x128xbf16>
    %cst_133 = arith.constant dense<0.000000e+00> : vector<56x128xf32>
    %176 = tpu.matmul %175, %171, %cst_133 {dimension_numbers = #tpu.dot_dimension_numbers<[1], [0], [0], [1], [0, 0, 1, 1], [], []>} : vector<56x128xbf16>, vector<128x128xbf16>, vector<56x128xf32> -> vector<56x128xf32>
    %177 = arith.addf %173, %176 : vector<56x128xf32>
    %c0_134 = arith.constant 0 : index
    %c448_135 = arith.constant 448 : index
    %c0_136 = arith.constant 0 : index
    %178 = vector.load %arg10[%c0_134, %c448_135, %c0_136] : memref<2x504x128xf32, #tpu.memory_space<vmem>>, vector<1x56x128xf32>
    %179 = vector.shape_cast %178 : vector<1x56x128xf32> to vector<56x128xf32>
    %180 = vector.shape_cast %177 : vector<56x128xf32> to vector<1x56x128xf32>
    tpu.vector_store %arg10[%c0_134, %c448_135, %c0_136], %180 {strides = array<i32>} : memref<2x504x128xf32, #tpu.memory_space<vmem>>, vector<1x56x128xf32>,
    %c1_137 = arith.constant 1 : index
    %c448_138 = arith.constant 448 : index
    %c0_139 = arith.constant 0 : index
    %181 = vector.load %arg10[%c1_137, %c448_138, %c0_139] : memref<2x504x128xf32, #tpu.memory_space<vmem>>, vector<1x56x128xf32>
    %182 = vector.shape_cast %181 : vector<1x56x128xf32> to vector<56x128xf32>
    %183 = vector.extract_strided_slice %0 {offsets = [1, 0, 0], sizes = [1, 56, 128], strides = [1, 1, 1]} : vector<2x56x128xbf16> to vector<1x56x128xbf16>
    %184 = vector.shape_cast %183 : vector<1x56x128xbf16> to vector<56x128xbf16>
    %cst_140 = arith.constant dense<0.000000e+00> : vector<56x128xf32>
    %185 = tpu.matmul %184, %171, %cst_140 {dimension_numbers = #tpu.dot_dimension_numbers<[1], [0], [0], [1], [0, 0, 1, 1], [], []>} : vector<56x128xbf16>, vector<128x128xbf16>, vector<56x128xf32> -> vector<56x128xf32>
    %186 = arith.addf %182, %185 : vector<56x128xf32>
    %c1_141 = arith.constant 1 : index
    %c448_142 = arith.constant 448 : index
    %c0_143 = arith.constant 0 : index
    %187 = vector.load %arg10[%c1_141, %c448_142, %c0_143] : memref<2x504x128xf32, #tpu.memory_space<vmem>>, vector<1x56x128xf32>
    %188 = vector.shape_cast %187 : vector<1x56x128xf32> to vector<56x128xf32>
    %189 = vector.shape_cast %186 : vector<56x128xf32> to vector<1x56x128xf32>
    tpu.vector_store %arg10[%c1_141, %c448_142, %c0_143], %189 {strides = array<i32>} : memref<2x504x128xf32, #tpu.memory_space<vmem>>, vector<1x56x128xf32>,
    %c1_i32 = arith.constant 1 : i32
    %190 = arith.cmpi eq, %arg1, %c1_i32 : i32
    %191 = arith.extui %190 : i1 to i32
    %c0_i32_144 = arith.constant 0 : i32
    %192 = arith.cmpi ne, %191, %c0_i32_144 : i32
    scf.if %192 {
      %c0_145 = arith.constant 0 : index
      %c0_146 = arith.constant 0 : index
      %193 = vector.load %arg5[%c0_145, %c0_146] : memref<1x128xf32, #tpu.memory_space<vmem>>, vector<1x128xf32>
      %c0_147 = arith.constant 0 : index
      %c0_148 = arith.constant 0 : index
      %194 = vector.load %arg7[%c0_147, %c0_148] : memref<1x128xf32, #tpu.memory_space<vmem>>, vector<1x128xf32>
      %c0_149 = arith.constant 0 : index
      %c0_150 = arith.constant 0 : index
      %195 = vector.load %arg6[%c0_149, %c0_150] : memref<128x128xbf16, #tpu.memory_space<vmem>>, vector<128x128xbf16>
      %c0_151 = arith.constant 0 : index
      %c0_152 = arith.constant 0 : index
      %c0_153 = arith.constant 0 : index
      %196 = vector.load %arg10[%c0_151, %c0_152, %c0_153] : memref<2x504x128xf32, #tpu.memory_space<vmem>>, vector<1x504x128xf32>
      %197 = vector.shape_cast %196 : vector<1x504x128xf32> to vector<504x128xf32>
      %198 = arith.truncf %197 : vector<504x128xf32> to vector<504x128xbf16>
      %c0_154 = arith.constant 0 : index
      %c0_155 = arith.constant 0 : index
      %199 = vector.load %arg3[%c0_154, %c0_155] : memref<256x504xbf16, #tpu.memory_space<vmem>>, vector<256x504xbf16>
      %cst_156 = arith.constant dense<0.000000e+00> : vector<256x128xf32>
      %200 = tpu.matmul %199, %198, %cst_156 {dimension_numbers = #tpu.dot_dimension_numbers<[1], [0], [0], [1], [0, 0, 1, 1], [], []>} : vector<256x504xbf16>, vector<504x128xbf16>, vector<256x128xf32> -> vector<256x128xf32>
      %201 = vector.broadcast %193 : vector<1x128xf32> to vector<256x128xf32>
      %202 = arith.addf %200, %201 : vector<256x128xf32>
      %203 = arith.truncf %202 : vector<256x128xf32> to vector<256x128xbf16>
      %cst_157 = arith.constant dense<0.000000e+00> : vector<256x128xf32>
      %204 = tpu.matmul %203, %195, %cst_157 {dimension_numbers = #tpu.dot_dimension_numbers<[1], [0], [0], [1], [0, 0, 1, 1], [], []>} : vector<256x128xbf16>, vector<128x128xbf16>, vector<256x128xf32> -> vector<256x128xf32>
      %205 = vector.broadcast %194 : vector<1x128xf32> to vector<256x128xf32>
      %206 = arith.addf %204, %205 : vector<256x128xf32>
      %207 = arith.truncf %206 : vector<256x128xf32> to vector<256x128xbf16>
      %c0_158 = arith.constant 0 : index
      %c0_159 = arith.constant 0 : index
      %c0_160 = arith.constant 0 : index
      %208 = vector.load %arg8[%c0_158, %c0_159, %c0_160] : memref<2x256x128xbf16, #tpu.memory_space<vmem>>, vector<1x256x128xbf16>
      %209 = vector.shape_cast %208 : vector<1x256x128xbf16> to vector<256x128xbf16>
      %210 = vector.shape_cast %207 : vector<256x128xbf16> to vector<1x256x128xbf16>
      tpu.vector_store %arg8[%c0_158, %c0_159, %c0_160], %210 {strides = array<i32>} : memref<2x256x128xbf16, #tpu.memory_space<vmem>>, vector<1x256x128xbf16>,
      %c1_161 = arith.constant 1 : index
      %c0_162 = arith.constant 0 : index
      %c0_163 = arith.constant 0 : index
      %211 = vector.load %arg10[%c1_161, %c0_162, %c0_163] : memref<2x504x128xf32, #tpu.memory_space<vmem>>, vector<1x504x128xf32>
      %212 = vector.shape_cast %211 : vector<1x504x128xf32> to vector<504x128xf32>
      %213 = arith.truncf %212 : vector<504x128xf32> to vector<504x128xbf16>
      %c0_164 = arith.constant 0 : index
      %c0_165 = arith.constant 0 : index
      %214 = vector.load %arg3[%c0_164, %c0_165] : memref<256x504xbf16, #tpu.memory_space<vmem>>, vector<256x504xbf16>
      %cst_166 = arith.constant dense<0.000000e+00> : vector<256x128xf32>
      %215 = tpu.matmul %214, %213, %cst_166 {dimension_numbers = #tpu.dot_dimension_numbers<[1], [0], [0], [1], [0, 0, 1, 1], [], []>} : vector<256x504xbf16>, vector<504x128xbf16>, vector<256x128xf32> -> vector<256x128xf32>
      %216 = vector.broadcast %193 : vector<1x128xf32> to vector<256x128xf32>
      %217 = arith.addf %215, %216 : vector<256x128xf32>
      %218 = arith.truncf %217 : vector<256x128xf32> to vector<256x128xbf16>
      %cst_167 = arith.constant dense<0.000000e+00> : vector<256x128xf32>
      %219 = tpu.matmul %218, %195, %cst_167 {dimension_numbers = #tpu.dot_dimension_numbers<[1], [0], [0], [1], [0, 0, 1, 1], [], []>} : vector<256x128xbf16>, vector<128x128xbf16>, vector<256x128xf32> -> vector<256x128xf32>
      %220 = vector.broadcast %194 : vector<1x128xf32> to vector<256x128xf32>
      %221 = arith.addf %219, %220 : vector<256x128xf32>
      %222 = arith.truncf %221 : vector<256x128xf32> to vector<256x128xbf16>
      %c1_168 = arith.constant 1 : index
      %c0_169 = arith.constant 0 : index
      %c0_170 = arith.constant 0 : index
      %223 = vector.load %arg8[%c1_168, %c0_169, %c0_170] : memref<2x256x128xbf16, #tpu.memory_space<vmem>>, vector<1x256x128xbf16>
      %224 = vector.shape_cast %223 : vector<1x256x128xbf16> to vector<256x128xbf16>
      %225 = vector.shape_cast %222 : vector<256x128xbf16> to vector<1x256x128xbf16>
      tpu.vector_store %arg8[%c1_168, %c0_169, %c0_170], %225 {strides = array<i32>} : memref<2x256x128xbf16, #tpu.memory_space<vmem>>, vector<1x256x128xbf16>,
    } else {
    }
    return
  }
  func.func @transform_0(%arg0: i32, %arg1: i32) -> (i32, i32, i32) {
    %c0_i32 = arith.constant 0 : i32
    %c0_i32_0 = arith.constant 0 : i32
    return %arg0, %c0_i32, %arg1 : i32, i32, i32
  }
  func.func @transform_1(%arg0: i32, %arg1: i32) -> (i32, i32) {
    %c0_i32 = arith.constant 0 : i32
    %c0_i32_0 = arith.constant 0 : i32
    %c0_i32_1 = arith.constant 0 : i32
    return %c0_i32, %c0_i32_0 : i32, i32
  }
  func.func @transform_2(%arg0: i32, %arg1: i32) -> (i32, i32, i32) {
    %c0_i32 = arith.constant 0 : i32
    %c0_i32_0 = arith.constant 0 : i32
    %c0_i32_1 = arith.constant 0 : i32
    return %c0_i32, %arg1, %c0_i32_0 : i32, i32, i32
  }
  func.func @transform_3(%arg0: i32, %arg1: i32) -> (i32, i32) {
    %c0_i32 = arith.constant 0 : i32
    %c0_i32_0 = arith.constant 0 : i32
    %c0_i32_1 = arith.constant 0 : i32
    return %c0_i32, %c0_i32_0 : i32, i32
  }
  func.func @transform_4(%arg0: i32, %arg1: i32) -> (i32, i32) {
    %c0_i32 = arith.constant 0 : i32
    %c0_i32_0 = arith.constant 0 : i32
    %c0_i32_1 = arith.constant 0 : i32
    return %c0_i32, %c0_i32_0 : i32, i32
  }
  func.func @transform_5(%arg0: i32, %arg1: i32) -> (i32, i32) {
    %c0_i32 = arith.constant 0 : i32
    %c0_i32_0 = arith.constant 0 : i32
    %c0_i32_1 = arith.constant 0 : i32
    return %c0_i32, %c0_i32_0 : i32, i32
  }
  func.func @transform_6(%arg0: i32, %arg1: i32) -> (i32, i32, i32) {
    %c0_i32 = arith.constant 0 : i32
    %c0_i32_0 = arith.constant 0 : i32
    %c0_i32_1 = arith.constant 0 : i32
    return %arg0, %c0_i32, %c0_i32_0 : i32, i32, i32
  }
  func.func @transform_7(%arg0: i32, %arg1: i32) -> (i32, i32, i32) {
    %c0_i32 = arith.constant 0 : i32
    %c0_i32_0 = arith.constant 0 : i32
    return %arg0, %c0_i32, %arg1 : i32, i32, i32
  }
}

</mosaic_0001>

<llo_original>
// kernel: tpu_custom_call.1
$region0: #{tpu_custom_call.1}
  #allocation0 [shape = 'u32[]', space=smem, size = 0x4, offset = 0x4, fixed_abs, tag = 'smem constant byte address 0x4 - core index']
  #allocation1 [shape = 'u32[72,128]{1,0:T(1,128)}', space=vmem, size = 0x9000, scoped, tag = 'internal scratch']
  #allocation2 [shape = 'f32[2,504,128]{2,1,0:T(8,128)}', space=vmem, size = 0x7e000, scoped, tag = 'scratch operand']
  #allocation10 [shape = 's32[]', space=sflag, size = 0x4, offset = 0, fixed_abs, tag = 'sflag constant byte address 0x0 - dummy sync flag']
  %s0 = inlined_call_operand.vmem [shape: bf16[2,56,256], index: 0, kind: input, shape index: {}]
  %s1 = inlined_call_operand.vmem [shape: bf16[256,504], index: 1, kind: input, shape index: {}]
  %s2 = inlined_call_operand.hbm [shape: bf16[9,256,128], index: 2, kind: input, shape index: {}]
  %s3 = inlined_call_operand.vmem [shape: f32[1,128], index: 3, kind: input, shape index: {}]
  %s4 = inlined_call_operand.vmem [shape: bf16[128,128], index: 4, kind: input, shape index: {}]
  %s5 = inlined_call_operand.vmem [shape: f32[1,128], index: 5, kind: input, shape index: {}]
  %s6 = inlined_call_operand.hbm [shape: bf16[2,256,128], index: 6, kind: output, shape index: {0}]
  %s7 = inlined_call_operand.hbm [shape: f32[2,1,256], index: 7, kind: output, shape index: {1}]
  %8 = xla_tuple %s6, %s7
  %s9 = sld [smem:[#allocation0]]
  $region118: #{tpu_custom_call.1} parent=0
    _
  %s11 = ssub.s32 1, %s9
  %s12 = scalar_select 0, %s11, %s9
  $region1: #{tpu_custom_call.1} parent=0
    #allocation3 [shape = 'u8[57344]{0}', space=vmem, size = 0xe000, scoped, tag = 'input window, operand 0']
    #allocation4 [shape = 'u8[589824]{0}', space=vmem, size = 0x90000, scoped, tag = 'input window, operand 2']
    #allocation5 [shape = 's32[2]{0}', space=sflag, size = 0x8, scoped, tag = 'scoped memory for tpu_custom_call.1']
    #allocation6 [shape = 's32[2]{0}', space=sflag, size = 0x8, scoped, tag = 'scoped memory for tpu_custom_call.1']
    #allocation7 [shape = 'u8[131072]{0}', space=vmem, size = 0x20000, scoped, tag = 'output window, operand 0, single buffered']
    #allocation8 [shape = 'u8[2048]{0}', space=vmem, size = 0x800, scoped, tag = 'output window, operand 1']
    #allocation9 [shape = 's32[2]{0}', space=sflag, size = 0x8, scoped, tag = 'scoped memory for tpu_custom_call.1']
    %13 = vsyncpa [#allocation5], 0
    %s14 = scalar_lea.sflag [#allocation5], 1
    %15 = vsyncpa %s14, 0
    %16 = vsyncpa [#allocation6], 0
    %17 = vsyncpa [#allocation9], 0
    %s18 = scalar_lea.sflag [#allocation9], 1
    %19 = vsyncpa %s18, 0
    loop: start=0, step=1, limit=4
    $region2: #{tpu_custom_call.1} parent=1 // loop_pre_header
      _
    $region3: #{tpu_custom_call.1} parent=1 // loop_header
      %s21 = sphi 0, %s25
      %p22 = scmp.ge.s32.totalorder %s21, 4
      %s28 = sphi 0, %s40
      %s29 = sphi 0, %s36
      %s30 = sphi 0, %s28
      %s31 = sphi 0, %s29
      %s32 = sphi 0, %s30
      %s33 = sphi 0, %s31
      %s45 = sphi 0, %s47
      %s48 = sphi 0, %s45
      %s49 = sphi 0, %s48
      %s65 = sphi 0, %s49
      %s69 = sphi 0, %s69
      %s71 = sphi 0, %s69
      %s72 = sphi 0, %s71
      %s86 = sphi 0, %s72
      %s92 = sphi 0, %s94
      %s95 = sphi 0, %s92
      %s96 = sphi 0, %s95
      %s112 = sphi 0, %s96
      %s116 = sphi 0, %s116
      %s118 = sphi 0, %s116
      %s119 = sphi 0, %s118
      %s133 = sphi 0, %s119
      %s137 = sphi 0, %s137
      %s139 = sphi 0, %s137
      %s140 = sphi 0, %s139
      %s154 = sphi 0, %s140
      %s158 = sphi 0, %s158
      %s160 = sphi 0, %s158
      %s161 = sphi 0, %s160
      %s175 = sphi 0, %s161
      %s181 = sphi 0, %s183
      %s184 = sphi 0, %s181
      %s185 = sphi 0, %s184
      %s201 = sphi 0, %s185
      %s209 = sphi 0, %s211
      %s212 = sphi 0, %s209
      %s213 = sphi 0, %s212
      %s229 = sphi 0, %s213
    $region4: #{tpu_custom_call.1} parent=1 // loop_header_branch
      %24 = sbr.rel (%p22) target = $region8
    $region5: #{tpu_custom_call.1} parent=1 // loop_body
      %s26 = ssub.s32 %s21, 1
      %s27 = ssub.s32 %s21, 2
      %s34 = sadd.s32 1, %s29
      %p35 = scmp.ge.s32.totalorder %s34, 2
      %s36 = scalar_select %p35, 0, %s34
      %s37 = sadd.s32 1, %s28
      %s38 = scalar_select %p35, %s37, %s28
      %p39 = scmp.ge.s32.totalorder %s38, 1
      %s40 = scalar_select %p39, 0, %s38
      %s41 = ssub.s32 %s28, %s40
      %s42 = ssub.s32 %s29, %s36
      %s43 = sor.u32 %s41, %s42
      %p44 = scmp.eq.s32.totalorder %s43, 0
      %s46 = sadd.s32 %s45, 1
      %s47 = scalar_select %p44, %s45, %s46
      %p50 = pneg %p44
      %p51 = scmp.eq.s32.totalorder %s21, 1
      %p52 = por %p50, %p51
      %p53 = scmp.ne.s32.totalorder %s45, %s48
      %p54 = scmp.eq.s32.totalorder %s21, 0
      %p55 = por %p53, %p54
      %p56 = scmp.ne.s32.totalorder %s45, %s48
      %p57 = scmp.eq.s32.totalorder %s26, 1
      %p58 = por %p56, %p57
      %p59 = scmp.ne.s32.totalorder %s48, %s49
      %p60 = scmp.eq.s32.totalorder %s26, 0
      %p61 = por %p59, %p60
      %p62 = scmp.ne.s32.totalorder %s48, %s49
      %p63 = scmp.eq.s32.totalorder %s27, 1
      %p64 = por %p62, %p63
      %p66 = scmp.ne.s32.totalorder %s49, %s65
      %p67 = scmp.eq.s32.totalorder %s27, 0
      %p68 = por %p66, %p67
      %s70 = sadd.s32 %s69, 1
      %p73 = scmp.eq.s32.totalorder %s21, 1
      %p74 = scmp.ne.s32.totalorder %s69, %s71
      %p75 = scmp.eq.s32.totalorder %s21, 0
      %p76 = por %p74, %p75
      %p77 = scmp.ne.s32.totalorder %s69, %s71
      %p78 = scmp.eq.s32.totalorder %s26, 1
      %p79 = por %p77, %p78
      %p80 = scmp.ne.s32.totalorder %s71, %s72
      %p81 = scmp.eq.s32.totalorder %s26, 0
      %p82 = por %p80, %p81
      %p83 = scmp.ne.s32.totalorder %s71, %s72
      %p84 = scmp.eq.s32.totalorder %s27, 1
      %p85 = por %p83, %p84
      %p87 = scmp.ne.s32.totalorder %s72, %s86
      %p88 = scmp.eq.s32.totalorder %s27, 0
      %p89 = por %p87, %p88
      %s90 = ssub.s32 %s29, %s36
      %p91 = scmp.eq.s32.totalorder %s90, 0
      %s93 = sadd.s32 %s92, 1
      %s94 = scalar_select %p91, %s92, %s93
      %p97 = pneg %p91
      %p98 = scmp.eq.s32.totalorder %s21, 1
      %p99 = por %p97, %p98
      %p100 = scmp.ne.s32.totalorder %s92, %s95
      %p101 = scmp.eq.s32.totalorder %s21, 0
      %p102 = por %p100, %p101
      %p103 = scmp.ne.s32.totalorder %s92, %s95
      %p104 = scmp.eq.s32.totalorder %s26, 1
      %p105 = por %p103, %p104
      %p106 = scmp.ne.s32.totalorder %s95, %s96
      %p107 = scmp.eq.s32.totalorder %s26, 0
      %p108 = por %p106, %p107
      %p109 = scmp.ne.s32.totalorder %s95, %s96
      %p110 = scmp.eq.s32.totalorder %s27, 1
      %p111 = por %p109, %p110
      %p113 = scmp.ne.s32.totalorder %s96, %s112
      %p114 = scmp.eq.s32.totalorder %s27, 0
      %p115 = por %p113, %p114
      %s117 = sadd.s32 %s116, 1
      %p120 = scmp.eq.s32.totalorder %s21, 1
      %p121 = scmp.ne.s32.totalorder %s116, %s118
      %p122 = scmp.eq.s32.totalorder %s21, 0
      %p123 = por %p121, %p122
      %p124 = scmp.ne.s32.totalorder %s116, %s118
      %p125 = scmp.eq.s32.totalorder %s26, 1
      %p126 = por %p124, %p125
      %p127 = scmp.ne.s32.totalorder %s118, %s119
      %p128 = scmp.eq.s32.totalorder %s26, 0
      %p129 = por %p127, %p128
      %p130 = scmp.ne.s32.totalorder %s118, %s119
      %p131 = scmp.eq.s32.totalorder %s27, 1
      %p132 = por %p130, %p131
      %p134 = scmp.ne.s32.totalorder %s119, %s133
      %p135 = scmp.eq.s32.totalorder %s27, 0
      %p136 = por %p134, %p135
      %s138 = sadd.s32 %s137, 1
      %p141 = scmp.eq.s32.totalorder %s21, 1
      %p142 = scmp.ne.s32.totalorder %s137, %s139
      %p143 = scmp.eq.s32.totalorder %s21, 0
      %p144 = por %p142, %p143
      %p145 = scmp.ne.s32.totalorder %s137, %s139
      %p146 = scmp.eq.s32.totalorder %s26, 1
      %p147 = por %p145, %p146
      %p148 = scmp.ne.s32.totalorder %s139, %s140
      %p149 = scmp.eq.s32.totalorder %s26, 0
      %p150 = por %p148, %p149
      %p151 = scmp.ne.s32.totalorder %s139, %s140
      %p152 = scmp.eq.s32.totalorder %s27, 1
      %p153 = por %p151, %p152
      %p155 = scmp.ne.s32.totalorder %s140, %s154
      %p156 = scmp.eq.s32.totalorder %s27, 0
      %p157 = por %p155, %p156
      %s159 = sadd.s32 %s158, 1
      %p162 = scmp.eq.s32.totalorder %s21, 1
      %p163 = scmp.ne.s32.totalorder %s158, %s160
      %p164 = scmp.eq.s32.totalorder %s21, 0
      %p165 = por %p163, %p164
      %p166 = scmp.ne.s32.totalorder %s158, %s160
      %p167 = scmp.eq.s32.totalorder %s26, 1
      %p168 = por %p166, %p167
      %p169 = scmp.ne.s32.totalorder %s160, %s161
      %p170 = scmp.eq.s32.totalorder %s26, 0
      %p171 = por %p169, %p170
      %p172 = scmp.ne.s32.totalorder %s160, %s161
      %p173 = scmp.eq.s32.totalorder %s27, 1
      %p174 = por %p172, %p173
      %p176 = scmp.ne.s32.totalorder %s161, %s175
      %p177 = scmp.eq.s32.totalorder %s27, 0
      %p178 = por %p176, %p177
      %s179 = ssub.s32 %s28, %s40
      %p180 = scmp.eq.s32.totalorder %s179, 0
      %s182 = sadd.s32 %s181, 1
      %s183 = scalar_select %p180, %s181, %s182
      %p186 = pneg %p180
      %p187 = scmp.eq.s32.totalorder %s21, 1
      %p188 = por %p186, %p187
      %p189 = scmp.ne.s32.totalorder %s181, %s184
      %p190 = scmp.eq.s32.totalorder %s21, 0
      %p191 = por %p189, %p190
      %p192 = scmp.ne.s32.totalorder %s181, %s184
      %p193 = scmp.eq.s32.totalorder %s26, 1
      %p194 = por %p192, %p193
      %p195 = scmp.ne.s32.totalorder %s184, %s185
      %p196 = scmp.eq.s32.totalorder %s26, 0
      %p197 = por %p195, %p196
      %p198 = scmp.ne.s32.totalorder %s184, %s185
      %p199 = scmp.eq.s32.totalorder %s27, 1
      %p200 = por %p198, %p199
      %p202 = scmp.ne.s32.totalorder %s185, %s201
      %p203 = scmp.eq.s32.totalorder %s27, 0
      %p204 = por %p202, %p203
      %s205 = ssub.s32 %s28, %s40
      %s206 = ssub.s32 %s29, %s36
      %s207 = sor.u32 %s205, %s206
      %p208 = scmp.eq.s32.totalorder %s207, 0
      %s210 = sadd.s32 %s209, 1
      %s211 = scalar_select %p208, %s209, %s210
      %p214 = pneg %p208
      %p215 = scmp.eq.s32.totalorder %s21, 1
      %p216 = por %p214, %p215
      %p217 = scmp.ne.s32.totalorder %s209, %s212
      %p218 = scmp.eq.s32.totalorder %s21, 0
      %p219 = por %p217, %p218
      %p220 = scmp.ne.s32.totalorder %s209, %s212
      %p221 = scmp.eq.s32.totalorder %s26, 1
      %p222 = por %p220, %p221
      %p223 = scmp.ne.s32.totalorder %s212, %s213
      %p224 = scmp.eq.s32.totalorder %s26, 0
      %p225 = por %p223, %p224
      %p226 = scmp.ne.s32.totalorder %s212, %s213
      %p227 = scmp.eq.s32.totalorder %s27, 1
      %p228 = por %p226, %p227
      %p230 = scmp.ne.s32.totalorder %s213, %s229
      %p231 = scmp.eq.s32.totalorder %s27, 0
      %p232 = por %p230, %p231
      %p233 = scmp.le.s32.totalorder 1, %s21
      %p234 = scmp.lt.s32.totalorder %s21, 3
      %p235 = pnand %p233, %p234
      %p236 = pneg %p235
      // Predicated region
      $region9: #{tpu_custom_call.1} parent=5 // pred_check
        _
      $region10: #{tpu_custom_call.1} parent=5 // pred_check_branch
        %238 = sbr.rel (%p235) target = $region12
      $region11: #{tpu_custom_call.1} parent=5 // pred_region
        %s239 = ssub.s32 %s21, 1
        // Predicated region
        $region13: #{tpu_custom_call.1} parent=11 // pred_check
          %p240 = pneg %p82
        $region14: #{tpu_custom_call.1} parent=11 // pred_check_branch
          %242 = sbr.rel (%p240) target = $region16
        $region15: #{tpu_custom_call.1} parent=11 // pred_region
          _
        $region16: #{tpu_custom_call.1} parent=11 // pred_fallthru
          _
        // Predicated region
        $region17: #{tpu_custom_call.1} parent=11 // pred_check
          %p243 = pneg %p129
        $region18: #{tpu_custom_call.1} parent=11 // pred_check_branch
          %245 = sbr.rel (%p243) target = $region20
        $region19: #{tpu_custom_call.1} parent=11 // pred_region
          _
        $region20: #{tpu_custom_call.1} parent=11 // pred_fallthru
          _
        // Predicated region
        $region21: #{tpu_custom_call.1} parent=11 // pred_check
          %p246 = pneg %p150
        $region22: #{tpu_custom_call.1} parent=11 // pred_check_branch
          %248 = sbr.rel (%p246) target = $region24
        $region23: #{tpu_custom_call.1} parent=11 // pred_region
          _
        $region24: #{tpu_custom_call.1} parent=11 // pred_fallthru
          _
        // Predicated region
        $region25: #{tpu_custom_call.1} parent=11 // pred_check
          %p249 = pneg %p171
        $region26: #{tpu_custom_call.1} parent=11 // pred_check_branch
          %251 = sbr.rel (%p249) target = $region28
        $region27: #{tpu_custom_call.1} parent=11 // pred_region
          _
        $region28: #{tpu_custom_call.1} parent=11 // pred_fallthru
          _
      $region12: #{tpu_custom_call.1} parent=5 // pred_fallthru
        _
      %p252 = scmp.lt.s32.totalorder %s21, 2
      // Predicated region
      $region29: #{tpu_custom_call.1} parent=5 // pred_check
        %p253 = pneg %p252
      $region30: #{tpu_custom_call.1} parent=5 // pred_check_branch
        %255 = sbr.rel (%p253) target = $region32
      $region31: #{tpu_custom_call.1} parent=5 // pred_region
        // Predicated region
        $region33: #{tpu_custom_call.1} parent=31 // pred_check
          %p256 = pneg %p55
        $region34: #{tpu_custom_call.1} parent=31 // pred_check_branch
          %258 = sbr.rel (%p256) target = $region36
        $region35: #{tpu_custom_call.1} parent=31 // pred_region
          %s259 = sand.u32 %s45, 1
          %s260 = sand.u32 %s45, 1
          %s261 = smul.addr %s260, 56
          %s262 = scalar_lea.vmem [#allocation3], %s261
          %s263 = smul.u32 2, %s28
          %s264 = smul.addr %s263, 14
          %s265 = sadd.s32 %s29, %s264
          %s266 = smul.addr %s265, 4
          %s267 = scalar_lea.vmem %s0, %s266
          // Predicated region
          $region37: #{tpu_custom_call.1} parent=35 // pred_check
            _
          $region38: #{tpu_custom_call.1} parent=35 // pred_check_branch
            %269 = sbr.rel (0) target = $region40
          $region39: #{tpu_custom_call.1} parent=35 // pred_region
            // Predicated region
            $region41: #{tpu_custom_call.1} parent=39 // pred_check
              _
            $region42: #{tpu_custom_call.1} parent=39 // pred_check_branch
              %271 = sbr.rel target = $region44
            $region43: #{tpu_custom_call.1} parent=39 // pred_region
              // Predicated region
              $region56: #{tpu_custom_call.1} parent=43 // pred_check
                _
              $region57: #{tpu_custom_call.1} parent=43 // pred_check_branch
                %313 = sbr.rel (0) target = $region59
              $region58: #{tpu_custom_call.1} parent=43 // pred_region
                loop: start=0, step=1, limit=1
                $region60: #{tpu_custom_call.1} parent=58 // loop_pre_header
                  _
                $region61: #{tpu_custom_call.1} parent=58 // loop_header
                  %s315 = sphi 0, %s319
                  %p316 = scmp.ge.s32.totalorder %s315, 1
                  %s320 = sphi %s267, %s267
                  %s321 = sphi %s262, %s262
                $region62: #{tpu_custom_call.1} parent=58 // loop_header_branch
                  %318 = sbr.rel (%p316) target = $region66
                $region63: #{tpu_custom_call.1} parent=58 // loop_body
                  _
                $region64: #{tpu_custom_call.1} parent=58 // loop_footer
                  %s319 = sadd.s32 1, %s315
                $region65: #{tpu_custom_call.1} parent=58 // loop_footer_branch
                  %314 = sbr.rel target = $region61
                $region66: #{tpu_custom_call.1} parent=58 // loop_exit
                  _
                %s323 = ssub.s32 16, 1
                loop: start=0, step=1, limit=1
                $region67: #{tpu_custom_call.1} parent=58 // loop_pre_header
                  _
                $region68: #{tpu_custom_call.1} parent=58 // loop_header
                  %s325 = sphi 0, %s329
                  %p326 = scmp.ge.s32.totalorder %s325, 1
                  %s330 = sphi %s267, %s267
                  %s331 = sphi %s262, %s262
                $region69: #{tpu_custom_call.1} parent=58 // loop_header_branch
                  %328 = sbr.rel (%p326) target = $region73
                $region70: #{tpu_custom_call.1} parent=58 // loop_body
                  %v332 = vld [vmem:[%s330] sm:%s323]
                  %333 = vst [vmem:[%s331] sm:%s323] %v332
                  %v334 = vld [vmem:[%s330 + $0x8] sm:%s323]
                  %335 = vst [vmem:[%s331 + $0x4] sm:%s323] %v334
                  %v336 = vld [vmem:[%s330 + $0x10] sm:%s323]
                  %337 = vst [vmem:[%s331 + $0x8] sm:%s323] %v336
                  %v338 = vld [vmem:[%s330 + $0x18] sm:%s323]
                  %339 = vst [vmem:[%s331 + $0xc] sm:%s323] %v338
                  %v340 = vld [vmem:[%s330 + $0x20] sm:%s323]
                  %341 = vst [vmem:[%s331 + $0x10] sm:%s323] %v340
                  %v342 = vld [vmem:[%s330 + $0x28] sm:%s323]
                  %343 = vst [vmem:[%s331 + $0x14] sm:%s323] %v342
                  %v344 = vld [vmem:[%s330 + $0x30] sm:%s323]
                  %345 = vst [vmem:[%s331 + $0x18] sm:%s323] %v344
                  %v346 = vld [vmem:[%s330 + $0x38] sm:%s323]
                  %347 = vst [vmem:[%s331 + $0x1c] sm:%s323] %v346
                  %v348 = vld [vmem:[%s330 + $0x40] sm:%s323]
                  %349 = vst [vmem:[%s331 + $0x20] sm:%s323] %v348
                  %v350 = vld [vmem:[%s330 + $0x48] sm:%s323]
                  %351 = vst [vmem:[%s331 + $0x24] sm:%s323] %v350
                  %v352 = vld [vmem:[%s330 + $0x50] sm:%s323]
                  %353 = vst [vmem:[%s331 + $0x28] sm:%s323] %v352
                  %v354 = vld [vmem:[%s330 + $0x58] sm:%s323]
                  %355 = vst [vmem:[%s331 + $0x2c] sm:%s323] %v354
                  %v356 = vld [vmem:[%s330 + $0x60] sm:%s323]
                  %357 = vst [vmem:[%s331 + $0x30] sm:%s323] %v356
                  %v358 = vld [vmem:[%s330 + $0x68] sm:%s323]
                  %359 = vst [vmem:[%s331 + $0x34] sm:%s323] %v358
                $region71: #{tpu_custom_call.1} parent=58 // loop_footer
                  %s329 = sadd.s32 1, %s325
                $region72: #{tpu_custom_call.1} parent=58 // loop_footer_branch
                  %324 = sbr.rel target = $region68
                $region73: #{tpu_custom_call.1} parent=58 // loop_exit
                  _
              $region59: #{tpu_custom_call.1} parent=43 // pred_fallthru
                _
            $region44: #{tpu_custom_call.1} parent=39 // pred_fallthru
              _
            // Predicated region
            $region45: #{tpu_custom_call.1} parent=39 // pred_check
              _
            $region46: #{tpu_custom_call.1} parent=39 // pred_check_branch
              %273 = sbr.rel (0) target = $region48
            $region47: #{tpu_custom_call.1} parent=39 // pred_region
              %s275 = ssub.s32 16, 1
              loop: start=0, step=1, limit=1
              $region49: #{tpu_custom_call.1} parent=47 // loop_pre_header
                _
              $region50: #{tpu_custom_call.1} parent=47 // loop_header
                %s277 = sphi 0, %s281
                %p278 = scmp.ge.s32.totalorder %s277, 1
                %s282 = sphi %s267, %s267
                %s283 = sphi %s262, %s262
              $region51: #{tpu_custom_call.1} parent=47 // loop_header_branch
                %280 = sbr.rel (%p278) target = $region55
              $region52: #{tpu_custom_call.1} parent=47 // loop_body
                %v284 = vld [vmem:[%s282] sm:%s275]
                %285 = vst [vmem:[%s283] sm:%s275] %v284
                %v286 = vld [vmem:[%s282 + $0x8] sm:%s275]
                %287 = vst [vmem:[%s283 + $0x4] sm:%s275] %v286
                %v288 = vld [vmem:[%s282 + $0x10] sm:%s275]
                %289 = vst [vmem:[%s283 + $0x8] sm:%s275] %v288
                %v290 = vld [vmem:[%s282 + $0x18] sm:%s275]
                %291 = vst [vmem:[%s283 + $0xc] sm:%s275] %v290
                %v292 = vld [vmem:[%s282 + $0x20] sm:%s275]
                %293 = vst [vmem:[%s283 + $0x10] sm:%s275] %v292
                %v294 = vld [vmem:[%s282 + $0x28] sm:%s275]
                %295 = vst [vmem:[%s283 + $0x14] sm:%s275] %v294
                %v296 = vld [vmem:[%s282 + $0x30] sm:%s275]
                %297 = vst [vmem:[%s283 + $0x18] sm:%s275] %v296
                %v298 = vld [vmem:[%s282 + $0x38] sm:%s275]
                %299 = vst [vmem:[%s283 + $0x1c] sm:%s275] %v298
                %v300 = vld [vmem:[%s282 + $0x40] sm:%s275]
                %301 = vst [vmem:[%s283 + $0x20] sm:%s275] %v300
                %v302 = vld [vmem:[%s282 + $0x48] sm:%s275]
                %303 = vst [vmem:[%s283 + $0x24] sm:%s275] %v302
                %v304 = vld [vmem:[%s282 + $0x50] sm:%s275]
                %305 = vst [vmem:[%s283 + $0x28] sm:%s275] %v304
                %v306 = vld [vmem:[%s282 + $0x58] sm:%s275]
                %307 = vst [vmem:[%s283 + $0x2c] sm:%s275] %v306
                %v308 = vld [vmem:[%s282 + $0x60] sm:%s275]
                %309 = vst [vmem:[%s283 + $0x30] sm:%s275] %v308
                %v310 = vld [vmem:[%s282 + $0x68] sm:%s275]
                %311 = vst [vmem:[%s283 + $0x34] sm:%s275] %v310
              $region53: #{tpu_custom_call.1} parent=47 // loop_footer
                %s281 = sadd.s32 1, %s277
              $region54: #{tpu_custom_call.1} parent=47 // loop_footer_branch
                %276 = sbr.rel target = $region50
              $region55: #{tpu_custom_call.1} parent=47 // loop_exit
                _
            $region48: #{tpu_custom_call.1} parent=39 // pred_fallthru
              _
          $region40: #{tpu_custom_call.1} parent=35 // pred_fallthru
            _
          %360 = vnop
        $region36: #{tpu_custom_call.1} parent=31 // pred_fallthru
          _
        // Predicated region
        $region74: #{tpu_custom_call.1} parent=31 // pred_check
          %p361 = pneg %p102
        $region75: #{tpu_custom_call.1} parent=31 // pred_check_branch
          %363 = sbr.rel (%p361) target = $region77
        $region76: #{tpu_custom_call.1} parent=31 // pred_region
          #allocation11 [shape = 'u32[6]{0}', space=smem, size = 0x18, scoped, tag = 'DMA stride descriptor']
          %s364 = sand.u32 %s92, 1
          %s365 = scalar_lea.sflag [#allocation5], %s364
          %s366 = sand.u32 %s92, 1
          %s367 = smul.addr %s366, 576
          %s368 = scalar_lea.vmem [#allocation4], %s367
          %s369 = smul.u32 16, %s29
          %371 = vsyncadd %s365, 0
          %s372 = smul.addr %s369, 4
          %s373 = scalar_lea.hbm %s2, %s372
          %s375 = sshll.u32 1, 14
          %s376 = sxor.u32 4294967295, %s375
          %s378 = sld [smem:[#allocation0]]
          %s379 = sadd.s32 2, %s378
          %s381 = sshll.u32 7, 26
          %s382 = sxor.u32 4294967295, %s381
          %s383 = sand.u32 0, %s382
          %s384 = sshll.u32 %s379, 26
          %s385 = sor.u32 %s383, %s384
          %s386 = sshll.u32 %s373, 4
          %s387 = int_to_ptr.hbm [resolvable:$true] %s386
          %s388 = sshll.u32 %s368, 4
          %s389 = int_to_ptr.vmem [resolvable:$true] %s388
          %395 = sst [smem:[#allocation11]] 2048
          %s396 = scalar_lea.smem [#allocation11], 1
          %397 = sst [smem:[%s396]] 1024
          %s398 = scalar_lea.smem [#allocation11], 2
          %399 = sst [smem:[%s398]] 16
          %s400 = scalar_lea.smem [#allocation11], 3
          %401 = sst [smem:[%s400]] 64
          %s402 = scalar_lea.smem [#allocation11], 4
          %403 = sst [smem:[%s402]] 64
          %s404 = scalar_lea.smem [#allocation11], 5
          %405 = sst [smem:[%s404]] 4
          %407 = dma.general %s387, 9216, %s389, %s365, [#allocation10], [#allocation11], %s385, 0
        $region77: #{tpu_custom_call.1} parent=31 // pred_fallthru
          _
      $region32: #{tpu_custom_call.1} parent=5 // pred_fallthru
        _
      %p408 = scmp.le.s32.totalorder 1, %s21
      %p409 = scmp.lt.s32.totalorder %s21, 3
      %p410 = pnand %p408, %p409
      %p411 = pneg %p410
      // Predicated region
      $region78: #{tpu_custom_call.1} parent=5 // pred_check
        _
      $region79: #{tpu_custom_call.1} parent=5 // pred_check_branch
        %413 = sbr.rel (%p410) target = $region81
      $region80: #{tpu_custom_call.1} parent=5 // pred_region
        %s414 = ssub.s32 %s21, 1
        %s415 = sand.u32 %s48, 1
        %s416 = sand.u32 %s48, 1
        %s417 = smul.addr %s416, 56
        %s418 = scalar_lea.vmem [#allocation3], %s417
        // Predicated region
        $region82: #{tpu_custom_call.1} parent=80 // pred_check
          %p419 = pneg %p61
        $region83: #{tpu_custom_call.1} parent=80 // pred_check_branch
          %421 = sbr.rel (%p419) target = $region85
        $region84: #{tpu_custom_call.1} parent=80 // pred_region
          _
        $region85: #{tpu_custom_call.1} parent=80 // pred_fallthru
          _
        %s422 = sand.u32 %s95, 1
        %s423 = scalar_lea.sflag [#allocation5], %s422
        %s424 = sand.u32 %s95, 1
        %s425 = smul.addr %s424, 576
        %s426 = scalar_lea.vmem [#allocation4], %s425
        // Predicated region
        $region86: #{tpu_custom_call.1} parent=80 // pred_check
          %p427 = pneg %p108
        $region87: #{tpu_custom_call.1} parent=80 // pred_check_branch
          %429 = sbr.rel (%p427) target = $region89
        $region88: #{tpu_custom_call.1} parent=80 // pred_region
          %431 = dma.done %s423, 9216
        $region89: #{tpu_custom_call.1} parent=80 // pred_fallthru
          _
        %s432 = sand.u32 %s48, 1
        %s433 = sand.u32 %s48, 1
        %s434 = smul.addr %s433, 56
        %s435 = scalar_lea.vmem [#allocation3], %s434
        %p436 = pneg %p61
        %p437 = pneg %p58
        %p438 = pneg %p82
        %p439 = pneg %p79
        %s440 = sand.u32 %s95, 1
        %s441 = scalar_lea.sflag [#allocation5], %s440
        %s442 = sand.u32 %s95, 1
        %s443 = smul.addr %s442, 576
        %s444 = scalar_lea.vmem [#allocation4], %s443
        %p445 = pneg %p108
        %p446 = pneg %p105
        %p447 = pneg %p129
        %p448 = pneg %p126
        %p449 = pneg %p150
        %p450 = pneg %p147
        %p451 = pneg %p171
        %p452 = pneg %p168
        %p453 = pneg %p197
        %p454 = pneg %p194
        %p455 = pneg %p225
        %p456 = pneg %p222
        %s457 = sand.u32 %s212, 1
        %s458 = scalar_lea.sflag [#allocation9], %s457
        %s459 = sand.u32 %s212, 1
        %s460 = smul.addr %s459, 2
        %s461 = scalar_lea.vmem [#allocation8], %s460
        %s462 = smul.u32 2, %s30
        %s463 = smul.u32 16, %s31
        %s464 = smul.u32 2, %s30
        %s465 = smul.u32 2, %s30
        %v466 = vld [vmem:[%s418] sm:$0xf]
        %v467 = vld [vmem:[%s418 + $0x4] sm:$0xf]
        %v468 = vld [vmem:[%s418 + $0x8] sm:$0xf]
        %v469 = vld [vmem:[%s418 + $0xc] sm:$0xf]
        %v470 = vld [vmem:[%s418 + $0x10] sm:$0xf]
        %v471 = vld [vmem:[%s418 + $0x14] sm:$0xf]
        %v472 = vld [vmem:[%s418 + $0x18] sm:$0xf]
        %v473 = vld [vmem:[%s418 + $0x1c] sm:$0xf]
        %v474 = vld [vmem:[%s418 + $0x20] sm:$0xf]
        %v475 = vld [vmem:[%s418 + $0x24] sm:$0xf]
        %v476 = vld [vmem:[%s418 + $0x28] sm:$0xf]
        %v477 = vld [vmem:[%s418 + $0x2c] sm:$0xf]
        %v478 = vld [vmem:[%s418 + $0x30] sm:$0xf]
        %v479 = vld [vmem:[%s418 + $0x34] sm:$0xf]
        %v480 = vunpack.c.l.bf16 %v466
        %v481 = vunpack.c.l.bf16 %v467
        %v482 = vunpack.c.l.bf16 %v468
        %v483 = vunpack.c.l.bf16 %v469
        %v484 = vunpack.c.l.bf16 %v470
        %v485 = vunpack.c.l.bf16 %v471
        %v486 = vunpack.c.l.bf16 %v472
        %v487 = vunpack.c.l.bf16 %v473
        %v488 = vunpack.c.l.bf16 %v474
        %v489 = vunpack.c.l.bf16 %v475
        %v490 = vunpack.c.l.bf16 %v476
        %v491 = vunpack.c.l.bf16 %v477
        %v492 = vunpack.c.l.bf16 %v478
        %v493 = vunpack.c.l.bf16 %v479
        %v494 = vadd.f32 %v480, %v481
        %v495 = vadd.f32 %v494, %v482
        %v496 = vadd.f32 %v495, %v483
        %v497 = vadd.f32 %v496, %v484
        %v498 = vadd.f32 %v497, %v485
        %v499 = vadd.f32 %v498, %v486
        %v500 = vrot.slane %v499, 4
        %v501 = vadd.f32 %v499, %v500
        %v502 = vrot.slane %v501, 2
        %v503 = vadd.f32 %v501, %v502
        %v504 = vrot.slane %v503, 1
        %v505 = vadd.f32 %v503, %v504
        %v506 = vadd.f32 %v487, %v488
        %v507 = vadd.f32 %v506, %v489
        %v508 = vadd.f32 %v507, %v490
        %v509 = vadd.f32 %v508, %v491
        %v510 = vadd.f32 %v509, %v492
        %v511 = vadd.f32 %v510, %v493
        %v512 = vrot.slane %v511, 4
        %v513 = vadd.f32 %v511, %v512
        %v514 = vrot.slane %v513, 2
        %v515 = vadd.f32 %v513, %v514
        %v516 = vrot.slane %v515, 1
        %v517 = vadd.f32 %v515, %v516
        %v518 = vmul.f32 %v505, 0.020408163
        %v519 = vmul.f32 %v517, 0.020408163
        %520 = vst [vmem:[%s461] sm:$0x1] %v518
        %521 = vst [vmem:[%s461 + $0x1] sm:$0x1] %v519
        %p522 = scmp.eq.s32.totalorder %s31, 0
        // Predicated region
        $region90: #{tpu_custom_call.1} parent=80 // pred_check
          %p523 = pneg %p522
        $region91: #{tpu_custom_call.1} parent=80 // pred_check_branch
          %525 = sbr.rel (%p523) target = $region93
        $region92: #{tpu_custom_call.1} parent=80 // pred_region
          %526 = vst [vmem:[#allocation2] sm:$0xff] 0.0
          %527 = vst [vmem:[#allocation2 + $0x8] sm:$0xff] 0.0
          %528 = vst [vmem:[#allocation2 + $0x10] sm:$0xff] 0.0
          %529 = vst [vmem:[#allocation2 + $0x18] sm:$0xff] 0.0
          %530 = vst [vmem:[#allocation2 + $0x20] sm:$0xff] 0.0
          %531 = vst [vmem:[#allocation2 + $0x28] sm:$0xff] 0.0
          %532 = vst [vmem:[#allocation2 + $0x30] sm:$0xff] 0.0
          %533 = vst [vmem:[#allocation2 + $0x38] sm:$0xff] 0.0
          %534 = vst [vmem:[#allocation2 + $0x40] sm:$0xff] 0.0
          %535 = vst [vmem:[#allocation2 + $0x48] sm:$0xff] 0.0
          %536 = vst [vmem:[#allocation2 + $0x50] sm:$0xff] 0.0
          %537 = vst [vmem:[#allocation2 + $0x58] sm:$0xff] 0.0
          %538 = vst [vmem:[#allocation2 + $0x60] sm:$0xff] 0.0
          %539 = vst [vmem:[#allocation2 + $0x68] sm:$0xff] 0.0
          %540 = vst [vmem:[#allocation2 + $0x70] sm:$0xff] 0.0
          %541 = vst [vmem:[#allocation2 + $0x78] sm:$0xff] 0.0
          %542 = vst [vmem:[#allocation2 + $0x80] sm:$0xff] 0.0
          %543 = vst [vmem:[#allocation2 + $0x88] sm:$0xff] 0.0
          %544 = vst [vmem:[#allocation2 + $0x90] sm:$0xff] 0.0
          %545 = vst [vmem:[#allocation2 + $0x98] sm:$0xff] 0.0
          %546 = vst [vmem:[#allocation2 + $0xa0] sm:$0xff] 0.0
          %547 = vst [vmem:[#allocation2 + $0xa8] sm:$0xff] 0.0
          %548 = vst [vmem:[#allocation2 + $0xb0] sm:$0xff] 0.0
          %549 = vst [vmem:[#allocation2 + $0xb8] sm:$0xff] 0.0
          %550 = vst [vmem:[#allocation2 + $0xc0] sm:$0xff] 0.0
          %551 = vst [vmem:[#allocation2 + $0xc8] sm:$0xff] 0.0
          %552 = vst [vmem:[#allocation2 + $0xd0] sm:$0xff] 0.0
          %553 = vst [vmem:[#allocation2 + $0xd8] sm:$0xff] 0.0
          %554 = vst [vmem:[#allocation2 + $0xe0] sm:$0xff] 0.0
          %555 = vst [vmem:[#allocation2 + $0xe8] sm:$0xff] 0.0
          %556 = vst [vmem:[#allocation2 + $0xf0] sm:$0xff] 0.0
          %557 = vst [vmem:[#allocation2 + $0xf8] sm:$0xff] 0.0
          %558 = vst [vmem:[#allocation2 + $0x100] sm:$0xff] 0.0
          %559 = vst [vmem:[#allocation2 + $0x108] sm:$0xff] 0.0
          %560 = vst [vmem:[#allocation2 + $0x110] sm:$0xff] 0.0
          %561 = vst [vmem:[#allocation2 + $0x118] sm:$0xff] 0.0
          %562 = vst [vmem:[#allocation2 + $0x120] sm:$0xff] 0.0
          %563 = vst [vmem:[#allocation2 + $0x128] sm:$0xff] 0.0
          %564 = vst [vmem:[#allocation2 + $0x130] sm:$0xff] 0.0
          %565 = vst [vmem:[#allocation2 + $0x138] sm:$0xff] 0.0
          %566 = vst [vmem:[#allocation2 + $0x140] sm:$0xff] 0.0
          %567 = vst [vmem:[#allocation2 + $0x148] sm:$0xff] 0.0
          %568 = vst [vmem:[#allocation2 + $0x150] sm:$0xff] 0.0
          %569 = vst [vmem:[#allocation2 + $0x158] sm:$0xff] 0.0
          %570 = vst [vmem:[#allocation2 + $0x160] sm:$0xff] 0.0
          %571 = vst [vmem:[#allocation2 + $0x168] sm:$0xff] 0.0
          %572 = vst [vmem:[#allocation2 + $0x170] sm:$0xff] 0.0
          %573 = vst [vmem:[#allocation2 + $0x178] sm:$0xff] 0.0
          %574 = vst [vmem:[#allocation2 + $0x180] sm:$0xff] 0.0
          %575 = vst [vmem:[#allocation2 + $0x188] sm:$0xff] 0.0
          %576 = vst [vmem:[#allocation2 + $0x190] sm:$0xff] 0.0
          %577 = vst [vmem:[#allocation2 + $0x198] sm:$0xff] 0.0
          %578 = vst [vmem:[#allocation2 + $0x1a0] sm:$0xff] 0.0
          %579 = vst [vmem:[#allocation2 + $0x1a8] sm:$0xff] 0.0
          %580 = vst [vmem:[#allocation2 + $0x1b0] sm:$0xff] 0.0
          %581 = vst [vmem:[#allocation2 + $0x1b8] sm:$0xff] 0.0
          %582 = vst [vmem:[#allocation2 + $0x1c0] sm:$0xff] 0.0
          %583 = vst [vmem:[#allocation2 + $0x1c8] sm:$0xff] 0.0
          %584 = vst [vmem:[#allocation2 + $0x1d0] sm:$0xff] 0.0
          %585 = vst [vmem:[#allocation2 + $0x1d8] sm:$0xff] 0.0
          %586 = vst [vmem:[#allocation2 + $0x1e0] sm:$0xff] 0.0
          %587 = vst [vmem:[#allocation2 + $0x1e8] sm:$0xff] 0.0
          %588 = vst [vmem:[#allocation2 + $0x1f0] sm:$0xff] 0.0
          %589 = vst [vmem:[#allocation2 + $0x1f8] sm:$0xff] 0.0
          %590 = vst [vmem:[#allocation2 + $0x200] sm:$0xff] 0.0
          %591 = vst [vmem:[#allocation2 + $0x208] sm:$0xff] 0.0
          %592 = vst [vmem:[#allocation2 + $0x210] sm:$0xff] 0.0
          %593 = vst [vmem:[#allocation2 + $0x218] sm:$0xff] 0.0
          %594 = vst [vmem:[#allocation2 + $0x220] sm:$0xff] 0.0
          %595 = vst [vmem:[#allocation2 + $0x228] sm:$0xff] 0.0
          %596 = vst [vmem:[#allocation2 + $0x230] sm:$0xff] 0.0
          %597 = vst [vmem:[#allocation2 + $0x238] sm:$0xff] 0.0
          %598 = vst [vmem:[#allocation2 + $0x240] sm:$0xff] 0.0
          %599 = vst [vmem:[#allocation2 + $0x248] sm:$0xff] 0.0
          %600 = vst [vmem:[#allocation2 + $0x250] sm:$0xff] 0.0
          %601 = vst [vmem:[#allocation2 + $0x258] sm:$0xff] 0.0
          %602 = vst [vmem:[#allocation2 + $0x260] sm:$0xff] 0.0
          %603 = vst [vmem:[#allocation2 + $0x268] sm:$0xff] 0.0
          %604 = vst [vmem:[#allocation2 + $0x270] sm:$0xff] 0.0
          %605 = vst [vmem:[#allocation2 + $0x278] sm:$0xff] 0.0
          %606 = vst [vmem:[#allocation2 + $0x280] sm:$0xff] 0.0
          %607 = vst [vmem:[#allocation2 + $0x288] sm:$0xff] 0.0
          %608 = vst [vmem:[#allocation2 + $0x290] sm:$0xff] 0.0
          %609 = vst [vmem:[#allocation2 + $0x298] sm:$0xff] 0.0
          %610 = vst [vmem:[#allocation2 + $0x2a0] sm:$0xff] 0.0
          %611 = vst [vmem:[#allocation2 + $0x2a8] sm:$0xff] 0.0
          %612 = vst [vmem:[#allocation2 + $0x2b0] sm:$0xff] 0.0
          %613 = vst [vmem:[#allocation2 + $0x2b8] sm:$0xff] 0.0
          %614 = vst [vmem:[#allocation2 + $0x2c0] sm:$0xff] 0.0
          %615 = vst [vmem:[#allocation2 + $0x2c8] sm:$0xff] 0.0
          %616 = vst [vmem:[#allocation2 + $0x2d0] sm:$0xff] 0.0
          %617 = vst [vmem:[#allocation2 + $0x2d8] sm:$0xff] 0.0
          %618 = vst [vmem:[#allocation2 + $0x2e0] sm:$0xff] 0.0
          %619 = vst [vmem:[#allocation2 + $0x2e8] sm:$0xff] 0.0
          %620 = vst [vmem:[#allocation2 + $0x2f0] sm:$0xff] 0.0
          %621 = vst [vmem:[#allocation2 + $0x2f8] sm:$0xff] 0.0
          %622 = vst [vmem:[#allocation2 + $0x300] sm:$0xff] 0.0
          %623 = vst [vmem:[#allocation2 + $0x308] sm:$0xff] 0.0
          %624 = vst [vmem:[#allocation2 + $0x310] sm:$0xff] 0.0
          %625 = vst [vmem:[#allocation2 + $0x318] sm:$0xff] 0.0
          %626 = vst [vmem:[#allocation2 + $0x320] sm:$0xff] 0.0
          %627 = vst [vmem:[#allocation2 + $0x328] sm:$0xff] 0.0
          %628 = vst [vmem:[#allocation2 + $0x330] sm:$0xff] 0.0
          %629 = vst [vmem:[#allocation2 + $0x338] sm:$0xff] 0.0
          %630 = vst [vmem:[#allocation2 + $0x340] sm:$0xff] 0.0
          %631 = vst [vmem:[#allocation2 + $0x348] sm:$0xff] 0.0
          %632 = vst [vmem:[#allocation2 + $0x350] sm:$0xff] 0.0
          %633 = vst [vmem:[#allocation2 + $0x358] sm:$0xff] 0.0
          %634 = vst [vmem:[#allocation2 + $0x360] sm:$0xff] 0.0
          %635 = vst [vmem:[#allocation2 + $0x368] sm:$0xff] 0.0
          %636 = vst [vmem:[#allocation2 + $0x370] sm:$0xff] 0.0
          %637 = vst [vmem:[#allocation2 + $0x378] sm:$0xff] 0.0
          %638 = vst [vmem:[#allocation2 + $0x380] sm:$0xff] 0.0
          %639 = vst [vmem:[#allocation2 + $0x388] sm:$0xff] 0.0
          %640 = vst [vmem:[#allocation2 + $0x390] sm:$0xff] 0.0
          %641 = vst [vmem:[#allocation2 + $0x398] sm:$0xff] 0.0
          %642 = vst [vmem:[#allocation2 + $0x3a0] sm:$0xff] 0.0
          %643 = vst [vmem:[#allocation2 + $0x3a8] sm:$0xff] 0.0
          %644 = vst [vmem:[#allocation2 + $0x3b0] sm:$0xff] 0.0
          %645 = vst [vmem:[#allocation2 + $0x3b8] sm:$0xff] 0.0
          %646 = vst [vmem:[#allocation2 + $0x3c0] sm:$0xff] 0.0
          %647 = vst [vmem:[#allocation2 + $0x3c8] sm:$0xff] 0.0
          %648 = vst [vmem:[#allocation2 + $0x3d0] sm:$0xff] 0.0
          %649 = vst [vmem:[#allocation2 + $0x3d8] sm:$0xff] 0.0
          %650 = vst [vmem:[#allocation2 + $0x3e0] sm:$0xff] 0.0
          %651 = vst [vmem:[#allocation2 + $0x3e8] sm:$0xff] 0.0
        $region93: #{tpu_custom_call.1} parent=80 // pred_fallthru
          _
        %v652 = vld [vmem:[%s426] sm:$0xf]
        %v653 = vld [vmem:[%s426 + $0x4] sm:$0xf]
        %v654 = vld [vmem:[%s426 + $0x8] sm:$0xf]
        %v655 = vld [vmem:[%s426 + $0xc] sm:$0xf]
        %v656 = vld [vmem:[%s426 + $0x10] sm:$0xf]
        %v657 = vld [vmem:[%s426 + $0x14] sm:$0xf]
        %v658 = vld [vmem:[%s426 + $0x18] sm:$0xf]
        %v659 = vld [vmem:[%s426 + $0x1c] sm:$0xf]
        %v660 = vld [vmem:[%s426 + $0x20] sm:$0xf]
        %v661 = vld [vmem:[%s426 + $0x24] sm:$0xf]
        %v662 = vld [vmem:[%s426 + $0x28] sm:$0xf]
        %v663 = vld [vmem:[%s426 + $0x2c] sm:$0xf]
        %v664 = vld [vmem:[%s426 + $0x30] sm:$0xf]
        %v665 = vld [vmem:[%s426 + $0x34] sm:$0xf]
        %v666 = vld [vmem:[%s426 + $0x38] sm:$0xf]
        %v667 = vld [vmem:[%s426 + $0x3c] sm:$0xf]
        %v668 = vld [vmem:[#allocation2] sm:$0xff]
        %v669 = vld [vmem:[#allocation2 + $0x8] sm:$0xff]
        %v670 = vld [vmem:[#allocation2 + $0x10] sm:$0xff]
        %v671 = vld [vmem:[#allocation2 + $0x18] sm:$0xff]
        %v672 = vld [vmem:[#allocation2 + $0x20] sm:$0xff]
        %v673 = vld [vmem:[#allocation2 + $0x28] sm:$0xff]
        %v674 = vld [vmem:[#allocation2 + $0x30] sm:$0xff]
        %v682 = vunpack.c.l.b16 %v466
        %v683 = vunpack.c.l.b16 %v467
        %v684 = vunpack.c.l.b16 %v468
        %v685 = vunpack.c.l.b16 %v469
        %v686 = vunpack.c.l.b16 %v470
        %v687 = vunpack.c.l.b16 %v471
        %v688 = vunpack.c.l.b16 %v472
        %v689 = vpack.c.b16 %v683, %v682
        %v690 = vpack.c.b16 %v685, %v684
        %v691 = vpack.c.b16 %v687, %v686
        %v692 = vpack.c.b16 %v688, %v688
        %v713 = vunpack.c.l.b16 %v652
        %v714 = vunpack.c.l.b16 %v653
        %v715 = vunpack.c.l.b16 %v654
        %v716 = vunpack.c.l.b16 %v655
        %v717 = vunpack.c.l.b16 %v656
        %v718 = vunpack.c.l.b16 %v657
        %v719 = vunpack.c.l.b16 %v658
        %v720 = vunpack.c.l.b16 %v659
        %v721 = vunpack.c.l.b16 %v660
        %v722 = vunpack.c.l.b16 %v661
        %v723 = vunpack.c.l.b16 %v662
        %v724 = vunpack.c.l.b16 %v663
        %v725 = vunpack.c.l.b16 %v664
        %v726 = vunpack.c.l.b16 %v665
        %v727 = vunpack.c.l.b16 %v666
        %v728 = vunpack.c.l.b16 %v667
        %v729 = vpack.c.b16 %v714, %v713
        %v730 = vpack.c.b16 %v716, %v715
        %v731 = vpack.c.b16 %v718, %v717
        %v732 = vpack.c.b16 %v720, %v719
        %v733 = vpack.c.b16 %v722, %v721
        %v734 = vpack.c.b16 %v724, %v723
        %v735 = vpack.c.b16 %v726, %v725
        %v736 = vpack.c.b16 %v728, %v727
        %745 = vmatpush.bf16.msra.mxu0 %v736
        %746 = vmatpush.bf16.msra.mxu0 %v735
        %747 = vmatpush.bf16.msra.mxu0 %v734
        %748 = vmatpush.bf16.msra.mxu0 %v733
        %749 = vmatpush.bf16.msra.mxu0 %v732
        %750 = vmatpush.bf16.msra.mxu0 %v731
        %751 = vmatpush.bf16.msra.mxu0 %v730
        %752 = vmatpush.bf16.msra.mxu0 %v729
        %753 = vmatmul.bf16.gmra.mxu0 %v689
        %v754 = vpop.f32.mrf.mxu0
        %v755 = vadd.f32 0.0, %v754
        %v756 = vpop.f32.mrf.mxu0
        %v757 = vadd.f32 0.0, %v756
        %758 = vmatmul.bf16.gmra.mxu0 %v690
        %v759 = vpop.f32.mrf.mxu0
        %v760 = vadd.f32 0.0, %v759
        %v761 = vpop.f32.mrf.mxu0
        %v762 = vadd.f32 0.0, %v761
        %763 = vmatmul.bf16.gmra.mxu0 %v691
        %v764 = vpop.f32.mrf.mxu0
        %v765 = vadd.f32 0.0, %v764
        %v766 = vpop.f32.mrf.mxu0
        %v767 = vadd.f32 0.0, %v766
        %768 = vmatmul.bf16.gmra.mxu0 %v692
        %v769 = vpop.f32.mrf.mxu0
        %v770 = vadd.f32 0.0, %v769
        %v771 = vpop.f32.mrf.mxu0
        %772 = vdwg.mxu0
        %v773 = vadd.f32 %v668, %v755
        %v774 = vadd.f32 %v669, %v757
        %v775 = vadd.f32 %v670, %v760
        %v776 = vadd.f32 %v671, %v762
        %v777 = vadd.f32 %v672, %v765
        %v778 = vadd.f32 %v673, %v767
        %v779 = vadd.f32 %v674, %v770
        %780 = vst [vmem:[#allocation2] sm:$0xff] %v773
        %781 = vst [vmem:[#allocation2 + $0x8] sm:$0xff] %v774
        %782 = vst [vmem:[#allocation2 + $0x10] sm:$0xff] %v775
        %783 = vst [vmem:[#allocation2 + $0x18] sm:$0xff] %v776
        %784 = vst [vmem:[#allocation2 + $0x20] sm:$0xff] %v777
        %785 = vst [vmem:[#allocation2 + $0x28] sm:$0xff] %v778
        %786 = vst [vmem:[#allocation2 + $0x30] sm:$0xff] %v779
        %s787 = scalar_lea.vmem [#allocation2], 504
        %v788 = vld [vmem:[%s787] sm:$0xff]
        %v789 = vld [vmem:[%s787 + $0x8] sm:$0xff]
        %v790 = vld [vmem:[%s787 + $0x10] sm:$0xff]
        %v791 = vld [vmem:[%s787 + $0x18] sm:$0xff]
        %v792 = vld [vmem:[%s787 + $0x20] sm:$0xff]
        %v793 = vld [vmem:[%s787 + $0x28] sm:$0xff]
        %v794 = vld [vmem:[%s787 + $0x30] sm:$0xff]
        %v802 = vunpack.c.l.b16 %v473
        %v803 = vunpack.c.l.b16 %v474
        %v804 = vunpack.c.l.b16 %v475
        %v805 = vunpack.c.l.b16 %v476
        %v806 = vunpack.c.l.b16 %v477
        %v807 = vunpack.c.l.b16 %v478
        %v808 = vunpack.c.l.b16 %v479
        %v809 = vpack.c.b16 %v803, %v802
        %v810 = vpack.c.b16 %v805, %v804
        %v811 = vpack.c.b16 %v807, %v806
        %v812 = vpack.c.b16 %v808, %v808
        %817 = vmatpush.bf16.msra.mxu0 %v736
        %818 = vmatpush.bf16.msra.mxu0 %v735
        %819 = vmatpush.bf16.msra.mxu0 %v734
        %820 = vmatpush.bf16.msra.mxu0 %v733
        %821 = vmatpush.bf16.msra.mxu0 %v732
        %822 = vmatpush.bf16.msra.mxu0 %v731
        %823 = vmatpush.bf16.msra.mxu0 %v730
        %824 = vmatpush.bf16.msra.mxu0 %v729
        %825 = vmatmul.bf16.gmra.mxu0 %v809
        %v826 = vpop.f32.mrf.mxu0
        %v827 = vadd.f32 0.0, %v826
        %v828 = vpop.f32.mrf.mxu0
        %v829 = vadd.f32 0.0, %v828
        %830 = vmatmul.bf16.gmra.mxu0 %v810
        %v831 = vpop.f32.mrf.mxu0
        %v832 = vadd.f32 0.0, %v831
        %v833 = vpop.f32.mrf.mxu0
        %v834 = vadd.f32 0.0, %v833
        %835 = vmatmul.bf16.gmra.mxu0 %v811
        %v836 = vpop.f32.mrf.mxu0
        %v837 = vadd.f32 0.0, %v836
        %v838 = vpop.f32.mrf.mxu0
        %v839 = vadd.f32 0.0, %v838
        %840 = vmatmul.bf16.gmra.mxu0 %v812
        %v841 = vpop.f32.mrf.mxu0
        %v842 = vadd.f32 0.0, %v841
        %v843 = vpop.f32.mrf.mxu0
        %844 = vdwg.mxu0
        %v845 = vadd.f32 %v788, %v827
        %v846 = vadd.f32 %v789, %v829
        %v847 = vadd.f32 %v790, %v832
        %v848 = vadd.f32 %v791, %v834
        %v849 = vadd.f32 %v792, %v837
        %v850 = vadd.f32 %v793, %v839
        %v851 = vadd.f32 %v794, %v842
        %852 = vst [vmem:[%s787] sm:$0xff] %v845
        %853 = vst [vmem:[%s787 + $0x8] sm:$0xff] %v846
        %854 = vst [vmem:[%s787 + $0x10] sm:$0xff] %v847
        %855 = vst [vmem:[%s787 + $0x18] sm:$0xff] %v848
        %856 = vst [vmem:[%s787 + $0x20] sm:$0xff] %v849
        %857 = vst [vmem:[%s787 + $0x28] sm:$0xff] %v850
        %858 = vst [vmem:[%s787 + $0x30] sm:$0xff] %v851
        %s859 = scalar_lea.vmem %s426, 64 [#allocation4]
        %v860 = vld [vmem:[%s859] sm:$0xf]
        %v861 = vld [vmem:[%s859 + $0x4] sm:$0xf]
        %v862 = vld [vmem:[%s859 + $0x8] sm:$0xf]
        %v863 = vld [vmem:[%s859 + $0xc] sm:$0xf]
        %v864 = vld [vmem:[%s859 + $0x10] sm:$0xf]
        %v865 = vld [vmem:[%s859 + $0x14] sm:$0xf]
        %v866 = vld [vmem:[%s859 + $0x18] sm:$0xf]
        %v867 = vld [vmem:[%s859 + $0x1c] sm:$0xf]
        %v868 = vld [vmem:[%s859 + $0x20] sm:$0xf]
        %v869 = vld [vmem:[%s859 + $0x24] sm:$0xf]
        %v870 = vld [vmem:[%s859 + $0x28] sm:$0xf]
        %v871 = vld [vmem:[%s859 + $0x2c] sm:$0xf]
        %v872 = vld [vmem:[%s859 + $0x30] sm:$0xf]
        %v873 = vld [vmem:[%s859 + $0x34] sm:$0xf]
        %v874 = vld [vmem:[%s859 + $0x38] sm:$0xf]
        %v875 = vld [vmem:[%s859 + $0x3c] sm:$0xf]
        %v876 = vld [vmem:[#allocation2 + $0x38] sm:$0xff]
        %v877 = vld [vmem:[#allocation2 + $0x40] sm:$0xff]
        %v878 = vld [vmem:[#allocation2 + $0x48] sm:$0xff]
        %v879 = vld [vmem:[#allocation2 + $0x50] sm:$0xff]
        %v880 = vld [vmem:[#allocation2 + $0x58] sm:$0xff]
        %v881 = vld [vmem:[#allocation2 + $0x60] sm:$0xff]
        %v882 = vld [vmem:[#allocation2 + $0x68] sm:$0xff]
        %v899 = vunpack.c.l.b16 %v860
        %v900 = vunpack.c.l.b16 %v861
        %v901 = vunpack.c.l.b16 %v862
        %v902 = vunpack.c.l.b16 %v863
        %v903 = vunpack.c.l.b16 %v864
        %v904 = vunpack.c.l.b16 %v865
        %v905 = vunpack.c.l.b16 %v866
        %v906 = vunpack.c.l.b16 %v867
        %v907 = vunpack.c.l.b16 %v868
        %v908 = vunpack.c.l.b16 %v869
        %v909 = vunpack.c.l.b16 %v870
        %v910 = vunpack.c.l.b16 %v871
        %v911 = vunpack.c.l.b16 %v872
        %v912 = vunpack.c.l.b16 %v873
        %v913 = vunpack.c.l.b16 %v874
        %v914 = vunpack.c.l.b16 %v875
        %v915 = vpack.c.b16 %v900, %v899
        %v916 = vpack.c.b16 %v902, %v901
        %v917 = vpack.c.b16 %v904, %v903
        %v918 = vpack.c.b16 %v906, %v905
        %v919 = vpack.c.b16 %v908, %v907
        %v920 = vpack.c.b16 %v910, %v909
        %v921 = vpack.c.b16 %v912, %v911
        %v922 = vpack.c.b16 %v914, %v913
        %931 = vmatpush.bf16.msra.mxu0 %v922
        %932 = vmatpush.bf16.msra.mxu0 %v921
        %933 = vmatpush.bf16.msra.mxu0 %v920
        %934 = vmatpush.bf16.msra.mxu0 %v919
        %935 = vmatpush.bf16.msra.mxu0 %v918
        %936 = vmatpush.bf16.msra.mxu0 %v917
        %937 = vmatpush.bf16.msra.mxu0 %v916
        %938 = vmatpush.bf16.msra.mxu0 %v915
        %939 = vmatmul.bf16.gmra.mxu0 %v689
        %v940 = vpop.f32.mrf.mxu0
        %v941 = vadd.f32 0.0, %v940
        %v942 = vpop.f32.mrf.mxu0
        %v943 = vadd.f32 0.0, %v942
        %944 = vmatmul.bf16.gmra.mxu0 %v690
        %v945 = vpop.f32.mrf.mxu0
        %v946 = vadd.f32 0.0, %v945
        %v947 = vpop.f32.mrf.mxu0
        %v948 = vadd.f32 0.0, %v947
        %949 = vmatmul.bf16.gmra.mxu0 %v691
        %v950 = vpop.f32.mrf.mxu0
        %v951 = vadd.f32 0.0, %v950
        %v952 = vpop.f32.mrf.mxu0
        %v953 = vadd.f32 0.0, %v952
        %954 = vmatmul.bf16.gmra.mxu0 %v692
        %v955 = vpop.f32.mrf.mxu0
        %v956 = vadd.f32 0.0, %v955
        %v957 = vpop.f32.mrf.mxu0
        %958 = vdwg.mxu0
        %v959 = vadd.f32 %v876, %v941
        %v960 = vadd.f32 %v877, %v943
        %v961 = vadd.f32 %v878, %v946
        %v962 = vadd.f32 %v879, %v948
        %v963 = vadd.f32 %v880, %v951
        %v964 = vadd.f32 %v881, %v953
        %v965 = vadd.f32 %v882, %v956
        %966 = vst [vmem:[#allocation2 + $0x38] sm:$0xff] %v959
        %967 = vst [vmem:[#allocation2 + $0x40] sm:$0xff] %v960
        %968 = vst [vmem:[#allocation2 + $0x48] sm:$0xff] %v961
        %969 = vst [vmem:[#allocation2 + $0x50] sm:$0xff] %v962
        %970 = vst [vmem:[#allocation2 + $0x58] sm:$0xff] %v963
        %971 = vst [vmem:[#allocation2 + $0x60] sm:$0xff] %v964
        %972 = vst [vmem:[#allocation2 + $0x68] sm:$0xff] %v965
        %v973 = vld [vmem:[%s787 + $0x38] sm:$0xff]
        %v974 = vld [vmem:[%s787 + $0x40] sm:$0xff]
        %v975 = vld [vmem:[%s787 + $0x48] sm:$0xff]
        %v976 = vld [vmem:[%s787 + $0x50] sm:$0xff]
        %v977 = vld [vmem:[%s787 + $0x58] sm:$0xff]
        %v978 = vld [vmem:[%s787 + $0x60] sm:$0xff]
        %v979 = vld [vmem:[%s787 + $0x68] sm:$0xff]
        %980 = vmatpush.bf16.msra.mxu0 %v922
        %981 = vmatpush.bf16.msra.mxu0 %v921
        %982 = vmatpush.bf16.msra.mxu0 %v920
        %983 = vmatpush.bf16.msra.mxu0 %v919
        %984 = vmatpush.bf16.msra.mxu0 %v918
        %985 = vmatpush.bf16.msra.mxu0 %v917
        %986 = vmatpush.bf16.msra.mxu0 %v916
        %987 = vmatpush.bf16.msra.mxu0 %v915
        %988 = vmatmul.bf16.gmra.mxu0 %v809
        %v989 = vpop.f32.mrf.mxu0
        %v990 = vadd.f32 0.0, %v989
        %v991 = vpop.f32.mrf.mxu0
        %v992 = vadd.f32 0.0, %v991
        %993 = vmatmul.bf16.gmra.mxu0 %v810
        %v994 = vpop.f32.mrf.mxu0
        %v995 = vadd.f32 0.0, %v994
        %v996 = vpop.f32.mrf.mxu0
        %v997 = vadd.f32 0.0, %v996
        %998 = vmatmul.bf16.gmra.mxu0 %v811
        %v999 = vpop.f32.mrf.mxu0
        %v1000 = vadd.f32 0.0, %v999
        %v1001 = vpop.f32.mrf.mxu0
        %v1002 = vadd.f32 0.0, %v1001
        %1003 = vmatmul.bf16.gmra.mxu0 %v812
        %v1004 = vpop.f32.mrf.mxu0
        %v1005 = vadd.f32 0.0, %v1004
        %v1006 = vpop.f32.mrf.mxu0
        %1007 = vdwg.mxu0
        %v1008 = vadd.f32 %v973, %v990
        %v1009 = vadd.f32 %v974, %v992
        %v1010 = vadd.f32 %v975, %v995
        %v1011 = vadd.f32 %v976, %v997
        %v1012 = vadd.f32 %v977, %v1000
        %v1013 = vadd.f32 %v978, %v1002
        %v1014 = vadd.f32 %v979, %v1005
        %1015 = vst [vmem:[%s787 + $0x38] sm:$0xff] %v1008
        %1016 = vst [vmem:[%s787 + $0x40] sm:$0xff] %v1009
        %1017 = vst [vmem:[%s787 + $0x48] sm:$0xff] %v1010
        %1018 = vst [vmem:[%s787 + $0x50] sm:$0xff] %v1011
        %1019 = vst [vmem:[%s787 + $0x58] sm:$0xff] %v1012
        %1020 = vst [vmem:[%s787 + $0x60] sm:$0xff] %v1013
        %1021 = vst [vmem:[%s787 + $0x68] sm:$0xff] %v1014
        %s1022 = scalar_lea.vmem %s426, 128 [#allocation4]
        %v1023 = vld [vmem:[%s1022] sm:$0xf]
        %v1024 = vld [vmem:[%s1022 + $0x4] sm:$0xf]
        %v1025 = vld [vmem:[%s1022 + $0x8] sm:$0xf]
        %v1026 = vld [vmem:[%s1022 + $0xc] sm:$0xf]
        %v1027 = vld [vmem:[%s1022 + $0x10] sm:$0xf]
        %v1028 = vld [vmem:[%s1022 + $0x14] sm:$0xf]
        %v1029 = vld [vmem:[%s1022 + $0x18] sm:$0xf]
        %v1030 = vld [vmem:[%s1022 + $0x1c] sm:$0xf]
        %v1031 = vld [vmem:[%s1022 + $0x20] sm:$0xf]
        %v1032 = vld [vmem:[%s1022 + $0x24] sm:$0xf]
        %v1033 = vld [vmem:[%s1022 + $0x28] sm:$0xf]
        %v1034 = vld [vmem:[%s1022 + $0x2c] sm:$0xf]
        %v1035 = vld [vmem:[%s1022 + $0x30] sm:$0xf]
        %v1036 = vld [vmem:[%s1022 + $0x34] sm:$0xf]
        %v1037 = vld [vmem:[%s1022 + $0x38] sm:$0xf]
        %v1038 = vld [vmem:[%s1022 + $0x3c] sm:$0xf]
        %v1039 = vld [vmem:[#allocation2 + $0x70] sm:$0xff]
        %v1040 = vld [vmem:[#allocation2 + $0x78] sm:$0xff]
        %v1041 = vld [vmem:[#allocation2 + $0x80] sm:$0xff]
        %v1042 = vld [vmem:[#allocation2 + $0x88] sm:$0xff]
        %v1043 = vld [vmem:[#allocation2 + $0x90] sm:$0xff]
        %v1044 = vld [vmem:[#allocation2 + $0x98] sm:$0xff]
        %v1045 = vld [vmem:[#allocation2 + $0xa0] sm:$0xff]
        %v1062 = vunpack.c.l.b16 %v1023
        %v1063 = vunpack.c.l.b16 %v1024
        %v1064 = vunpack.c.l.b16 %v1025
        %v1065 = vunpack.c.l.b16 %v1026
        %v1066 = vunpack.c.l.b16 %v1027
        %v1067 = vunpack.c.l.b16 %v1028
        %v1068 = vunpack.c.l.b16 %v1029
        %v1069 = vunpack.c.l.b16 %v1030
        %v1070 = vunpack.c.l.b16 %v1031
        %v1071 = vunpack.c.l.b16 %v1032
        %v1072 = vunpack.c.l.b16 %v1033
        %v1073 = vunpack.c.l.b16 %v1034
        %v1074 = vunpack.c.l.b16 %v1035
        %v1075 = vunpack.c.l.b16 %v1036
        %v1076 = vunpack.c.l.b16 %v1037
        %v1077 = vunpack.c.l.b16 %v1038
        %v1078 = vpack.c.b16 %v1063, %v1062
        %v1079 = vpack.c.b16 %v1065, %v1064
        %v1080 = vpack.c.b16 %v1067, %v1066
        %v1081 = vpack.c.b16 %v1069, %v1068
        %v1082 = vpack.c.b16 %v1071, %v1070
        %v1083 = vpack.c.b16 %v1073, %v1072
        %v1084 = vpack.c.b16 %v1075, %v1074
        %v1085 = vpack.c.b16 %v1077, %v1076
        %1094 = vmatpush.bf16.msra.mxu0 %v1085
        %1095 = vmatpush.bf16.msra.mxu0 %v1084
        %1096 = vmatpush.bf16.msra.mxu0 %v1083
        %1097 = vmatpush.bf16.msra.mxu0 %v1082
        %1098 = vmatpush.bf16.msra.mxu0 %v1081
        %1099 = vmatpush.bf16.msra.mxu0 %v1080
        %1100 = vmatpush.bf16.msra.mxu0 %v1079
        %1101 = vmatpush.bf16.msra.mxu0 %v1078
        %1102 = vmatmul.bf16.gmra.mxu0 %v689
        %v1103 = vpop.f32.mrf.mxu0
        %v1104 = vadd.f32 0.0, %v1103
        %v1105 = vpop.f32.mrf.mxu0
        %v1106 = vadd.f32 0.0, %v1105
        %1107 = vmatmul.bf16.gmra.mxu0 %v690
        %v1108 = vpop.f32.mrf.mxu0
        %v1109 = vadd.f32 0.0, %v1108
        %v1110 = vpop.f32.mrf.mxu0
        %v1111 = vadd.f32 0.0, %v1110
        %1112 = vmatmul.bf16.gmra.mxu0 %v691
        %v1113 = vpop.f32.mrf.mxu0
        %v1114 = vadd.f32 0.0, %v1113
        %v1115 = vpop.f32.mrf.mxu0
        %v1116 = vadd.f32 0.0, %v1115
        %1117 = vmatmul.bf16.gmra.mxu0 %v692
        %v1118 = vpop.f32.mrf.mxu0
        %v1119 = vadd.f32 0.0, %v1118
        %v1120 = vpop.f32.mrf.mxu0
        %1121 = vdwg.mxu0
        %v1122 = vadd.f32 %v1039, %v1104
        %v1123 = vadd.f32 %v1040, %v1106
        %v1124 = vadd.f32 %v1041, %v1109
        %v1125 = vadd.f32 %v1042, %v1111
        %v1126 = vadd.f32 %v1043, %v1114
        %v1127 = vadd.f32 %v1044, %v1116
        %v1128 = vadd.f32 %v1045, %v1119
        %1129 = vst [vmem:[#allocation2 + $0x70] sm:$0xff] %v1122
        %1130 = vst [vmem:[#allocation2 + $0x78] sm:$0xff] %v1123
        %1131 = vst [vmem:[#allocation2 + $0x80] sm:$0xff] %v1124
        %1132 = vst [vmem:[#allocation2 + $0x88] sm:$0xff] %v1125
        %1133 = vst [vmem:[#allocation2 + $0x90] sm:$0xff] %v1126
        %1134 = vst [vmem:[#allocation2 + $0x98] sm:$0xff] %v1127
        %1135 = vst [vmem:[#allocation2 + $0xa0] sm:$0xff] %v1128
        %v1136 = vld [vmem:[%s787 + $0x70] sm:$0xff]
        %v1137 = vld [vmem:[%s787 + $0x78] sm:$0xff]
        %v1138 = vld [vmem:[%s787 + $0x80] sm:$0xff]
        %v1139 = vld [vmem:[%s787 + $0x88] sm:$0xff]
        %v1140 = vld [vmem:[%s787 + $0x90] sm:$0xff]
        %v1141 = vld [vmem:[%s787 + $0x98] sm:$0xff]
        %v1142 = vld [vmem:[%s787 + $0xa0] sm:$0xff]
        %1143 = vmatpush.bf16.msra.mxu0 %v1085
        %1144 = vmatpush.bf16.msra.mxu0 %v1084
        %1145 = vmatpush.bf16.msra.mxu0 %v1083
        %1146 = vmatpush.bf16.msra.mxu0 %v1082
        %1147 = vmatpush.bf16.msra.mxu0 %v1081
        %1148 = vmatpush.bf16.msra.mxu0 %v1080
        %1149 = vmatpush.bf16.msra.mxu0 %v1079
        %1150 = vmatpush.bf16.msra.mxu0 %v1078
        %1151 = vmatmul.bf16.gmra.mxu0 %v809
        %v1152 = vpop.f32.mrf.mxu0
        %v1153 = vadd.f32 0.0, %v1152
        %v1154 = vpop.f32.mrf.mxu0
        %v1155 = vadd.f32 0.0, %v1154
        %1156 = vmatmul.bf16.gmra.mxu0 %v810
        %v1157 = vpop.f32.mrf.mxu0
        %v1158 = vadd.f32 0.0, %v1157
        %v1159 = vpop.f32.mrf.mxu0
        %v1160 = vadd.f32 0.0, %v1159
        %1161 = vmatmul.bf16.gmra.mxu0 %v811
        %v1162 = vpop.f32.mrf.mxu0
        %v1163 = vadd.f32 0.0, %v1162
        %v1164 = vpop.f32.mrf.mxu0
        %v1165 = vadd.f32 0.0, %v1164
        %1166 = vmatmul.bf16.gmra.mxu0 %v812
        %v1167 = vpop.f32.mrf.mxu0
        %v1168 = vadd.f32 0.0, %v1167
        %v1169 = vpop.f32.mrf.mxu0
        %1170 = vdwg.mxu0
        %v1171 = vadd.f32 %v1136, %v1153
        %v1172 = vadd.f32 %v1137, %v1155
        %v1173 = vadd.f32 %v1138, %v1158
        %v1174 = vadd.f32 %v1139, %v1160
        %v1175 = vadd.f32 %v1140, %v1163
        %v1176 = vadd.f32 %v1141, %v1165
        %v1177 = vadd.f32 %v1142, %v1168
        %1178 = vst [vmem:[%s787 + $0x70] sm:$0xff] %v1171
        %1179 = vst [vmem:[%s787 + $0x78] sm:$0xff] %v1172
        %1180 = vst [vmem:[%s787 + $0x80] sm:$0xff] %v1173
        %1181 = vst [vmem:[%s787 + $0x88] sm:$0xff] %v1174
        %1182 = vst [vmem:[%s787 + $0x90] sm:$0xff] %v1175
        %1183 = vst [vmem:[%s787 + $0x98] sm:$0xff] %v1176
        %1184 = vst [vmem:[%s787 + $0xa0] sm:$0xff] %v1177
        %s1185 = scalar_lea.vmem %s426, 192 [#allocation4]
        %v1186 = vld [vmem:[%s1185] sm:$0xf]
        %v1187 = vld [vmem:[%s1185 + $0x4] sm:$0xf]
        %v1188 = vld [vmem:[%s1185 + $0x8] sm:$0xf]
        %v1189 = vld [vmem:[%s1185 + $0xc] sm:$0xf]
        %v1190 = vld [vmem:[%s1185 + $0x10] sm:$0xf]
        %v1191 = vld [vmem:[%s1185 + $0x14] sm:$0xf]
        %v1192 = vld [vmem:[%s1185 + $0x18] sm:$0xf]
        %v1193 = vld [vmem:[%s1185 + $0x1c] sm:$0xf]
        %v1194 = vld [vmem:[%s1185 + $0x20] sm:$0xf]
        %v1195 = vld [vmem:[%s1185 + $0x24] sm:$0xf]
        %v1196 = vld [vmem:[%s1185 + $0x28] sm:$0xf]
        %v1197 = vld [vmem:[%s1185 + $0x2c] sm:$0xf]
        %v1198 = vld [vmem:[%s1185 + $0x30] sm:$0xf]
        %v1199 = vld [vmem:[%s1185 + $0x34] sm:$0xf]
        %v1200 = vld [vmem:[%s1185 + $0x38] sm:$0xf]
        %v1201 = vld [vmem:[%s1185 + $0x3c] sm:$0xf]
        %v1202 = vld [vmem:[#allocation2 + $0xa8] sm:$0xff]
        %v1203 = vld [vmem:[#allocation2 + $0xb0] sm:$0xff]
        %v1204 = vld [vmem:[#allocation2 + $0xb8] sm:$0xff]
        %v1205 = vld [vmem:[#allocation2 + $0xc0] sm:$0xff]
        %v1206 = vld [vmem:[#allocation2 + $0xc8] sm:$0xff]
        %v1207 = vld [vmem:[#allocation2 + $0xd0] sm:$0xff]
        %v1208 = vld [vmem:[#allocation2 + $0xd8] sm:$0xff]
        %v1225 = vunpack.c.l.b16 %v1186
        %v1226 = vunpack.c.l.b16 %v1187
        %v1227 = vunpack.c.l.b16 %v1188
        %v1228 = vunpack.c.l.b16 %v1189
        %v1229 = vunpack.c.l.b16 %v1190
        %v1230 = vunpack.c.l.b16 %v1191
        %v1231 = vunpack.c.l.b16 %v1192
        %v1232 = vunpack.c.l.b16 %v1193
        %v1233 = vunpack.c.l.b16 %v1194
        %v1234 = vunpack.c.l.b16 %v1195
        %v1235 = vunpack.c.l.b16 %v1196
        %v1236 = vunpack.c.l.b16 %v1197
        %v1237 = vunpack.c.l.b16 %v1198
        %v1238 = vunpack.c.l.b16 %v1199
        %v1239 = vunpack.c.l.b16 %v1200
        %v1240 = vunpack.c.l.b16 %v1201
        %v1241 = vpack.c.b16 %v1226, %v1225
        %v1242 = vpack.c.b16 %v1228, %v1227
        %v1243 = vpack.c.b16 %v1230, %v1229
        %v1244 = vpack.c.b16 %v1232, %v1231
        %v1245 = vpack.c.b16 %v1234, %v1233
        %v1246 = vpack.c.b16 %v1236, %v1235
        %v1247 = vpack.c.b16 %v1238, %v1237
        %v1248 = vpack.c.b16 %v1240, %v1239
        %1257 = vmatpush.bf16.msra.mxu0 %v1248
        %1258 = vmatpush.bf16.msra.mxu0 %v1247
        %1259 = vmatpush.bf16.msra.mxu0 %v1246
        %1260 = vmatpush.bf16.msra.mxu0 %v1245
        %1261 = vmatpush.bf16.msra.mxu0 %v1244
        %1262 = vmatpush.bf16.msra.mxu0 %v1243
        %1263 = vmatpush.bf16.msra.mxu0 %v1242
        %1264 = vmatpush.bf16.msra.mxu0 %v1241
        %1265 = vmatmul.bf16.gmra.mxu0 %v689
        %v1266 = vpop.f32.mrf.mxu0
        %v1267 = vadd.f32 0.0, %v1266
        %v1268 = vpop.f32.mrf.mxu0
        %v1269 = vadd.f32 0.0, %v1268
        %1270 = vmatmul.bf16.gmra.mxu0 %v690
        %v1271 = vpop.f32.mrf.mxu0
        %v1272 = vadd.f32 0.0, %v1271
        %v1273 = vpop.f32.mrf.mxu0
        %v1274 = vadd.f32 0.0, %v1273
        %1275 = vmatmul.bf16.gmra.mxu0 %v691
        %v1276 = vpop.f32.mrf.mxu0
        %v1277 = vadd.f32 0.0, %v1276
        %v1278 = vpop.f32.mrf.mxu0
        %v1279 = vadd.f32 0.0, %v1278
        %1280 = vmatmul.bf16.gmra.mxu0 %v692
        %v1281 = vpop.f32.mrf.mxu0
        %v1282 = vadd.f32 0.0, %v1281
        %v1283 = vpop.f32.mrf.mxu0
        %1284 = vdwg.mxu0
        %v1285 = vadd.f32 %v1202, %v1267
        %v1286 = vadd.f32 %v1203, %v1269
        %v1287 = vadd.f32 %v1204, %v1272
        %v1288 = vadd.f32 %v1205, %v1274
        %v1289 = vadd.f32 %v1206, %v1277
        %v1290 = vadd.f32 %v1207, %v1279
        %v1291 = vadd.f32 %v1208, %v1282
        %1292 = vst [vmem:[#allocation2 + $0xa8] sm:$0xff] %v1285
        %1293 = vst [vmem:[#allocation2 + $0xb0] sm:$0xff] %v1286
        %1294 = vst [vmem:[#allocation2 + $0xb8] sm:$0xff] %v1287
        %1295 = vst [vmem:[#allocation2 + $0xc0] sm:$0xff] %v1288
        %1296 = vst [vmem:[#allocation2 + $0xc8] sm:$0xff] %v1289
        %1297 = vst [vmem:[#allocation2 + $0xd0] sm:$0xff] %v1290
        %1298 = vst [vmem:[#allocation2 + $0xd8] sm:$0xff] %v1291
        %v1299 = vld [vmem:[%s787 + $0xa8] sm:$0xff]
        %v1300 = vld [vmem:[%s787 + $0xb0] sm:$0xff]
        %v1301 = vld [vmem:[%s787 + $0xb8] sm:$0xff]
        %v1302 = vld [vmem:[%s787 + $0xc0] sm:$0xff]
        %v1303 = vld [vmem:[%s787 + $0xc8] sm:$0xff]
        %v1304 = vld [vmem:[%s787 + $0xd0] sm:$0xff]
        %v1305 = vld [vmem:[%s787 + $0xd8] sm:$0xff]
        %1306 = vmatpush.bf16.msra.mxu0 %v1248
        %1307 = vmatpush.bf16.msra.mxu0 %v1247
        %1308 = vmatpush.bf16.msra.mxu0 %v1246
        %1309 = vmatpush.bf16.msra.mxu0 %v1245
        %1310 = vmatpush.bf16.msra.mxu0 %v1244
        %1311 = vmatpush.bf16.msra.mxu0 %v1243
        %1312 = vmatpush.bf16.msra.mxu0 %v1242
        %1313 = vmatpush.bf16.msra.mxu0 %v1241
        %1314 = vmatmul.bf16.gmra.mxu0 %v809
        %v1315 = vpop.f32.mrf.mxu0
        %v1316 = vadd.f32 0.0, %v1315
        %v1317 = vpop.f32.mrf.mxu0
        %v1318 = vadd.f32 0.0, %v1317
        %1319 = vmatmul.bf16.gmra.mxu0 %v810
        %v1320 = vpop.f32.mrf.mxu0
        %v1321 = vadd.f32 0.0, %v1320
        %v1322 = vpop.f32.mrf.mxu0
        %v1323 = vadd.f32 0.0, %v1322
        %1324 = vmatmul.bf16.gmra.mxu0 %v811
        %v1325 = vpop.f32.mrf.mxu0
        %v1326 = vadd.f32 0.0, %v1325
        %v1327 = vpop.f32.mrf.mxu0
        %v1328 = vadd.f32 0.0, %v1327
        %1329 = vmatmul.bf16.gmra.mxu0 %v812
        %v1330 = vpop.f32.mrf.mxu0
        %v1331 = vadd.f32 0.0, %v1330
        %v1332 = vpop.f32.mrf.mxu0
        %1333 = vdwg.mxu0
        %v1334 = vadd.f32 %v1299, %v1316
        %v1335 = vadd.f32 %v1300, %v1318
        %v1336 = vadd.f32 %v1301, %v1321
        %v1337 = vadd.f32 %v1302, %v1323
        %v1338 = vadd.f32 %v1303, %v1326
        %v1339 = vadd.f32 %v1304, %v1328
        %v1340 = vadd.f32 %v1305, %v1331
        %1341 = vst [vmem:[%s787 + $0xa8] sm:$0xff] %v1334
        %1342 = vst [vmem:[%s787 + $0xb0] sm:$0xff] %v1335
        %1343 = vst [vmem:[%s787 + $0xb8] sm:$0xff] %v1336
        %1344 = vst [vmem:[%s787 + $0xc0] sm:$0xff] %v1337
        %1345 = vst [vmem:[%s787 + $0xc8] sm:$0xff] %v1338
        %1346 = vst [vmem:[%s787 + $0xd0] sm:$0xff] %v1339
        %1347 = vst [vmem:[%s787 + $0xd8] sm:$0xff] %v1340
        %s1348 = scalar_lea.vmem %s426, 256 [#allocation4]
        %v1349 = vld [vmem:[%s1348] sm:$0xf]
        %v1350 = vld [vmem:[%s1348 + $0x4] sm:$0xf]
        %v1351 = vld [vmem:[%s1348 + $0x8] sm:$0xf]
        %v1352 = vld [vmem:[%s1348 + $0xc] sm:$0xf]
        %v1353 = vld [vmem:[%s1348 + $0x10] sm:$0xf]
        %v1354 = vld [vmem:[%s1348 + $0x14] sm:$0xf]
        %v1355 = vld [vmem:[%s1348 + $0x18] sm:$0xf]
        %v1356 = vld [vmem:[%s1348 + $0x1c] sm:$0xf]
        %v1357 = vld [vmem:[%s1348 + $0x20] sm:$0xf]
        %v1358 = vld [vmem:[%s1348 + $0x24] sm:$0xf]
        %v1359 = vld [vmem:[%s1348 + $0x28] sm:$0xf]
        %v1360 = vld [vmem:[%s1348 + $0x2c] sm:$0xf]
        %v1361 = vld [vmem:[%s1348 + $0x30] sm:$0xf]
        %v1362 = vld [vmem:[%s1348 + $0x34] sm:$0xf]
        %v1363 = vld [vmem:[%s1348 + $0x38] sm:$0xf]
        %v1364 = vld [vmem:[%s1348 + $0x3c] sm:$0xf]
        %v1365 = vld [vmem:[#allocation2 + $0xe0] sm:$0xff]
        %v1366 = vld [vmem:[#allocation2 + $0xe8] sm:$0xff]
        %v1367 = vld [vmem:[#allocation2 + $0xf0] sm:$0xff]
        %v1368 = vld [vmem:[#allocation2 + $0xf8] sm:$0xff]
        %v1369 = vld [vmem:[#allocation2 + $0x100] sm:$0xff]
        %v1370 = vld [vmem:[#allocation2 + $0x108] sm:$0xff]
        %v1371 = vld [vmem:[#allocation2 + $0x110] sm:$0xff]
        %v1388 = vunpack.c.l.b16 %v1349
        %v1389 = vunpack.c.l.b16 %v1350
        %v1390 = vunpack.c.l.b16 %v1351
        %v1391 = vunpack.c.l.b16 %v1352
        %v1392 = vunpack.c.l.b16 %v1353
        %v1393 = vunpack.c.l.b16 %v1354
        %v1394 = vunpack.c.l.b16 %v1355
        %v1395 = vunpack.c.l.b16 %v1356
        %v1396 = vunpack.c.l.b16 %v1357
        %v1397 = vunpack.c.l.b16 %v1358
        %v1398 = vunpack.c.l.b16 %v1359
        %v1399 = vunpack.c.l.b16 %v1360
        %v1400 = vunpack.c.l.b16 %v1361
        %v1401 = vunpack.c.l.b16 %v1362
        %v1402 = vunpack.c.l.b16 %v1363
        %v1403 = vunpack.c.l.b16 %v1364
        %v1404 = vpack.c.b16 %v1389, %v1388
        %v1405 = vpack.c.b16 %v1391, %v1390
        %v1406 = vpack.c.b16 %v1393, %v1392
        %v1407 = vpack.c.b16 %v1395, %v1394
        %v1408 = vpack.c.b16 %v1397, %v1396
        %v1409 = vpack.c.b16 %v1399, %v1398
        %v1410 = vpack.c.b16 %v1401, %v1400
        %v1411 = vpack.c.b16 %v1403, %v1402
        %1420 = vmatpush.bf16.msra.mxu0 %v1411
        %1421 = vmatpush.bf16.msra.mxu0 %v1410
        %1422 = vmatpush.bf16.msra.mxu0 %v1409
        %1423 = vmatpush.bf16.msra.mxu0 %v1408
        %1424 = vmatpush.bf16.msra.mxu0 %v1407
        %1425 = vmatpush.bf16.msra.mxu0 %v1406
        %1426 = vmatpush.bf16.msra.mxu0 %v1405
        %1427 = vmatpush.bf16.msra.mxu0 %v1404
        %1428 = vmatmul.bf16.gmra.mxu0 %v689
        %v1429 = vpop.f32.mrf.mxu0
        %v1430 = vadd.f32 0.0, %v1429
        %v1431 = vpop.f32.mrf.mxu0
        %v1432 = vadd.f32 0.0, %v1431
        %1433 = vmatmul.bf16.gmra.mxu0 %v690
        %v1434 = vpop.f32.mrf.mxu0
        %v1435 = vadd.f32 0.0, %v1434
        %v1436 = vpop.f32.mrf.mxu0
        %v1437 = vadd.f32 0.0, %v1436
        %1438 = vmatmul.bf16.gmra.mxu0 %v691
        %v1439 = vpop.f32.mrf.mxu0
        %v1440 = vadd.f32 0.0, %v1439
        %v1441 = vpop.f32.mrf.mxu0
        %v1442 = vadd.f32 0.0, %v1441
        %1443 = vmatmul.bf16.gmra.mxu0 %v692
        %v1444 = vpop.f32.mrf.mxu0
        %v1445 = vadd.f32 0.0, %v1444
        %v1446 = vpop.f32.mrf.mxu0
        %1447 = vdwg.mxu0
        %v1448 = vadd.f32 %v1365, %v1430
        %v1449 = vadd.f32 %v1366, %v1432
        %v1450 = vadd.f32 %v1367, %v1435
        %v1451 = vadd.f32 %v1368, %v1437
        %v1452 = vadd.f32 %v1369, %v1440
        %v1453 = vadd.f32 %v1370, %v1442
        %v1454 = vadd.f32 %v1371, %v1445
        %1455 = vst [vmem:[#allocation2 + $0xe0] sm:$0xff] %v1448
        %1456 = vst [vmem:[#allocation2 + $0xe8] sm:$0xff] %v1449
        %1457 = vst [vmem:[#allocation2 + $0xf0] sm:$0xff] %v1450
        %1458 = vst [vmem:[#allocation2 + $0xf8] sm:$0xff] %v1451
        %1459 = vst [vmem:[#allocation2 + $0x100] sm:$0xff] %v1452
        %1460 = vst [vmem:[#allocation2 + $0x108] sm:$0xff] %v1453
        %1461 = vst [vmem:[#allocation2 + $0x110] sm:$0xff] %v1454
        %v1462 = vld [vmem:[%s787 + $0xe0] sm:$0xff]
        %v1463 = vld [vmem:[%s787 + $0xe8] sm:$0xff]
        %v1464 = vld [vmem:[%s787 + $0xf0] sm:$0xff]
        %v1465 = vld [vmem:[%s787 + $0xf8] sm:$0xff]
        %v1466 = vld [vmem:[%s787 + $0x100] sm:$0xff]
        %v1467 = vld [vmem:[%s787 + $0x108] sm:$0xff]
        %v1468 = vld [vmem:[%s787 + $0x110] sm:$0xff]
        %1469 = vmatpush.bf16.msra.mxu0 %v1411
        %1470 = vmatpush.bf16.msra.mxu0 %v1410
        %1471 = vmatpush.bf16.msra.mxu0 %v1409
        %1472 = vmatpush.bf16.msra.mxu0 %v1408
        %1473 = vmatpush.bf16.msra.mxu0 %v1407
        %1474 = vmatpush.bf16.msra.mxu0 %v1406
        %1475 = vmatpush.bf16.msra.mxu0 %v1405
        %1476 = vmatpush.bf16.msra.mxu0 %v1404
        %1477 = vmatmul.bf16.gmra.mxu0 %v809
        %v1478 = vpop.f32.mrf.mxu0
        %v1479 = vadd.f32 0.0, %v1478
        %v1480 = vpop.f32.mrf.mxu0
        %v1481 = vadd.f32 0.0, %v1480
        %1482 = vmatmul.bf16.gmra.mxu0 %v810
        %v1483 = vpop.f32.mrf.mxu0
        %v1484 = vadd.f32 0.0, %v1483
        %v1485 = vpop.f32.mrf.mxu0
        %v1486 = vadd.f32 0.0, %v1485
        %1487 = vmatmul.bf16.gmra.mxu0 %v811
        %v1488 = vpop.f32.mrf.mxu0
        %v1489 = vadd.f32 0.0, %v1488
        %v1490 = vpop.f32.mrf.mxu0
        %v1491 = vadd.f32 0.0, %v1490
        %1492 = vmatmul.bf16.gmra.mxu0 %v812
        %v1493 = vpop.f32.mrf.mxu0
        %v1494 = vadd.f32 0.0, %v1493
        %v1495 = vpop.f32.mrf.mxu0
        %1496 = vdwg.mxu0
        %v1497 = vadd.f32 %v1462, %v1479
        %v1498 = vadd.f32 %v1463, %v1481
        %v1499 = vadd.f32 %v1464, %v1484
        %v1500 = vadd.f32 %v1465, %v1486
        %v1501 = vadd.f32 %v1466, %v1489
        %v1502 = vadd.f32 %v1467, %v1491
        %v1503 = vadd.f32 %v1468, %v1494
        %1504 = vst [vmem:[%s787 + $0xe0] sm:$0xff] %v1497
        %1505 = vst [vmem:[%s787 + $0xe8] sm:$0xff] %v1498
        %1506 = vst [vmem:[%s787 + $0xf0] sm:$0xff] %v1499
        %1507 = vst [vmem:[%s787 + $0xf8] sm:$0xff] %v1500
        %1508 = vst [vmem:[%s787 + $0x100] sm:$0xff] %v1501
        %1509 = vst [vmem:[%s787 + $0x108] sm:$0xff] %v1502
        %1510 = vst [vmem:[%s787 + $0x110] sm:$0xff] %v1503
        %s1511 = scalar_lea.vmem %s426, 320 [#allocation4]
        %v1512 = vld [vmem:[%s1511] sm:$0xf]
        %v1513 = vld [vmem:[%s1511 + $0x4] sm:$0xf]
        %v1514 = vld [vmem:[%s1511 + $0x8] sm:$0xf]
        %v1515 = vld [vmem:[%s1511 + $0xc] sm:$0xf]
        %v1516 = vld [vmem:[%s1511 + $0x10] sm:$0xf]
        %v1517 = vld [vmem:[%s1511 + $0x14] sm:$0xf]
        %v1518 = vld [vmem:[%s1511 + $0x18] sm:$0xf]
        %v1519 = vld [vmem:[%s1511 + $0x1c] sm:$0xf]
        %v1520 = vld [vmem:[%s1511 + $0x20] sm:$0xf]
        %v1521 = vld [vmem:[%s1511 + $0x24] sm:$0xf]
        %v1522 = vld [vmem:[%s1511 + $0x28] sm:$0xf]
        %v1523 = vld [vmem:[%s1511 + $0x2c] sm:$0xf]
        %v1524 = vld [vmem:[%s1511 + $0x30] sm:$0xf]
        %v1525 = vld [vmem:[%s1511 + $0x34] sm:$0xf]
        %v1526 = vld [vmem:[%s1511 + $0x38] sm:$0xf]
        %v1527 = vld [vmem:[%s1511 + $0x3c] sm:$0xf]
        %v1528 = vld [vmem:[#allocation2 + $0x118] sm:$0xff]
        %v1529 = vld [vmem:[#allocation2 + $0x120] sm:$0xff]
        %v1530 = vld [vmem:[#allocation2 + $0x128] sm:$0xff]
        %v1531 = vld [vmem:[#allocation2 + $0x130] sm:$0xff]
        %v1532 = vld [vmem:[#allocation2 + $0x138] sm:$0xff]
        %v1533 = vld [vmem:[#allocation2 + $0x140] sm:$0xff]
        %v1534 = vld [vmem:[#allocation2 + $0x148] sm:$0xff]
        %v1551 = vunpack.c.l.b16 %v1512
        %v1552 = vunpack.c.l.b16 %v1513
        %v1553 = vunpack.c.l.b16 %v1514
        %v1554 = vunpack.c.l.b16 %v1515
        %v1555 = vunpack.c.l.b16 %v1516
        %v1556 = vunpack.c.l.b16 %v1517
        %v1557 = vunpack.c.l.b16 %v1518
        %v1558 = vunpack.c.l.b16 %v1519
        %v1559 = vunpack.c.l.b16 %v1520
        %v1560 = vunpack.c.l.b16 %v1521
        %v1561 = vunpack.c.l.b16 %v1522
        %v1562 = vunpack.c.l.b16 %v1523
        %v1563 = vunpack.c.l.b16 %v1524
        %v1564 = vunpack.c.l.b16 %v1525
        %v1565 = vunpack.c.l.b16 %v1526
        %v1566 = vunpack.c.l.b16 %v1527
        %v1567 = vpack.c.b16 %v1552, %v1551
        %v1568 = vpack.c.b16 %v1554, %v1553
        %v1569 = vpack.c.b16 %v1556, %v1555
        %v1570 = vpack.c.b16 %v1558, %v1557
        %v1571 = vpack.c.b16 %v1560, %v1559
        %v1572 = vpack.c.b16 %v1562, %v1561
        %v1573 = vpack.c.b16 %v1564, %v1563
        %v1574 = vpack.c.b16 %v1566, %v1565
        %1583 = vmatpush.bf16.msra.mxu0 %v1574
        %1584 = vmatpush.bf16.msra.mxu0 %v1573
        %1585 = vmatpush.bf16.msra.mxu0 %v1572
        %1586 = vmatpush.bf16.msra.mxu0 %v1571
        %1587 = vmatpush.bf16.msra.mxu0 %v1570
        %1588 = vmatpush.bf16.msra.mxu0 %v1569
        %1589 = vmatpush.bf16.msra.mxu0 %v1568
        %1590 = vmatpush.bf16.msra.mxu0 %v1567
        %1591 = vmatmul.bf16.gmra.mxu0 %v689
        %v1592 = vpop.f32.mrf.mxu0
        %v1593 = vadd.f32 0.0, %v1592
        %v1594 = vpop.f32.mrf.mxu0
        %v1595 = vadd.f32 0.0, %v1594
        %1596 = vmatmul.bf16.gmra.mxu0 %v690
        %v1597 = vpop.f32.mrf.mxu0
        %v1598 = vadd.f32 0.0, %v1597
        %v1599 = vpop.f32.mrf.mxu0
        %v1600 = vadd.f32 0.0, %v1599
        %1601 = vmatmul.bf16.gmra.mxu0 %v691
        %v1602 = vpop.f32.mrf.mxu0
        %v1603 = vadd.f32 0.0, %v1602
        %v1604 = vpop.f32.mrf.mxu0
        %v1605 = vadd.f32 0.0, %v1604
        %1606 = vmatmul.bf16.gmra.mxu0 %v692
        %v1607 = vpop.f32.mrf.mxu0
        %v1608 = vadd.f32 0.0, %v1607
        %v1609 = vpop.f32.mrf.mxu0
        %1610 = vdwg.mxu0
        %v1611 = vadd.f32 %v1528, %v1593
        %v1612 = vadd.f32 %v1529, %v1595
        %v1613 = vadd.f32 %v1530, %v1598
        %v1614 = vadd.f32 %v1531, %v1600
        %v1615 = vadd.f32 %v1532, %v1603
        %v1616 = vadd.f32 %v1533, %v1605
        %v1617 = vadd.f32 %v1534, %v1608
        %1618 = vst [vmem:[#allocation2 + $0x118] sm:$0xff] %v1611
        %1619 = vst [vmem:[#allocation2 + $0x120] sm:$0xff] %v1612
        %1620 = vst [vmem:[#allocation2 + $0x128] sm:$0xff] %v1613
        %1621 = vst [vmem:[#allocation2 + $0x130] sm:$0xff] %v1614
        %1622 = vst [vmem:[#allocation2 + $0x138] sm:$0xff] %v1615
        %1623 = vst [vmem:[#allocation2 + $0x140] sm:$0xff] %v1616
        %1624 = vst [vmem:[#allocation2 + $0x148] sm:$0xff] %v1617
        %v1625 = vld [vmem:[%s787 + $0x118] sm:$0xff]
        %v1626 = vld [vmem:[%s787 + $0x120] sm:$0xff]
        %v1627 = vld [vmem:[%s787 + $0x128] sm:$0xff]
        %v1628 = vld [vmem:[%s787 + $0x130] sm:$0xff]
        %v1629 = vld [vmem:[%s787 + $0x138] sm:$0xff]
        %v1630 = vld [vmem:[%s787 + $0x140] sm:$0xff]
        %v1631 = vld [vmem:[%s787 + $0x148] sm:$0xff]
        %1632 = vmatpush.bf16.msra.mxu0 %v1574
        %1633 = vmatpush.bf16.msra.mxu0 %v1573
        %1634 = vmatpush.bf16.msra.mxu0 %v1572
        %1635 = vmatpush.bf16.msra.mxu0 %v1571
        %1636 = vmatpush.bf16.msra.mxu0 %v1570
        %1637 = vmatpush.bf16.msra.mxu0 %v1569
        %1638 = vmatpush.bf16.msra.mxu0 %v1568
        %1639 = vmatpush.bf16.msra.mxu0 %v1567
        %1640 = vmatmul.bf16.gmra.mxu0 %v809
        %v1641 = vpop.f32.mrf.mxu0
        %v1642 = vadd.f32 0.0, %v1641
        %v1643 = vpop.f32.mrf.mxu0
        %v1644 = vadd.f32 0.0, %v1643
        %1645 = vmatmul.bf16.gmra.mxu0 %v810
        %v1646 = vpop.f32.mrf.mxu0
        %v1647 = vadd.f32 0.0, %v1646
        %v1648 = vpop.f32.mrf.mxu0
        %v1649 = vadd.f32 0.0, %v1648
        %1650 = vmatmul.bf16.gmra.mxu0 %v811
        %v1651 = vpop.f32.mrf.mxu0
        %v1652 = vadd.f32 0.0, %v1651
        %v1653 = vpop.f32.mrf.mxu0
        %v1654 = vadd.f32 0.0, %v1653
        %1655 = vmatmul.bf16.gmra.mxu0 %v812
        %v1656 = vpop.f32.mrf.mxu0
        %v1657 = vadd.f32 0.0, %v1656
        %v1658 = vpop.f32.mrf.mxu0
        %1659 = vdwg.mxu0
        %v1660 = vadd.f32 %v1625, %v1642
        %v1661 = vadd.f32 %v1626, %v1644
        %v1662 = vadd.f32 %v1627, %v1647
        %v1663 = vadd.f32 %v1628, %v1649
        %v1664 = vadd.f32 %v1629, %v1652
        %v1665 = vadd.f32 %v1630, %v1654
        %v1666 = vadd.f32 %v1631, %v1657
        %1667 = vst [vmem:[%s787 + $0x118] sm:$0xff] %v1660
        %1668 = vst [vmem:[%s787 + $0x120] sm:$0xff] %v1661
        %1669 = vst [vmem:[%s787 + $0x128] sm:$0xff] %v1662
        %1670 = vst [vmem:[%s787 + $0x130] sm:$0xff] %v1663
        %1671 = vst [vmem:[%s787 + $0x138] sm:$0xff] %v1664
        %1672 = vst [vmem:[%s787 + $0x140] sm:$0xff] %v1665
        %1673 = vst [vmem:[%s787 + $0x148] sm:$0xff] %v1666
        %s1674 = scalar_lea.vmem %s426, 384 [#allocation4]
        %v1675 = vld [vmem:[%s1674] sm:$0xf]
        %v1676 = vld [vmem:[%s1674 + $0x4] sm:$0xf]
        %v1677 = vld [vmem:[%s1674 + $0x8] sm:$0xf]
        %v1678 = vld [vmem:[%s1674 + $0xc] sm:$0xf]
        %v1679 = vld [vmem:[%s1674 + $0x10] sm:$0xf]
        %v1680 = vld [vmem:[%s1674 + $0x14] sm:$0xf]
        %v1681 = vld [vmem:[%s1674 + $0x18] sm:$0xf]
        %v1682 = vld [vmem:[%s1674 + $0x1c] sm:$0xf]
        %v1683 = vld [vmem:[%s1674 + $0x20] sm:$0xf]
        %v1684 = vld [vmem:[%s1674 + $0x24] sm:$0xf]
        %v1685 = vld [vmem:[%s1674 + $0x28] sm:$0xf]
        %v1686 = vld [vmem:[%s1674 + $0x2c] sm:$0xf]
        %v1687 = vld [vmem:[%s1674 + $0x30] sm:$0xf]
        %v1688 = vld [vmem:[%s1674 + $0x34] sm:$0xf]
        %v1689 = vld [vmem:[%s1674 + $0x38] sm:$0xf]
        %v1690 = vld [vmem:[%s1674 + $0x3c] sm:$0xf]
        %v1691 = vld [vmem:[#allocation2 + $0x150] sm:$0xff]
        %v1692 = vld [vmem:[#allocation2 + $0x158] sm:$0xff]
        %v1693 = vld [vmem:[#allocation2 + $0x160] sm:$0xff]
        %v1694 = vld [vmem:[#allocation2 + $0x168] sm:$0xff]
        %v1695 = vld [vmem:[#allocation2 + $0x170] sm:$0xff]
        %v1696 = vld [vmem:[#allocation2 + $0x178] sm:$0xff]
        %v1697 = vld [vmem:[#allocation2 + $0x180] sm:$0xff]
        %v1714 = vunpack.c.l.b16 %v1675
        %v1715 = vunpack.c.l.b16 %v1676
        %v1716 = vunpack.c.l.b16 %v1677
        %v1717 = vunpack.c.l.b16 %v1678
        %v1718 = vunpack.c.l.b16 %v1679
        %v1719 = vunpack.c.l.b16 %v1680
        %v1720 = vunpack.c.l.b16 %v1681
        %v1721 = vunpack.c.l.b16 %v1682
        %v1722 = vunpack.c.l.b16 %v1683
        %v1723 = vunpack.c.l.b16 %v1684
        %v1724 = vunpack.c.l.b16 %v1685
        %v1725 = vunpack.c.l.b16 %v1686
        %v1726 = vunpack.c.l.b16 %v1687
        %v1727 = vunpack.c.l.b16 %v1688
        %v1728 = vunpack.c.l.b16 %v1689
        %v1729 = vunpack.c.l.b16 %v1690
        %v1730 = vpack.c.b16 %v1715, %v1714
        %v1731 = vpack.c.b16 %v1717, %v1716
        %v1732 = vpack.c.b16 %v1719, %v1718
        %v1733 = vpack.c.b16 %v1721, %v1720
        %v1734 = vpack.c.b16 %v1723, %v1722
        %v1735 = vpack.c.b16 %v1725, %v1724
        %v1736 = vpack.c.b16 %v1727, %v1726
        %v1737 = vpack.c.b16 %v1729, %v1728
        %1746 = vmatpush.bf16.msra.mxu0 %v1737
        %1747 = vmatpush.bf16.msra.mxu0 %v1736
        %1748 = vmatpush.bf16.msra.mxu0 %v1735
        %1749 = vmatpush.bf16.msra.mxu0 %v1734
        %1750 = vmatpush.bf16.msra.mxu0 %v1733
        %1751 = vmatpush.bf16.msra.mxu0 %v1732
        %1752 = vmatpush.bf16.msra.mxu0 %v1731
        %1753 = vmatpush.bf16.msra.mxu0 %v1730
        %1754 = vmatmul.bf16.gmra.mxu0 %v689
        %v1755 = vpop.f32.mrf.mxu0
        %v1756 = vadd.f32 0.0, %v1755
        %v1757 = vpop.f32.mrf.mxu0
        %v1758 = vadd.f32 0.0, %v1757
        %1759 = vmatmul.bf16.gmra.mxu0 %v690
        %v1760 = vpop.f32.mrf.mxu0
        %v1761 = vadd.f32 0.0, %v1760
        %v1762 = vpop.f32.mrf.mxu0
        %v1763 = vadd.f32 0.0, %v1762
        %1764 = vmatmul.bf16.gmra.mxu0 %v691
        %v1765 = vpop.f32.mrf.mxu0
        %v1766 = vadd.f32 0.0, %v1765
        %v1767 = vpop.f32.mrf.mxu0
        %v1768 = vadd.f32 0.0, %v1767
        %1769 = vmatmul.bf16.gmra.mxu0 %v692
        %v1770 = vpop.f32.mrf.mxu0
        %v1771 = vadd.f32 0.0, %v1770
        %v1772 = vpop.f32.mrf.mxu0
        %1773 = vdwg.mxu0
        %v1774 = vadd.f32 %v1691, %v1756
        %v1775 = vadd.f32 %v1692, %v1758
        %v1776 = vadd.f32 %v1693, %v1761
        %v1777 = vadd.f32 %v1694, %v1763
        %v1778 = vadd.f32 %v1695, %v1766
        %v1779 = vadd.f32 %v1696, %v1768
        %v1780 = vadd.f32 %v1697, %v1771
        %1781 = vst [vmem:[#allocation2 + $0x150] sm:$0xff] %v1774
        %1782 = vst [vmem:[#allocation2 + $0x158] sm:$0xff] %v1775
        %1783 = vst [vmem:[#allocation2 + $0x160] sm:$0xff] %v1776
        %1784 = vst [vmem:[#allocation2 + $0x168] sm:$0xff] %v1777
        %1785 = vst [vmem:[#allocation2 + $0x170] sm:$0xff] %v1778
        %1786 = vst [vmem:[#allocation2 + $0x178] sm:$0xff] %v1779
        %1787 = vst [vmem:[#allocation2 + $0x180] sm:$0xff] %v1780
        %v1788 = vld [vmem:[%s787 + $0x150] sm:$0xff]
        %v1789 = vld [vmem:[%s787 + $0x158] sm:$0xff]
        %v1790 = vld [vmem:[%s787 + $0x160] sm:$0xff]
        %v1791 = vld [vmem:[%s787 + $0x168] sm:$0xff]
        %v1792 = vld [vmem:[%s787 + $0x170] sm:$0xff]
        %v1793 = vld [vmem:[%s787 + $0x178] sm:$0xff]
        %v1794 = vld [vmem:[%s787 + $0x180] sm:$0xff]
        %1795 = vmatpush.bf16.msra.mxu0 %v1737
        %1796 = vmatpush.bf16.msra.mxu0 %v1736
        %1797 = vmatpush.bf16.msra.mxu0 %v1735
        %1798 = vmatpush.bf16.msra.mxu0 %v1734
        %1799 = vmatpush.bf16.msra.mxu0 %v1733
        %1800 = vmatpush.bf16.msra.mxu0 %v1732
        %1801 = vmatpush.bf16.msra.mxu0 %v1731
        %1802 = vmatpush.bf16.msra.mxu0 %v1730
        %1803 = vmatmul.bf16.gmra.mxu0 %v809
        %v1804 = vpop.f32.mrf.mxu0
        %v1805 = vadd.f32 0.0, %v1804
        %v1806 = vpop.f32.mrf.mxu0
        %v1807 = vadd.f32 0.0, %v1806
        %1808 = vmatmul.bf16.gmra.mxu0 %v810
        %v1809 = vpop.f32.mrf.mxu0
        %v1810 = vadd.f32 0.0, %v1809
        %v1811 = vpop.f32.mrf.mxu0
        %v1812 = vadd.f32 0.0, %v1811
        %1813 = vmatmul.bf16.gmra.mxu0 %v811
        %v1814 = vpop.f32.mrf.mxu0
        %v1815 = vadd.f32 0.0, %v1814
        %v1816 = vpop.f32.mrf.mxu0
        %v1817 = vadd.f32 0.0, %v1816
        %1818 = vmatmul.bf16.gmra.mxu0 %v812
        %v1819 = vpop.f32.mrf.mxu0
        %v1820 = vadd.f32 0.0, %v1819
        %v1821 = vpop.f32.mrf.mxu0
        %1822 = vdwg.mxu0
        %v1823 = vadd.f32 %v1788, %v1805
        %v1824 = vadd.f32 %v1789, %v1807
        %v1825 = vadd.f32 %v1790, %v1810
        %v1826 = vadd.f32 %v1791, %v1812
        %v1827 = vadd.f32 %v1792, %v1815
        %v1828 = vadd.f32 %v1793, %v1817
        %v1829 = vadd.f32 %v1794, %v1820
        %1830 = vst [vmem:[%s787 + $0x150] sm:$0xff] %v1823
        %1831 = vst [vmem:[%s787 + $0x158] sm:$0xff] %v1824
        %1832 = vst [vmem:[%s787 + $0x160] sm:$0xff] %v1825
        %1833 = vst [vmem:[%s787 + $0x168] sm:$0xff] %v1826
        %1834 = vst [vmem:[%s787 + $0x170] sm:$0xff] %v1827
        %1835 = vst [vmem:[%s787 + $0x178] sm:$0xff] %v1828
        %1836 = vst [vmem:[%s787 + $0x180] sm:$0xff] %v1829
        %s1837 = scalar_lea.vmem %s426, 448 [#allocation4]
        %v1838 = vld [vmem:[%s1837] sm:$0xf]
        %v1839 = vld [vmem:[%s1837 + $0x4] sm:$0xf]
        %v1840 = vld [vmem:[%s1837 + $0x8] sm:$0xf]
        %v1841 = vld [vmem:[%s1837 + $0xc] sm:$0xf]
        %v1842 = vld [vmem:[%s1837 + $0x10] sm:$0xf]
        %v1843 = vld [vmem:[%s1837 + $0x14] sm:$0xf]
        %v1844 = vld [vmem:[%s1837 + $0x18] sm:$0xf]
        %v1845 = vld [vmem:[%s1837 + $0x1c] sm:$0xf]
        %v1846 = vld [vmem:[%s1837 + $0x20] sm:$0xf]
        %v1847 = vld [vmem:[%s1837 + $0x24] sm:$0xf]
        %v1848 = vld [vmem:[%s1837 + $0x28] sm:$0xf]
        %v1849 = vld [vmem:[%s1837 + $0x2c] sm:$0xf]
        %v1850 = vld [vmem:[%s1837 + $0x30] sm:$0xf]
        %v1851 = vld [vmem:[%s1837 + $0x34] sm:$0xf]
        %v1852 = vld [vmem:[%s1837 + $0x38] sm:$0xf]
        %v1853 = vld [vmem:[%s1837 + $0x3c] sm:$0xf]
        %v1854 = vld [vmem:[#allocation2 + $0x188] sm:$0xff]
        %v1855 = vld [vmem:[#allocation2 + $0x190] sm:$0xff]
        %v1856 = vld [vmem:[#allocation2 + $0x198] sm:$0xff]
        %v1857 = vld [vmem:[#allocation2 + $0x1a0] sm:$0xff]
        %v1858 = vld [vmem:[#allocation2 + $0x1a8] sm:$0xff]
        %v1859 = vld [vmem:[#allocation2 + $0x1b0] sm:$0xff]
        %v1860 = vld [vmem:[#allocation2 + $0x1b8] sm:$0xff]
        %v1877 = vunpack.c.l.b16 %v1838
        %v1878 = vunpack.c.l.b16 %v1839
        %v1879 = vunpack.c.l.b16 %v1840
        %v1880 = vunpack.c.l.b16 %v1841
        %v1881 = vunpack.c.l.b16 %v1842
        %v1882 = vunpack.c.l.b16 %v1843
        %v1883 = vunpack.c.l.b16 %v1844
        %v1884 = vunpack.c.l.b16 %v1845
        %v1885 = vunpack.c.l.b16 %v1846
        %v1886 = vunpack.c.l.b16 %v1847
        %v1887 = vunpack.c.l.b16 %v1848
        %v1888 = vunpack.c.l.b16 %v1849
        %v1889 = vunpack.c.l.b16 %v1850
        %v1890 = vunpack.c.l.b16 %v1851
        %v1891 = vunpack.c.l.b16 %v1852
        %v1892 = vunpack.c.l.b16 %v1853
        %v1893 = vpack.c.b16 %v1878, %v1877
        %v1894 = vpack.c.b16 %v1880, %v1879
        %v1895 = vpack.c.b16 %v1882, %v1881
        %v1896 = vpack.c.b16 %v1884, %v1883
        %v1897 = vpack.c.b16 %v1886, %v1885
        %v1898 = vpack.c.b16 %v1888, %v1887
        %v1899 = vpack.c.b16 %v1890, %v1889
        %v1900 = vpack.c.b16 %v1892, %v1891
        %1909 = vmatpush.bf16.msra.mxu0 %v1900
        %1910 = vmatpush.bf16.msra.mxu0 %v1899
        %1911 = vmatpush.bf16.msra.mxu0 %v1898
        %1912 = vmatpush.bf16.msra.mxu0 %v1897
        %1913 = vmatpush.bf16.msra.mxu0 %v1896
        %1914 = vmatpush.bf16.msra.mxu0 %v1895
        %1915 = vmatpush.bf16.msra.mxu0 %v1894
        %1916 = vmatpush.bf16.msra.mxu0 %v1893
        %1917 = vmatmul.bf16.gmra.mxu0 %v689
        %v1918 = vpop.f32.mrf.mxu0
        %v1919 = vadd.f32 0.0, %v1918
        %v1920 = vpop.f32.mrf.mxu0
        %v1921 = vadd.f32 0.0, %v1920
        %1922 = vmatmul.bf16.gmra.mxu0 %v690
        %v1923 = vpop.f32.mrf.mxu0
        %v1924 = vadd.f32 0.0, %v1923
        %v1925 = vpop.f32.mrf.mxu0
        %v1926 = vadd.f32 0.0, %v1925
        %1927 = vmatmul.bf16.gmra.mxu0 %v691
        %v1928 = vpop.f32.mrf.mxu0
        %v1929 = vadd.f32 0.0, %v1928
        %v1930 = vpop.f32.mrf.mxu0
        %v1931 = vadd.f32 0.0, %v1930
        %1932 = vmatmul.bf16.gmra.mxu0 %v692
        %v1933 = vpop.f32.mrf.mxu0
        %v1934 = vadd.f32 0.0, %v1933
        %v1935 = vpop.f32.mrf.mxu0
        %1936 = vdwg.mxu0
        %v1937 = vadd.f32 %v1854, %v1919
        %v1938 = vadd.f32 %v1855, %v1921
        %v1939 = vadd.f32 %v1856, %v1924
        %v1940 = vadd.f32 %v1857, %v1926
        %v1941 = vadd.f32 %v1858, %v1929
        %v1942 = vadd.f32 %v1859, %v1931
        %v1943 = vadd.f32 %v1860, %v1934
        %1944 = vst [vmem:[#allocation2 + $0x188] sm:$0xff] %v1937
        %1945 = vst [vmem:[#allocation2 + $0x190] sm:$0xff] %v1938
        %1946 = vst [vmem:[#allocation2 + $0x198] sm:$0xff] %v1939
        %1947 = vst [vmem:[#allocation2 + $0x1a0] sm:$0xff] %v1940
        %1948 = vst [vmem:[#allocation2 + $0x1a8] sm:$0xff] %v1941
        %1949 = vst [vmem:[#allocation2 + $0x1b0] sm:$0xff] %v1942
        %1950 = vst [vmem:[#allocation2 + $0x1b8] sm:$0xff] %v1943
        %v1951 = vld [vmem:[%s787 + $0x188] sm:$0xff]
        %v1952 = vld [vmem:[%s787 + $0x190] sm:$0xff]
        %v1953 = vld [vmem:[%s787 + $0x198] sm:$0xff]
        %v1954 = vld [vmem:[%s787 + $0x1a0] sm:$0xff]
        %v1955 = vld [vmem:[%s787 + $0x1a8] sm:$0xff]
        %v1956 = vld [vmem:[%s787 + $0x1b0] sm:$0xff]
        %v1957 = vld [vmem:[%s787 + $0x1b8] sm:$0xff]
        %1958 = vmatpush.bf16.msra.mxu0 %v1900
        %1959 = vmatpush.bf16.msra.mxu0 %v1899
        %1960 = vmatpush.bf16.msra.mxu0 %v1898
        %1961 = vmatpush.bf16.msra.mxu0 %v1897
        %1962 = vmatpush.bf16.msra.mxu0 %v1896
        %1963 = vmatpush.bf16.msra.mxu0 %v1895
        %1964 = vmatpush.bf16.msra.mxu0 %v1894
        %1965 = vmatpush.bf16.msra.mxu0 %v1893
        %1966 = vmatmul.bf16.gmra.mxu0 %v809
        %v1967 = vpop.f32.mrf.mxu0
        %v1968 = vadd.f32 0.0, %v1967
        %v1969 = vpop.f32.mrf.mxu0
        %v1970 = vadd.f32 0.0, %v1969
        %1971 = vmatmul.bf16.gmra.mxu0 %v810
        %v1972 = vpop.f32.mrf.mxu0
        %v1973 = vadd.f32 0.0, %v1972
        %v1974 = vpop.f32.mrf.mxu0
        %v1975 = vadd.f32 0.0, %v1974
        %1976 = vmatmul.bf16.gmra.mxu0 %v811
        %v1977 = vpop.f32.mrf.mxu0
        %v1978 = vadd.f32 0.0, %v1977
        %v1979 = vpop.f32.mrf.mxu0
        %v1980 = vadd.f32 0.0, %v1979
        %1981 = vmatmul.bf16.gmra.mxu0 %v812
        %v1982 = vpop.f32.mrf.mxu0
        %v1983 = vadd.f32 0.0, %v1982
        %v1984 = vpop.f32.mrf.mxu0
        %1985 = vdwg.mxu0
        %v1986 = vadd.f32 %v1951, %v1968
        %v1987 = vadd.f32 %v1952, %v1970
        %v1988 = vadd.f32 %v1953, %v1973
        %v1989 = vadd.f32 %v1954, %v1975
        %v1990 = vadd.f32 %v1955, %v1978
        %v1991 = vadd.f32 %v1956, %v1980
        %v1992 = vadd.f32 %v1957, %v1983
        %1993 = vst [vmem:[%s787 + $0x188] sm:$0xff] %v1986
        %1994 = vst [vmem:[%s787 + $0x190] sm:$0xff] %v1987
        %1995 = vst [vmem:[%s787 + $0x198] sm:$0xff] %v1988
        %1996 = vst [vmem:[%s787 + $0x1a0] sm:$0xff] %v1989
        %1997 = vst [vmem:[%s787 + $0x1a8] sm:$0xff] %v1990
        %1998 = vst [vmem:[%s787 + $0x1b0] sm:$0xff] %v1991
        %1999 = vst [vmem:[%s787 + $0x1b8] sm:$0xff] %v1992
        %s2000 = scalar_lea.vmem %s426, 512 [#allocation4]
        %v2001 = vld [vmem:[%s2000] sm:$0xf]
        %v2002 = vld [vmem:[%s2000 + $0x4] sm:$0xf]
        %v2003 = vld [vmem:[%s2000 + $0x8] sm:$0xf]
        %v2004 = vld [vmem:[%s2000 + $0xc] sm:$0xf]
        %v2005 = vld [vmem:[%s2000 + $0x10] sm:$0xf]
        %v2006 = vld [vmem:[%s2000 + $0x14] sm:$0xf]
        %v2007 = vld [vmem:[%s2000 + $0x18] sm:$0xf]
        %v2008 = vld [vmem:[%s2000 + $0x1c] sm:$0xf]
        %v2009 = vld [vmem:[%s2000 + $0x20] sm:$0xf]
        %v2010 = vld [vmem:[%s2000 + $0x24] sm:$0xf]
        %v2011 = vld [vmem:[%s2000 + $0x28] sm:$0xf]
        %v2012 = vld [vmem:[%s2000 + $0x2c] sm:$0xf]
        %v2013 = vld [vmem:[%s2000 + $0x30] sm:$0xf]
        %v2014 = vld [vmem:[%s2000 + $0x34] sm:$0xf]
        %v2015 = vld [vmem:[%s2000 + $0x38] sm:$0xf]
        %v2016 = vld [vmem:[%s2000 + $0x3c] sm:$0xf]
        %v2017 = vld [vmem:[#allocation2 + $0x1c0] sm:$0xff]
        %v2018 = vld [vmem:[#allocation2 + $0x1c8] sm:$0xff]
        %v2019 = vld [vmem:[#allocation2 + $0x1d0] sm:$0xff]
        %v2020 = vld [vmem:[#allocation2 + $0x1d8] sm:$0xff]
        %v2021 = vld [vmem:[#allocation2 + $0x1e0] sm:$0xff]
        %v2022 = vld [vmem:[#allocation2 + $0x1e8] sm:$0xff]
        %v2023 = vld [vmem:[#allocation2 + $0x1f0] sm:$0xff]
        %v2040 = vunpack.c.l.b16 %v2001
        %v2041 = vunpack.c.l.b16 %v2002
        %v2042 = vunpack.c.l.b16 %v2003
        %v2043 = vunpack.c.l.b16 %v2004
        %v2044 = vunpack.c.l.b16 %v2005
        %v2045 = vunpack.c.l.b16 %v2006
        %v2046 = vunpack.c.l.b16 %v2007
        %v2047 = vunpack.c.l.b16 %v2008
        %v2048 = vunpack.c.l.b16 %v2009
        %v2049 = vunpack.c.l.b16 %v2010
        %v2050 = vunpack.c.l.b16 %v2011
        %v2051 = vunpack.c.l.b16 %v2012
        %v2052 = vunpack.c.l.b16 %v2013
        %v2053 = vunpack.c.l.b16 %v2014
        %v2054 = vunpack.c.l.b16 %v2015
        %v2055 = vunpack.c.l.b16 %v2016
        %v2056 = vpack.c.b16 %v2041, %v2040
        %v2057 = vpack.c.b16 %v2043, %v2042
        %v2058 = vpack.c.b16 %v2045, %v2044
        %v2059 = vpack.c.b16 %v2047, %v2046
        %v2060 = vpack.c.b16 %v2049, %v2048
        %v2061 = vpack.c.b16 %v2051, %v2050
        %v2062 = vpack.c.b16 %v2053, %v2052
        %v2063 = vpack.c.b16 %v2055, %v2054
        %2072 = vmatpush.bf16.msra.mxu0 %v2063
        %2073 = vmatpush.bf16.msra.mxu0 %v2062
        %2074 = vmatpush.bf16.msra.mxu0 %v2061
        %2075 = vmatpush.bf16.msra.mxu0 %v2060
        %2076 = vmatpush.bf16.msra.mxu0 %v2059
        %2077 = vmatpush.bf16.msra.mxu0 %v2058
        %2078 = vmatpush.bf16.msra.mxu0 %v2057
        %2079 = vmatpush.bf16.msra.mxu0 %v2056
        %2080 = vmatmul.bf16.gmra.mxu0 %v689
        %v2081 = vpop.f32.mrf.mxu0
        %v2082 = vadd.f32 0.0, %v2081
        %v2083 = vpop.f32.mrf.mxu0
        %v2084 = vadd.f32 0.0, %v2083
        %2085 = vmatmul.bf16.gmra.mxu0 %v690
        %v2086 = vpop.f32.mrf.mxu0
        %v2087 = vadd.f32 0.0, %v2086
        %v2088 = vpop.f32.mrf.mxu0
        %v2089 = vadd.f32 0.0, %v2088
        %2090 = vmatmul.bf16.gmra.mxu0 %v691
        %v2091 = vpop.f32.mrf.mxu0
        %v2092 = vadd.f32 0.0, %v2091
        %v2093 = vpop.f32.mrf.mxu0
        %v2094 = vadd.f32 0.0, %v2093
        %2095 = vmatmul.bf16.gmra.mxu0 %v692
        %v2096 = vpop.f32.mrf.mxu0
        %v2097 = vadd.f32 0.0, %v2096
        %v2098 = vpop.f32.mrf.mxu0
        %2099 = vdwg.mxu0
        %v2100 = vadd.f32 %v2017, %v2082
        %v2101 = vadd.f32 %v2018, %v2084
        %v2102 = vadd.f32 %v2019, %v2087
        %v2103 = vadd.f32 %v2020, %v2089
        %v2104 = vadd.f32 %v2021, %v2092
        %v2105 = vadd.f32 %v2022, %v2094
        %v2106 = vadd.f32 %v2023, %v2097
        %2107 = vst [vmem:[#allocation2 + $0x1c0] sm:$0xff] %v2100
        %2108 = vst [vmem:[#allocation2 + $0x1c8] sm:$0xff] %v2101
        %2109 = vst [vmem:[#allocation2 + $0x1d0] sm:$0xff] %v2102
        %2110 = vst [vmem:[#allocation2 + $0x1d8] sm:$0xff] %v2103
        %2111 = vst [vmem:[#allocation2 + $0x1e0] sm:$0xff] %v2104
        %2112 = vst [vmem:[#allocation2 + $0x1e8] sm:$0xff] %v2105
        %2113 = vst [vmem:[#allocation2 + $0x1f0] sm:$0xff] %v2106
        %v2114 = vld [vmem:[%s787 + $0x1c0] sm:$0xff]
        %v2115 = vld [vmem:[%s787 + $0x1c8] sm:$0xff]
        %v2116 = vld [vmem:[%s787 + $0x1d0] sm:$0xff]
        %v2117 = vld [vmem:[%s787 + $0x1d8] sm:$0xff]
        %v2118 = vld [vmem:[%s787 + $0x1e0] sm:$0xff]
        %v2119 = vld [vmem:[%s787 + $0x1e8] sm:$0xff]
        %v2120 = vld [vmem:[%s787 + $0x1f0] sm:$0xff]
        %2121 = vmatpush.bf16.msra.mxu0 %v2063
        %2122 = vmatpush.bf16.msra.mxu0 %v2062
        %2123 = vmatpush.bf16.msra.mxu0 %v2061
        %2124 = vmatpush.bf16.msra.mxu0 %v2060
        %2125 = vmatpush.bf16.msra.mxu0 %v2059
        %2126 = vmatpush.bf16.msra.mxu0 %v2058
        %2127 = vmatpush.bf16.msra.mxu0 %v2057
        %2128 = vmatpush.bf16.msra.mxu0 %v2056
        %2129 = vmatmul.bf16.gmra.mxu0 %v809
        %v2130 = vpop.f32.mrf.mxu0
        %v2131 = vadd.f32 0.0, %v2130
        %v2132 = vpop.f32.mrf.mxu0
        %v2133 = vadd.f32 0.0, %v2132
        %2134 = vmatmul.bf16.gmra.mxu0 %v810
        %v2135 = vpop.f32.mrf.mxu0
        %v2136 = vadd.f32 0.0, %v2135
        %v2137 = vpop.f32.mrf.mxu0
        %v2138 = vadd.f32 0.0, %v2137
        %2139 = vmatmul.bf16.gmra.mxu0 %v811
        %v2140 = vpop.f32.mrf.mxu0
        %v2141 = vadd.f32 0.0, %v2140
        %v2142 = vpop.f32.mrf.mxu0
        %v2143 = vadd.f32 0.0, %v2142
        %2144 = vmatmul.bf16.gmra.mxu0 %v812
        %v2145 = vpop.f32.mrf.mxu0
        %v2146 = vadd.f32 0.0, %v2145
        %v2147 = vpop.f32.mrf.mxu0
        %2148 = vdwg.mxu0
        %v2149 = vadd.f32 %v2114, %v2131
        %v2150 = vadd.f32 %v2115, %v2133
        %v2151 = vadd.f32 %v2116, %v2136
        %v2152 = vadd.f32 %v2117, %v2138
        %v2153 = vadd.f32 %v2118, %v2141
        %v2154 = vadd.f32 %v2119, %v2143
        %v2155 = vadd.f32 %v2120, %v2146
        %2156 = vst [vmem:[%s787 + $0x1c0] sm:$0xff] %v2149
        %2157 = vst [vmem:[%s787 + $0x1c8] sm:$0xff] %v2150
        %2158 = vst [vmem:[%s787 + $0x1d0] sm:$0xff] %v2151
        %2159 = vst [vmem:[%s787 + $0x1d8] sm:$0xff] %v2152
        %2160 = vst [vmem:[%s787 + $0x1e0] sm:$0xff] %v2153
        %2161 = vst [vmem:[%s787 + $0x1e8] sm:$0xff] %v2154
        %2162 = vst [vmem:[%s787 + $0x1f0] sm:$0xff] %v2155
        %p2163 = scmp.eq.s32.totalorder %s31, 1
        // Predicated region
        $region94: #{tpu_custom_call.1} parent=80 // pred_check
          %p2164 = pneg %p2163
        $region95: #{tpu_custom_call.1} parent=80 // pred_check_branch
          %2166 = sbr.rel (%p2164) target = $region97
        $region96: #{tpu_custom_call.1} parent=80 // pred_region
          %v2167 = vld [vmem:[%s3] sm:$0x1]
          %v2168 = vld [vmem:[%s5] sm:$0x1]
          %v2169 = vld [vmem:[%s4] sm:$0xf]
          %v2170 = vld [vmem:[%s4 + $0x4] sm:$0xf]
          %v2171 = vld [vmem:[%s4 + $0x8] sm:$0xf]
          %v2172 = vld [vmem:[%s4 + $0xc] sm:$0xf]
          %v2173 = vld [vmem:[%s4 + $0x10] sm:$0xf]
          %v2174 = vld [vmem:[%s4 + $0x14] sm:$0xf]
          %v2175 = vld [vmem:[%s4 + $0x18] sm:$0xf]
          %v2176 = vld [vmem:[%s4 + $0x1c] sm:$0xf]
          %v2177 = vld [vmem:[%s4 + $0x20] sm:$0xf]
          %v2178 = vld [vmem:[%s4 + $0x24] sm:$0xf]
          %v2179 = vld [vmem:[%s4 + $0x28] sm:$0xf]
          %v2180 = vld [vmem:[%s4 + $0x2c] sm:$0xf]
          %v2181 = vld [vmem:[%s4 + $0x30] sm:$0xf]
          %v2182 = vld [vmem:[%s4 + $0x34] sm:$0xf]
          %v2183 = vld [vmem:[%s4 + $0x38] sm:$0xf]
          %v2184 = vld [vmem:[%s4 + $0x3c] sm:$0xf]
          %v2185 = vld [vmem:[#allocation2] sm:$0xff]
          %v2186 = vld [vmem:[#allocation2 + $0x8] sm:$0xff]
          %v2187 = vld [vmem:[#allocation2 + $0x10] sm:$0xff]
          %v2188 = vld [vmem:[#allocation2 + $0x18] sm:$0xff]
          %v2189 = vld [vmem:[#allocation2 + $0x20] sm:$0xff]
          %v2190 = vld [vmem:[#allocation2 + $0x28] sm:$0xff]
          %v2191 = vld [vmem:[#allocation2 + $0x30] sm:$0xff]
          %v2192 = vld [vmem:[#allocation2 + $0x38] sm:$0xff]
          %v2193 = vld [vmem:[#allocation2 + $0x40] sm:$0xff]
          %v2194 = vld [vmem:[#allocation2 + $0x48] sm:$0xff]
          %v2195 = vld [vmem:[#allocation2 + $0x50] sm:$0xff]
          %v2196 = vld [vmem:[#allocation2 + $0x58] sm:$0xff]
          %v2197 = vld [vmem:[#allocation2 + $0x60] sm:$0xff]
          %v2198 = vld [vmem:[#allocation2 + $0x68] sm:$0xff]
          %v2199 = vld [vmem:[#allocation2 + $0x70] sm:$0xff]
          %v2200 = vld [vmem:[#allocation2 + $0x78] sm:$0xff]
          %v2201 = vld [vmem:[#allocation2 + $0x80] sm:$0xff]
          %v2202 = vld [vmem:[#allocation2 + $0x88] sm:$0xff]
          %v2203 = vld [vmem:[#allocation2 + $0x90] sm:$0xff]
          %v2204 = vld [vmem:[#allocation2 + $0x98] sm:$0xff]
          %v2205 = vld [vmem:[#allocation2 + $0xa0] sm:$0xff]
          %v2206 = vld [vmem:[#allocation2 + $0xa8] sm:$0xff]
          %v2207 = vld [vmem:[#allocation2 + $0xb0] sm:$0xff]
          %v2208 = vld [vmem:[#allocation2 + $0xb8] sm:$0xff]
          %v2209 = vld [vmem:[#allocation2 + $0xc0] sm:$0xff]
          %v2210 = vld [vmem:[#allocation2 + $0xc8] sm:$0xff]
          %v2211 = vld [vmem:[#allocation2 + $0xd0] sm:$0xff]
          %v2212 = vld [vmem:[#allocation2 + $0xd8] sm:$0xff]
          %v2213 = vld [vmem:[#allocation2 + $0xe0] sm:$0xff]
          %v2214 = vld [vmem:[#allocation2 + $0xe8] sm:$0xff]
          %v2215 = vld [vmem:[#allocation2 + $0xf0] sm:$0xff]
          %v2216 = vld [vmem:[#allocation2 + $0xf8] sm:$0xff]
          %v2217 = vld [vmem:[#allocation2 + $0x100] sm:$0xff]
          %v2218 = vld [vmem:[#allocation2 + $0x108] sm:$0xff]
          %v2219 = vld [vmem:[#allocation2 + $0x110] sm:$0xff]
          %v2220 = vld [vmem:[#allocation2 + $0x118] sm:$0xff]
          %v2221 = vld [vmem:[#allocation2 + $0x120] sm:$0xff]
          %v2222 = vld [vmem:[#allocation2 + $0x128] sm:$0xff]
          %v2223 = vld [vmem:[#allocation2 + $0x130] sm:$0xff]
          %v2224 = vld [vmem:[#allocation2 + $0x138] sm:$0xff]
          %v2225 = vld [vmem:[#allocation2 + $0x140] sm:$0xff]
          %v2226 = vld [vmem:[#allocation2 + $0x148] sm:$0xff]
          %v2227 = vld [vmem:[#allocation2 + $0x150] sm:$0xff]
          %v2228 = vld [vmem:[#allocation2 + $0x158] sm:$0xff]
          %v2229 = vld [vmem:[#allocation2 + $0x160] sm:$0xff]
          %v2230 = vld [vmem:[#allocation2 + $0x168] sm:$0xff]
          %v2231 = vld [vmem:[#allocation2 + $0x170] sm:$0xff]
          %v2232 = vld [vmem:[#allocation2 + $0x178] sm:$0xff]
          %v2233 = vld [vmem:[#allocation2 + $0x180] sm:$0xff]
          %v2234 = vld [vmem:[#allocation2 + $0x188] sm:$0xff]
          %v2235 = vld [vmem:[#allocation2 + $0x190] sm:$0xff]
          %v2236 = vld [vmem:[#allocation2 + $0x198] sm:$0xff]
          %v2237 = vld [vmem:[#allocation2 + $0x1a0] sm:$0xff]
          %v2238 = vld [vmem:[#allocation2 + $0x1a8] sm:$0xff]
          %v2239 = vld [vmem:[#allocation2 + $0x1b0] sm:$0xff]
          %v2240 = vld [vmem:[#allocation2 + $0x1b8] sm:$0xff]
          %v2241 = vld [vmem:[#allocation2 + $0x1c0] sm:$0xff]
          %v2242 = vld [vmem:[#allocation2 + $0x1c8] sm:$0xff]
          %v2243 = vld [vmem:[#allocation2 + $0x1d0] sm:$0xff]
          %v2244 = vld [vmem:[#allocation2 + $0x1d8] sm:$0xff]
          %v2245 = vld [vmem:[#allocation2 + $0x1e0] sm:$0xff]
          %v2246 = vld [vmem:[#allocation2 + $0x1e8] sm:$0xff]
          %v2247 = vld [vmem:[#allocation2 + $0x1f0] sm:$0xff]
          %v2248 = vpack.c.bf16 %v2186, %v2185
          %v2249 = vpack.c.bf16 %v2188, %v2187
          %v2250 = vpack.c.bf16 %v2190, %v2189
          %v2251 = vpack.c.bf16 %v2192, %v2191
          %v2252 = vpack.c.bf16 %v2194, %v2193
          %v2253 = vpack.c.bf16 %v2196, %v2195
          %v2254 = vpack.c.bf16 %v2198, %v2197
          %v2255 = vpack.c.bf16 %v2200, %v2199
          %v2256 = vpack.c.bf16 %v2202, %v2201
          %v2257 = vpack.c.bf16 %v2204, %v2203
          %v2258 = vpack.c.bf16 %v2206, %v2205
          %v2259 = vpack.c.bf16 %v2208, %v2207
          %v2260 = vpack.c.bf16 %v2210, %v2209
          %v2261 = vpack.c.bf16 %v2212, %v2211
          %v2262 = vpack.c.bf16 %v2214, %v2213
          %v2263 = vpack.c.bf16 %v2216, %v2215
          %v2264 = vpack.c.bf16 %v2218, %v2217
          %v2265 = vpack.c.bf16 %v2220, %v2219
          %v2266 = vpack.c.bf16 %v2222, %v2221
          %v2267 = vpack.c.bf16 %v2224, %v2223
          %v2268 = vpack.c.bf16 %v2226, %v2225
          %v2269 = vpack.c.bf16 %v2228, %v2227
          %v2270 = vpack.c.bf16 %v2230, %v2229
          %v2271 = vpack.c.bf16 %v2232, %v2231
          %v2272 = vpack.c.bf16 %v2234, %v2233
          %v2273 = vpack.c.bf16 %v2236, %v2235
          %v2274 = vpack.c.bf16 %v2238, %v2237
          %v2275 = vpack.c.bf16 %v2240, %v2239
          %v2276 = vpack.c.bf16 %v2242, %v2241
          %v2277 = vpack.c.bf16 %v2244, %v2243
          %v2278 = vpack.c.bf16 %v2246, %v2245
          %v2279 = vpack.c.bf16 %v2247, %v2247
          %v2280 = vld [vmem:[%s1] sm:$0xff]
          %v2281 = vld [vmem:[%s1 + $0x8] sm:$0xff]
          %v2282 = vld [vmem:[%s1 + $0x10] sm:$0xff]
          %v2283 = vld [vmem:[%s1 + $0x18] sm:$0xff]
          %v2284 = vld [vmem:[%s1 + $0x20] sm:$0xff]
          %v2285 = vld [vmem:[%s1 + $0x28] sm:$0xff]
          %v2286 = vld [vmem:[%s1 + $0x30] sm:$0xff]
          %v2287 = vld [vmem:[%s1 + $0x38] sm:$0xff]
          %v2288 = vld [vmem:[%s1 + $0x40] sm:$0xff]
          %v2289 = vld [vmem:[%s1 + $0x48] sm:$0xff]
          %v2290 = vld [vmem:[%s1 + $0x50] sm:$0xff]
          %v2291 = vld [vmem:[%s1 + $0x58] sm:$0xff]
          %v2292 = vld [vmem:[%s1 + $0x60] sm:$0xff]
          %v2293 = vld [vmem:[%s1 + $0x68] sm:$0xff]
          %v2294 = vld [vmem:[%s1 + $0x70] sm:$0xff]
          %v2295 = vld [vmem:[%s1 + $0x78] sm:$0xff]
          %v2296 = vld [vmem:[%s1 + $0x80] sm:$0xff]
          %v2297 = vld [vmem:[%s1 + $0x88] sm:$0xff]
          %v2298 = vld [vmem:[%s1 + $0x90] sm:$0xff]
          %v2299 = vld [vmem:[%s1 + $0x98] sm:$0xff]
          %v2300 = vld [vmem:[%s1 + $0xa0] sm:$0xff]
          %v2301 = vld [vmem:[%s1 + $0xa8] sm:$0xff]
          %v2302 = vld [vmem:[%s1 + $0xb0] sm:$0xff]
          %v2303 = vld [vmem:[%s1 + $0xb8] sm:$0xff]
          %v2304 = vld [vmem:[%s1 + $0xc0] sm:$0xff]
          %v2305 = vld [vmem:[%s1 + $0xc8] sm:$0xff]
          %v2306 = vld [vmem:[%s1 + $0xd0] sm:$0xff]
          %v2307 = vld [vmem:[%s1 + $0xd8] sm:$0xff]
          %v2308 = vld [vmem:[%s1 + $0xe0] sm:$0xff]
          %v2309 = vld [vmem:[%s1 + $0xe8] sm:$0xff]
          %v2310 = vld [vmem:[%s1 + $0xf0] sm:$0xff]
          %v2311 = vld [vmem:[%s1 + $0xf8] sm:$0xff]
          %v2312 = vld [vmem:[%s1 + $0x100] sm:$0xff]
          %v2313 = vld [vmem:[%s1 + $0x108] sm:$0xff]
          %v2314 = vld [vmem:[%s1 + $0x110] sm:$0xff]
          %v2315 = vld [vmem:[%s1 + $0x118] sm:$0xff]
          %v2316 = vld [vmem:[%s1 + $0x120] sm:$0xff]
          %v2317 = vld [vmem:[%s1 + $0x128] sm:$0xff]
          %v2318 = vld [vmem:[%s1 + $0x130] sm:$0xff]
          %v2319 = vld [vmem:[%s1 + $0x138] sm:$0xff]
          %v2320 = vld [vmem:[%s1 + $0x140] sm:$0xff]
          %v2321 = vld [vmem:[%s1 + $0x148] sm:$0xff]
          %v2322 = vld [vmem:[%s1 + $0x150] sm:$0xff]
          %v2323 = vld [vmem:[%s1 + $0x158] sm:$0xff]
          %v2324 = vld [vmem:[%s1 + $0x160] sm:$0xff]
          %v2325 = vld [vmem:[%s1 + $0x168] sm:$0xff]
          %v2326 = vld [vmem:[%s1 + $0x170] sm:$0xff]
          %v2327 = vld [vmem:[%s1 + $0x178] sm:$0xff]
          %v2328 = vld [vmem:[%s1 + $0x180] sm:$0xff]
          %v2329 = vld [vmem:[%s1 + $0x188] sm:$0xff]
          %v2330 = vld [vmem:[%s1 + $0x190] sm:$0xff]
          %v2331 = vld [vmem:[%s1 + $0x198] sm:$0xff]
          %v2332 = vld [vmem:[%s1 + $0x1a0] sm:$0xff]
          %v2333 = vld [vmem:[%s1 + $0x1a8] sm:$0xff]
          %v2334 = vld [vmem:[%s1 + $0x1b0] sm:$0xff]
          %v2335 = vld [vmem:[%s1 + $0x1b8] sm:$0xff]
          %v2336 = vld [vmem:[%s1 + $0x1c0] sm:$0xff]
          %v2337 = vld [vmem:[%s1 + $0x1c8] sm:$0xff]
          %v2338 = vld [vmem:[%s1 + $0x1d0] sm:$0xff]
          %v2339 = vld [vmem:[%s1 + $0x1d8] sm:$0xff]
          %v2340 = vld [vmem:[%s1 + $0x1e0] sm:$0xff]
          %v2341 = vld [vmem:[%s1 + $0x1e8] sm:$0xff]
          %v2342 = vld [vmem:[%s1 + $0x1f0] sm:$0xff]
          %v2343 = vld [vmem:[%s1 + $0x1f8] sm:$0xff]
          %v2345 = vperm.slane %v2167, 0
          %v2411 = vunpack.c.l.b16 %v2280
          %v2412 = vunpack.c.h.b16 %v2280
          %v2413 = vunpack.c.l.b16 %v2281
          %v2414 = vunpack.c.h.b16 %v2281
          %v2415 = vunpack.c.l.b16 %v2282
          %v2416 = vunpack.c.h.b16 %v2282
          %v2417 = vunpack.c.l.b16 %v2283
          %v2418 = vunpack.c.h.b16 %v2283
          %v2419 = vunpack.c.l.b16 %v2284
          %v2420 = vunpack.c.h.b16 %v2284
          %v2421 = vunpack.c.l.b16 %v2285
          %v2422 = vunpack.c.h.b16 %v2285
          %v2423 = vunpack.c.l.b16 %v2286
          %v2424 = vunpack.c.h.b16 %v2286
          %v2425 = vunpack.c.l.b16 %v2287
          %v2426 = vunpack.c.h.b16 %v2287
          %v2427 = vunpack.c.l.b16 %v2288
          %v2428 = vunpack.c.h.b16 %v2288
          %v2429 = vunpack.c.l.b16 %v2289
          %v2430 = vunpack.c.h.b16 %v2289
          %v2431 = vunpack.c.l.b16 %v2290
          %v2432 = vunpack.c.h.b16 %v2290
          %v2433 = vunpack.c.l.b16 %v2291
          %v2434 = vunpack.c.h.b16 %v2291
          %v2435 = vunpack.c.l.b16 %v2292
          %v2436 = vunpack.c.h.b16 %v2292
          %v2437 = vunpack.c.l.b16 %v2293
          %v2438 = vunpack.c.h.b16 %v2293
          %v2439 = vunpack.c.l.b16 %v2294
          %v2440 = vunpack.c.h.b16 %v2294
          %v2441 = vunpack.c.l.b16 %v2295
          %v2442 = vunpack.c.h.b16 %v2295
          %v2443 = vunpack.c.l.b16 %v2296
          %v2444 = vunpack.c.h.b16 %v2296
          %v2445 = vunpack.c.l.b16 %v2297
          %v2446 = vunpack.c.h.b16 %v2297
          %v2447 = vunpack.c.l.b16 %v2298
          %v2448 = vunpack.c.h.b16 %v2298
          %v2449 = vunpack.c.l.b16 %v2299
          %v2450 = vunpack.c.h.b16 %v2299
          %v2451 = vunpack.c.l.b16 %v2300
          %v2452 = vunpack.c.h.b16 %v2300
          %v2453 = vunpack.c.l.b16 %v2301
          %v2454 = vunpack.c.h.b16 %v2301
          %v2455 = vunpack.c.l.b16 %v2302
          %v2456 = vunpack.c.h.b16 %v2302
          %v2457 = vunpack.c.l.b16 %v2303
          %v2458 = vunpack.c.h.b16 %v2303
          %v2459 = vunpack.c.l.b16 %v2304
          %v2460 = vunpack.c.h.b16 %v2304
          %v2461 = vunpack.c.l.b16 %v2305
          %v2462 = vunpack.c.h.b16 %v2305
          %v2463 = vunpack.c.l.b16 %v2306
          %v2464 = vunpack.c.h.b16 %v2306
          %v2465 = vunpack.c.l.b16 %v2307
          %v2466 = vunpack.c.h.b16 %v2307
          %v2467 = vunpack.c.l.b16 %v2308
          %v2468 = vunpack.c.h.b16 %v2308
          %v2469 = vunpack.c.l.b16 %v2309
          %v2470 = vunpack.c.h.b16 %v2309
          %v2471 = vunpack.c.l.b16 %v2310
          %v2472 = vunpack.c.h.b16 %v2310
          %v2473 = vunpack.c.l.b16 %v2311
          %v2474 = vunpack.c.h.b16 %v2311
          %v2475 = vunpack.c.l.b16 %v2312
          %v2476 = vunpack.c.h.b16 %v2312
          %v2477 = vunpack.c.l.b16 %v2313
          %v2478 = vunpack.c.h.b16 %v2313
          %v2479 = vunpack.c.l.b16 %v2314
          %v2480 = vunpack.c.h.b16 %v2314
          %v2481 = vunpack.c.l.b16 %v2315
          %v2482 = vunpack.c.h.b16 %v2315
          %v2483 = vunpack.c.l.b16 %v2316
          %v2484 = vunpack.c.h.b16 %v2316
          %v2485 = vunpack.c.l.b16 %v2317
          %v2486 = vunpack.c.h.b16 %v2317
          %v2487 = vunpack.c.l.b16 %v2318
          %v2488 = vunpack.c.h.b16 %v2318
          %v2489 = vunpack.c.l.b16 %v2319
          %v2490 = vunpack.c.h.b16 %v2319
          %v2491 = vunpack.c.l.b16 %v2320
          %v2492 = vunpack.c.h.b16 %v2320
          %v2493 = vunpack.c.l.b16 %v2321
          %v2494 = vunpack.c.h.b16 %v2321
          %v2495 = vunpack.c.l.b16 %v2322
          %v2496 = vunpack.c.h.b16 %v2322
          %v2497 = vunpack.c.l.b16 %v2323
          %v2498 = vunpack.c.h.b16 %v2323
          %v2499 = vunpack.c.l.b16 %v2324
          %v2500 = vunpack.c.h.b16 %v2324
          %v2501 = vunpack.c.l.b16 %v2325
          %v2502 = vunpack.c.h.b16 %v2325
          %v2503 = vunpack.c.l.b16 %v2326
          %v2504 = vunpack.c.h.b16 %v2326
          %v2505 = vunpack.c.l.b16 %v2327
          %v2506 = vunpack.c.h.b16 %v2327
          %v2507 = vunpack.c.l.b16 %v2328
          %v2508 = vunpack.c.h.b16 %v2328
          %v2509 = vunpack.c.l.b16 %v2329
          %v2510 = vunpack.c.h.b16 %v2329
          %v2511 = vunpack.c.l.b16 %v2330
          %v2512 = vunpack.c.h.b16 %v2330
          %v2513 = vunpack.c.l.b16 %v2331
          %v2514 = vunpack.c.h.b16 %v2331
          %v2515 = vunpack.c.l.b16 %v2332
          %v2516 = vunpack.c.h.b16 %v2332
          %v2517 = vunpack.c.l.b16 %v2333
          %v2518 = vunpack.c.h.b16 %v2333
          %v2519 = vunpack.c.l.b16 %v2334
          %v2520 = vunpack.c.h.b16 %v2334
          %v2521 = vunpack.c.l.b16 %v2335
          %v2522 = vunpack.c.h.b16 %v2335
          %v2523 = vunpack.c.l.b16 %v2336
          %v2524 = vunpack.c.h.b16 %v2336
          %v2525 = vunpack.c.l.b16 %v2337
          %v2526 = vunpack.c.h.b16 %v2337
          %v2527 = vunpack.c.l.b16 %v2338
          %v2528 = vunpack.c.h.b16 %v2338
          %v2529 = vunpack.c.l.b16 %v2339
          %v2530 = vunpack.c.h.b16 %v2339
          %v2531 = vunpack.c.l.b16 %v2340
          %v2532 = vunpack.c.h.b16 %v2340
          %v2533 = vunpack.c.l.b16 %v2341
          %v2534 = vunpack.c.h.b16 %v2341
          %v2535 = vunpack.c.l.b16 %v2342
          %v2536 = vunpack.c.h.b16 %v2342
          %v2537 = vunpack.c.l.b16 %v2343
          %v2538 = vunpack.c.h.b16 %v2343
          %v2539 = vpack.c.b16 %v2415, %v2411
          %v2540 = vpack.c.b16 %v2416, %v2412
          %v2541 = vpack.c.b16 %v2417, %v2413
          %v2542 = vpack.c.b16 %v2418, %v2414
          %v2543 = vpack.c.b16 %v2423, %v2419
          %v2544 = vpack.c.b16 %v2424, %v2420
          %v2545 = vpack.c.b16 %v2425, %v2421
          %v2546 = vpack.c.b16 %v2426, %v2422
          %v2547 = vpack.c.b16 %v2431, %v2427
          %v2548 = vpack.c.b16 %v2432, %v2428
          %v2549 = vpack.c.b16 %v2433, %v2429
          %v2550 = vpack.c.b16 %v2434, %v2430
          %v2551 = vpack.c.b16 %v2439, %v2435
          %v2552 = vpack.c.b16 %v2440, %v2436
          %v2553 = vpack.c.b16 %v2441, %v2437
          %v2554 = vpack.c.b16 %v2442, %v2438
          %v2555 = vpack.c.b16 %v2447, %v2443
          %v2556 = vpack.c.b16 %v2448, %v2444
          %v2557 = vpack.c.b16 %v2449, %v2445
          %v2558 = vpack.c.b16 %v2450, %v2446
          %v2559 = vpack.c.b16 %v2455, %v2451
          %v2560 = vpack.c.b16 %v2456, %v2452
          %v2561 = vpack.c.b16 %v2457, %v2453
          %v2562 = vpack.c.b16 %v2458, %v2454
          %v2563 = vpack.c.b16 %v2463, %v2459
          %v2564 = vpack.c.b16 %v2464, %v2460
          %v2565 = vpack.c.b16 %v2465, %v2461
          %v2566 = vpack.c.b16 %v2466, %v2462
          %v2567 = vpack.c.b16 %v2471, %v2467
          %v2568 = vpack.c.b16 %v2472, %v2468
          %v2569 = vpack.c.b16 %v2473, %v2469
          %v2570 = vpack.c.b16 %v2474, %v2470
          %v2571 = vpack.c.b16 %v2479, %v2475
          %v2572 = vpack.c.b16 %v2480, %v2476
          %v2573 = vpack.c.b16 %v2481, %v2477
          %v2574 = vpack.c.b16 %v2482, %v2478
          %v2575 = vpack.c.b16 %v2487, %v2483
          %v2576 = vpack.c.b16 %v2488, %v2484
          %v2577 = vpack.c.b16 %v2489, %v2485
          %v2578 = vpack.c.b16 %v2490, %v2486
          %v2579 = vpack.c.b16 %v2495, %v2491
          %v2580 = vpack.c.b16 %v2496, %v2492
          %v2581 = vpack.c.b16 %v2497, %v2493
          %v2582 = vpack.c.b16 %v2498, %v2494
          %v2583 = vpack.c.b16 %v2503, %v2499
          %v2584 = vpack.c.b16 %v2504, %v2500
          %v2585 = vpack.c.b16 %v2505, %v2501
          %v2586 = vpack.c.b16 %v2506, %v2502
          %v2587 = vpack.c.b16 %v2511, %v2507
          %v2588 = vpack.c.b16 %v2512, %v2508
          %v2589 = vpack.c.b16 %v2513, %v2509
          %v2590 = vpack.c.b16 %v2514, %v2510
          %v2591 = vpack.c.b16 %v2519, %v2515
          %v2592 = vpack.c.b16 %v2520, %v2516
          %v2593 = vpack.c.b16 %v2521, %v2517
          %v2594 = vpack.c.b16 %v2522, %v2518
          %v2595 = vpack.c.b16 %v2527, %v2523
          %v2596 = vpack.c.b16 %v2528, %v2524
          %v2597 = vpack.c.b16 %v2529, %v2525
          %v2598 = vpack.c.b16 %v2530, %v2526
          %v2599 = vpack.c.b16 %v2535, %v2531
          %v2600 = vpack.c.b16 %v2536, %v2532
          %v2601 = vpack.c.b16 %v2537, %v2533
          %v2602 = vpack.c.b16 %v2538, %v2534
          %vm2651 = vcmask 982016
          %v2653 = vsel %vm2651, %v2542, 0
          %v2656 = vsel %vm2651, %v2546, 0
          %v2659 = vsel %vm2651, %v2550, 0
          %v2662 = vsel %vm2651, %v2554, 0
          %v2665 = vsel %vm2651, %v2558, 0
          %v2668 = vsel %vm2651, %v2562, 0
          %v2671 = vsel %vm2651, %v2566, 0
          %v2674 = vsel %vm2651, %v2570, 0
          %v2677 = vsel %vm2651, %v2574, 0
          %v2680 = vsel %vm2651, %v2578, 0
          %v2683 = vsel %vm2651, %v2582, 0
          %v2686 = vsel %vm2651, %v2586, 0
          %v2689 = vsel %vm2651, %v2590, 0
          %v2692 = vsel %vm2651, %v2594, 0
          %v2695 = vsel %vm2651, %v2598, 0
          %v2698 = vsel %vm2651, %v2602, 0
          %vm2700 = vcmask 1043456
          %v2702 = vsel %vm2700, %v2279, 0
          %2704 = vmatpush.bf16.msra.mxu0 %v2255
          %2705 = vmatpush.bf16.msra.mxu0 %v2254
          %2706 = vmatpush.bf16.msra.mxu0 %v2253
          %2707 = vmatpush.bf16.msra.mxu0 %v2252
          %2708 = vmatpush.bf16.msra.mxu0 %v2251
          %2709 = vmatpush.bf16.msra.mxu0 %v2250
          %2710 = vmatpush.bf16.msra.mxu0 %v2249
          %2711 = vmatpush.bf16.msra.mxu0 %v2248
          %2712 = vmatmul.bf16.gmra.mxu0 %v2539
          %v2713 = vpop.f32.mrf.mxu0
          %v2714 = vadd.f32 %v2345, %v2713
          %v2715 = vpop.f32.mrf.mxu0
          %v2716 = vadd.f32 %v2345, %v2715
          %2717 = vmatmul.bf16.gmra.mxu0 %v2543
          %v2718 = vpop.f32.mrf.mxu0
          %v2719 = vadd.f32 %v2345, %v2718
          %v2720 = vpop.f32.mrf.mxu0
          %v2721 = vadd.f32 %v2345, %v2720
          %2722 = vmatmul.bf16.gmra.mxu0 %v2547
          %v2723 = vpop.f32.mrf.mxu0
          %v2724 = vadd.f32 %v2345, %v2723
          %v2725 = vpop.f32.mrf.mxu0
          %v2726 = vadd.f32 %v2345, %v2725
          %2727 = vmatmul.bf16.gmra.mxu0 %v2551
          %v2728 = vpop.f32.mrf.mxu0
          %v2729 = vadd.f32 %v2345, %v2728
          %v2730 = vpop.f32.mrf.mxu0
          %v2731 = vadd.f32 %v2345, %v2730
          %2732 = vmatmul.bf16.gmra.mxu0 %v2555
          %v2733 = vpop.f32.mrf.mxu0
          %v2734 = vadd.f32 %v2345, %v2733
          %v2735 = vpop.f32.mrf.mxu0
          %v2736 = vadd.f32 %v2345, %v2735
          %2737 = vmatmul.bf16.gmra.mxu0 %v2559
          %v2738 = vpop.f32.mrf.mxu0
          %v2739 = vadd.f32 %v2345, %v2738
          %v2740 = vpop.f32.mrf.mxu0
          %v2741 = vadd.f32 %v2345, %v2740
          %2742 = vmatmul.bf16.gmra.mxu0 %v2563
          %v2743 = vpop.f32.mrf.mxu0
          %v2744 = vadd.f32 %v2345, %v2743
          %v2745 = vpop.f32.mrf.mxu0
          %v2746 = vadd.f32 %v2345, %v2745
          %2747 = vmatmul.bf16.gmra.mxu0 %v2567
          %v2748 = vpop.f32.mrf.mxu0
          %v2749 = vadd.f32 %v2345, %v2748
          %v2750 = vpop.f32.mrf.mxu0
          %v2751 = vadd.f32 %v2345, %v2750
          %2752 = vmatmul.bf16.gmra.mxu0 %v2571
          %v2753 = vpop.f32.mrf.mxu0
          %v2754 = vadd.f32 %v2345, %v2753
          %v2755 = vpop.f32.mrf.mxu0
          %v2756 = vadd.f32 %v2345, %v2755
          %2757 = vmatmul.bf16.gmra.mxu0 %v2575
          %v2758 = vpop.f32.mrf.mxu0
          %v2759 = vadd.f32 %v2345, %v2758
          %v2760 = vpop.f32.mrf.mxu0
          %v2761 = vadd.f32 %v2345, %v2760
          %2762 = vmatmul.bf16.gmra.mxu0 %v2579
          %v2763 = vpop.f32.mrf.mxu0
          %v2764 = vadd.f32 %v2345, %v2763
          %v2765 = vpop.f32.mrf.mxu0
          %v2766 = vadd.f32 %v2345, %v2765
          %2767 = vmatmul.bf16.gmra.mxu0 %v2583
          %v2768 = vpop.f32.mrf.mxu0
          %v2769 = vadd.f32 %v2345, %v2768
          %v2770 = vpop.f32.mrf.mxu0
          %v2771 = vadd.f32 %v2345, %v2770
          %2772 = vmatmul.bf16.gmra.mxu0 %v2587
          %v2773 = vpop.f32.mrf.mxu0
          %v2774 = vadd.f32 %v2345, %v2773
          %v2775 = vpop.f32.mrf.mxu0
          %v2776 = vadd.f32 %v2345, %v2775
          %2777 = vmatmul.bf16.gmra.mxu0 %v2591
          %v2778 = vpop.f32.mrf.mxu0
          %v2779 = vadd.f32 %v2345, %v2778
          %v2780 = vpop.f32.mrf.mxu0
          %v2781 = vadd.f32 %v2345, %v2780
          %2782 = vmatmul.bf16.gmra.mxu0 %v2595
          %v2783 = vpop.f32.mrf.mxu0
          %v2784 = vadd.f32 %v2345, %v2783
          %v2785 = vpop.f32.mrf.mxu0
          %v2786 = vadd.f32 %v2345, %v2785
          %2787 = vmatmul.bf16.gmra.mxu0 %v2599
          %v2788 = vpop.f32.mrf.mxu0
          %v2789 = vadd.f32 %v2345, %v2788
          %v2790 = vpop.f32.mrf.mxu0
          %v2791 = vadd.f32 %v2345, %v2790
          %2792 = vdwg.mxu0
          %2793 = vmatpush.bf16.msra.mxu0 %v2263
          %2794 = vmatpush.bf16.msra.mxu0 %v2262
          %2795 = vmatpush.bf16.msra.mxu0 %v2261
          %2796 = vmatpush.bf16.msra.mxu0 %v2260
          %2797 = vmatpush.bf16.msra.mxu0 %v2259
          %2798 = vmatpush.bf16.msra.mxu0 %v2258
          %2799 = vmatpush.bf16.msra.mxu0 %v2257
          %2800 = vmatpush.bf16.msra.mxu0 %v2256
          %2801 = vmatmul.bf16.gmra.mxu0 %v2540
          %v2802 = vpop.f32.mrf.mxu0
          %v2803 = vadd.f32 %v2714, %v2802
          %v2804 = vpop.f32.mrf.mxu0
          %v2805 = vadd.f32 %v2716, %v2804
          %2806 = vmatmul.bf16.gmra.mxu0 %v2544
          %v2807 = vpop.f32.mrf.mxu0
          %v2808 = vadd.f32 %v2719, %v2807
          %v2809 = vpop.f32.mrf.mxu0
          %v2810 = vadd.f32 %v2721, %v2809
          %2811 = vmatmul.bf16.gmra.mxu0 %v2548
          %v2812 = vpop.f32.mrf.mxu0
          %v2813 = vadd.f32 %v2724, %v2812
          %v2814 = vpop.f32.mrf.mxu0
          %v2815 = vadd.f32 %v2726, %v2814
          %2816 = vmatmul.bf16.gmra.mxu0 %v2552
          %v2817 = vpop.f32.mrf.mxu0
          %v2818 = vadd.f32 %v2729, %v2817
          %v2819 = vpop.f32.mrf.mxu0
          %v2820 = vadd.f32 %v2731, %v2819
          %2821 = vmatmul.bf16.gmra.mxu0 %v2556
          %v2822 = vpop.f32.mrf.mxu0
          %v2823 = vadd.f32 %v2734, %v2822
          %v2824 = vpop.f32.mrf.mxu0
          %v2825 = vadd.f32 %v2736, %v2824
          %2826 = vmatmul.bf16.gmra.mxu0 %v2560
          %v2827 = vpop.f32.mrf.mxu0
          %v2828 = vadd.f32 %v2739, %v2827
          %v2829 = vpop.f32.mrf.mxu0
          %v2830 = vadd.f32 %v2741, %v2829
          %2831 = vmatmul.bf16.gmra.mxu0 %v2564
          %v2832 = vpop.f32.mrf.mxu0
          %v2833 = vadd.f32 %v2744, %v2832
          %v2834 = vpop.f32.mrf.mxu0
          %v2835 = vadd.f32 %v2746, %v2834
          %2836 = vmatmul.bf16.gmra.mxu0 %v2568
          %v2837 = vpop.f32.mrf.mxu0
          %v2838 = vadd.f32 %v2749, %v2837
          %v2839 = vpop.f32.mrf.mxu0
          %v2840 = vadd.f32 %v2751, %v2839
          %2841 = vmatmul.bf16.gmra.mxu0 %v2572
          %v2842 = vpop.f32.mrf.mxu0
          %v2843 = vadd.f32 %v2754, %v2842
          %v2844 = vpop.f32.mrf.mxu0
          %v2845 = vadd.f32 %v2756, %v2844
          %2846 = vmatmul.bf16.gmra.mxu0 %v2576
          %v2847 = vpop.f32.mrf.mxu0
          %v2848 = vadd.f32 %v2759, %v2847
          %v2849 = vpop.f32.mrf.mxu0
          %v2850 = vadd.f32 %v2761, %v2849
          %2851 = vmatmul.bf16.gmra.mxu0 %v2580
          %v2852 = vpop.f32.mrf.mxu0
          %v2853 = vadd.f32 %v2764, %v2852
          %v2854 = vpop.f32.mrf.mxu0
          %v2855 = vadd.f32 %v2766, %v2854
          %2856 = vmatmul.bf16.gmra.mxu0 %v2584
          %v2857 = vpop.f32.mrf.mxu0
          %v2858 = vadd.f32 %v2769, %v2857
          %v2859 = vpop.f32.mrf.mxu0
          %v2860 = vadd.f32 %v2771, %v2859
          %2861 = vmatmul.bf16.gmra.mxu0 %v2588
          %v2862 = vpop.f32.mrf.mxu0
          %v2863 = vadd.f32 %v2774, %v2862
          %v2864 = vpop.f32.mrf.mxu0
          %v2865 = vadd.f32 %v2776, %v2864
          %2866 = vmatmul.bf16.gmra.mxu0 %v2592
          %v2867 = vpop.f32.mrf.mxu0
          %v2868 = vadd.f32 %v2779, %v2867
          %v2869 = vpop.f32.mrf.mxu0
          %v2870 = vadd.f32 %v2781, %v2869
          %2871 = vmatmul.bf16.gmra.mxu0 %v2596
          %v2872 = vpop.f32.mrf.mxu0
          %v2873 = vadd.f32 %v2784, %v2872
          %v2874 = vpop.f32.mrf.mxu0
          %v2875 = vadd.f32 %v2786, %v2874
          %2876 = vmatmul.bf16.gmra.mxu0 %v2600
          %v2877 = vpop.f32.mrf.mxu0
          %v2878 = vadd.f32 %v2789, %v2877
          %v2879 = vpop.f32.mrf.mxu0
          %v2880 = vadd.f32 %v2791, %v2879
          %2881 = vdwg.mxu0
          %2882 = vmatpush.bf16.msra.mxu0 %v2271
          %2883 = vmatpush.bf16.msra.mxu0 %v2270
          %2884 = vmatpush.bf16.msra.mxu0 %v2269
          %2885 = vmatpush.bf16.msra.mxu0 %v2268
          %2886 = vmatpush.bf16.msra.mxu0 %v2267
          %2887 = vmatpush.bf16.msra.mxu0 %v2266
          %2888 = vmatpush.bf16.msra.mxu0 %v2265
          %2889 = vmatpush.bf16.msra.mxu0 %v2264
          %2890 = vmatmul.bf16.gmra.mxu0 %v2541
          %v2891 = vpop.f32.mrf.mxu0
          %v2892 = vadd.f32 %v2803, %v2891
          %v2893 = vpop.f32.mrf.mxu0
          %v2894 = vadd.f32 %v2805, %v2893
          %2895 = vmatmul.bf16.gmra.mxu0 %v2545
          %v2896 = vpop.f32.mrf.mxu0
          %v2897 = vadd.f32 %v2808, %v2896
          %v2898 = vpop.f32.mrf.mxu0
          %v2899 = vadd.f32 %v2810, %v2898
          %2900 = vmatmul.bf16.gmra.mxu0 %v2549
          %v2901 = vpop.f32.mrf.mxu0
          %v2902 = vadd.f32 %v2813, %v2901
          %v2903 = vpop.f32.mrf.mxu0
          %v2904 = vadd.f32 %v2815, %v2903
          %2905 = vmatmul.bf16.gmra.mxu0 %v2553
          %v2906 = vpop.f32.mrf.mxu0
          %v2907 = vadd.f32 %v2818, %v2906
          %v2908 = vpop.f32.mrf.mxu0
          %v2909 = vadd.f32 %v2820, %v2908
          %2910 = vmatmul.bf16.gmra.mxu0 %v2557
          %v2911 = vpop.f32.mrf.mxu0
          %v2912 = vadd.f32 %v2823, %v2911
          %v2913 = vpop.f32.mrf.mxu0
          %v2914 = vadd.f32 %v2825, %v2913
          %2915 = vmatmul.bf16.gmra.mxu0 %v2561
          %v2916 = vpop.f32.mrf.mxu0
          %v2917 = vadd.f32 %v2828, %v2916
          %v2918 = vpop.f32.mrf.mxu0
          %v2919 = vadd.f32 %v2830, %v2918
          %2920 = vmatmul.bf16.gmra.mxu0 %v2565
          %v2921 = vpop.f32.mrf.mxu0
          %v2922 = vadd.f32 %v2833, %v2921
          %v2923 = vpop.f32.mrf.mxu0
          %v2924 = vadd.f32 %v2835, %v2923
          %2925 = vmatmul.bf16.gmra.mxu0 %v2569
          %v2926 = vpop.f32.mrf.mxu0
          %v2927 = vadd.f32 %v2838, %v2926
          %v2928 = vpop.f32.mrf.mxu0
          %v2929 = vadd.f32 %v2840, %v2928
          %2930 = vmatmul.bf16.gmra.mxu0 %v2573
          %v2931 = vpop.f32.mrf.mxu0
          %v2932 = vadd.f32 %v2843, %v2931
          %v2933 = vpop.f32.mrf.mxu0
          %v2934 = vadd.f32 %v2845, %v2933
          %2935 = vmatmul.bf16.gmra.mxu0 %v2577
          %v2936 = vpop.f32.mrf.mxu0
          %v2937 = vadd.f32 %v2848, %v2936
          %v2938 = vpop.f32.mrf.mxu0
          %v2939 = vadd.f32 %v2850, %v2938
          %2940 = vmatmul.bf16.gmra.mxu0 %v2581
          %v2941 = vpop.f32.mrf.mxu0
          %v2942 = vadd.f32 %v2853, %v2941
          %v2943 = vpop.f32.mrf.mxu0
          %v2944 = vadd.f32 %v2855, %v2943
          %2945 = vmatmul.bf16.gmra.mxu0 %v2585
          %v2946 = vpop.f32.mrf.mxu0
          %v2947 = vadd.f32 %v2858, %v2946
          %v2948 = vpop.f32.mrf.mxu0
          %v2949 = vadd.f32 %v2860, %v2948
          %2950 = vmatmul.bf16.gmra.mxu0 %v2589
          %v2951 = vpop.f32.mrf.mxu0
          %v2952 = vadd.f32 %v2863, %v2951
          %v2953 = vpop.f32.mrf.mxu0
          %v2954 = vadd.f32 %v2865, %v2953
          %2955 = vmatmul.bf16.gmra.mxu0 %v2593
          %v2956 = vpop.f32.mrf.mxu0
          %v2957 = vadd.f32 %v2868, %v2956
          %v2958 = vpop.f32.mrf.mxu0
          %v2959 = vadd.f32 %v2870, %v2958
          %2960 = vmatmul.bf16.gmra.mxu0 %v2597
          %v2961 = vpop.f32.mrf.mxu0
          %v2962 = vadd.f32 %v2873, %v2961
          %v2963 = vpop.f32.mrf.mxu0
          %v2964 = vadd.f32 %v2875, %v2963
          %2965 = vmatmul.bf16.gmra.mxu0 %v2601
          %v2966 = vpop.f32.mrf.mxu0
          %v2967 = vadd.f32 %v2878, %v2966
          %v2968 = vpop.f32.mrf.mxu0
          %v2969 = vadd.f32 %v2880, %v2968
          %2970 = vdwg.mxu0
          %2971 = vmatpush.bf16.msra.mxu0 %v2702
          %2972 = vmatpush.bf16.msra.mxu0 %v2278
          %2973 = vmatpush.bf16.msra.mxu0 %v2277
          %2974 = vmatpush.bf16.msra.mxu0 %v2276
          %2975 = vmatpush.bf16.msra.mxu0 %v2275
          %2976 = vmatpush.bf16.msra.mxu0 %v2274
          %2977 = vmatpush.bf16.msra.mxu0 %v2273
          %2978 = vmatpush.bf16.msra.mxu0 %v2272
          %2979 = vmatmul.bf16.gmra.mxu0 %v2653
          %v2980 = vpop.f32.mrf.mxu0
          %v2981 = vadd.f32 %v2892, %v2980
          %v2982 = vpop.f32.mrf.mxu0
          %v2983 = vadd.f32 %v2894, %v2982
          %2984 = vmatmul.bf16.gmra.mxu0 %v2656
          %v2985 = vpop.f32.mrf.mxu0
          %v2986 = vadd.f32 %v2897, %v2985
          %v2987 = vpop.f32.mrf.mxu0
          %v2988 = vadd.f32 %v2899, %v2987
          %2989 = vmatmul.bf16.gmra.mxu0 %v2659
          %v2990 = vpop.f32.mrf.mxu0
          %v2991 = vadd.f32 %v2902, %v2990
          %v2992 = vpop.f32.mrf.mxu0
          %v2993 = vadd.f32 %v2904, %v2992
          %2994 = vmatmul.bf16.gmra.mxu0 %v2662
          %v2995 = vpop.f32.mrf.mxu0
          %v2996 = vadd.f32 %v2907, %v2995
          %v2997 = vpop.f32.mrf.mxu0
          %v2998 = vadd.f32 %v2909, %v2997
          %2999 = vmatmul.bf16.gmra.mxu0 %v2665
          %v3000 = vpop.f32.mrf.mxu0
          %v3001 = vadd.f32 %v2912, %v3000
          %v3002 = vpop.f32.mrf.mxu0
          %v3003 = vadd.f32 %v2914, %v3002
          %3004 = vmatmul.bf16.gmra.mxu0 %v2668
          %v3005 = vpop.f32.mrf.mxu0
          %v3006 = vadd.f32 %v2917, %v3005
          %v3007 = vpop.f32.mrf.mxu0
          %v3008 = vadd.f32 %v2919, %v3007
          %3009 = vmatmul.bf16.gmra.mxu0 %v2671
          %v3010 = vpop.f32.mrf.mxu0
          %v3011 = vadd.f32 %v2922, %v3010
          %v3012 = vpop.f32.mrf.mxu0
          %v3013 = vadd.f32 %v2924, %v3012
          %3014 = vmatmul.bf16.gmra.mxu0 %v2674
          %v3015 = vpop.f32.mrf.mxu0
          %v3016 = vadd.f32 %v2927, %v3015
          %v3017 = vpop.f32.mrf.mxu0
          %v3018 = vadd.f32 %v2929, %v3017
          %3019 = vmatmul.bf16.gmra.mxu0 %v2677
          %v3020 = vpop.f32.mrf.mxu0
          %v3021 = vadd.f32 %v2932, %v3020
          %v3022 = vpop.f32.mrf.mxu0
          %v3023 = vadd.f32 %v2934, %v3022
          %3024 = vmatmul.bf16.gmra.mxu0 %v2680
          %v3025 = vpop.f32.mrf.mxu0
          %v3026 = vadd.f32 %v2937, %v3025
          %v3027 = vpop.f32.mrf.mxu0
          %v3028 = vadd.f32 %v2939, %v3027
          %3029 = vmatmul.bf16.gmra.mxu0 %v2683
          %v3030 = vpop.f32.mrf.mxu0
          %v3031 = vadd.f32 %v2942, %v3030
          %v3032 = vpop.f32.mrf.mxu0
          %v3033 = vadd.f32 %v2944, %v3032
          %3034 = vmatmul.bf16.gmra.mxu0 %v2686
          %v3035 = vpop.f32.mrf.mxu0
          %v3036 = vadd.f32 %v2947, %v3035
          %v3037 = vpop.f32.mrf.mxu0
          %v3038 = vadd.f32 %v2949, %v3037
          %3039 = vmatmul.bf16.gmra.mxu0 %v2689
          %v3040 = vpop.f32.mrf.mxu0
          %v3041 = vadd.f32 %v2952, %v3040
          %v3042 = vpop.f32.mrf.mxu0
          %v3043 = vadd.f32 %v2954, %v3042
          %3044 = vmatmul.bf16.gmra.mxu0 %v2692
          %v3045 = vpop.f32.mrf.mxu0
          %v3046 = vadd.f32 %v2957, %v3045
          %v3047 = vpop.f32.mrf.mxu0
          %v3048 = vadd.f32 %v2959, %v3047
          %3049 = vmatmul.bf16.gmra.mxu0 %v2695
          %v3050 = vpop.f32.mrf.mxu0
          %v3051 = vadd.f32 %v2962, %v3050
          %v3052 = vpop.f32.mrf.mxu0
          %v3053 = vadd.f32 %v2964, %v3052
          %3054 = vmatmul.bf16.gmra.mxu0 %v2698
          %v3055 = vpop.f32.mrf.mxu0
          %v3056 = vadd.f32 %v2967, %v3055
          %v3057 = vpop.f32.mrf.mxu0
          %v3058 = vadd.f32 %v2969, %v3057
          %3059 = vdwg.mxu0
          %v3060 = vpack.c.bf16 %v2983, %v2981
          %v3061 = vpack.c.bf16 %v2988, %v2986
          %v3062 = vpack.c.bf16 %v2993, %v2991
          %v3063 = vpack.c.bf16 %v2998, %v2996
          %v3064 = vpack.c.bf16 %v3003, %v3001
          %v3065 = vpack.c.bf16 %v3008, %v3006
          %v3066 = vpack.c.bf16 %v3013, %v3011
          %v3067 = vpack.c.bf16 %v3018, %v3016
          %v3068 = vpack.c.bf16 %v3023, %v3021
          %v3069 = vpack.c.bf16 %v3028, %v3026
          %v3070 = vpack.c.bf16 %v3033, %v3031
          %v3071 = vpack.c.bf16 %v3038, %v3036
          %v3072 = vpack.c.bf16 %v3043, %v3041
          %v3073 = vpack.c.bf16 %v3048, %v3046
          %v3074 = vpack.c.bf16 %v3053, %v3051
          %v3075 = vpack.c.bf16 %v3058, %v3056
          %v3077 = vperm.slane %v2168, 0
          %v3095 = vunpack.c.l.b16 %v2169
          %v3096 = vunpack.c.l.b16 %v2170
          %v3097 = vunpack.c.l.b16 %v2171
          %v3098 = vunpack.c.l.b16 %v2172
          %v3099 = vunpack.c.l.b16 %v2173
          %v3100 = vunpack.c.l.b16 %v2174
          %v3101 = vunpack.c.l.b16 %v2175
          %v3102 = vunpack.c.l.b16 %v2176
          %v3103 = vunpack.c.l.b16 %v2177
          %v3104 = vunpack.c.l.b16 %v2178
          %v3105 = vunpack.c.l.b16 %v2179
          %v3106 = vunpack.c.l.b16 %v2180
          %v3107 = vunpack.c.l.b16 %v2181
          %v3108 = vunpack.c.l.b16 %v2182
          %v3109 = vunpack.c.l.b16 %v2183
          %v3110 = vunpack.c.l.b16 %v2184
          %v3111 = vpack.c.b16 %v3096, %v3095
          %v3112 = vpack.c.b16 %v3098, %v3097
          %v3113 = vpack.c.b16 %v3100, %v3099
          %v3114 = vpack.c.b16 %v3102, %v3101
          %v3115 = vpack.c.b16 %v3104, %v3103
          %v3116 = vpack.c.b16 %v3106, %v3105
          %v3117 = vpack.c.b16 %v3108, %v3107
          %v3118 = vpack.c.b16 %v3110, %v3109
          %3127 = vmatpush.bf16.msra.mxu0 %v3118
          %3128 = vmatpush.bf16.msra.mxu0 %v3117
          %3129 = vmatpush.bf16.msra.mxu0 %v3116
          %3130 = vmatpush.bf16.msra.mxu0 %v3115
          %3131 = vmatpush.bf16.msra.mxu0 %v3114
          %3132 = vmatpush.bf16.msra.mxu0 %v3113
          %3133 = vmatpush.bf16.msra.mxu0 %v3112
          %3134 = vmatpush.bf16.msra.mxu0 %v3111
          %3135 = vmatmul.bf16.gmra.mxu0 %v3060
          %v3136 = vpop.f32.mrf.mxu0
          %v3137 = vadd.f32 %v3077, %v3136
          %v3138 = vpop.f32.mrf.mxu0
          %v3139 = vadd.f32 %v3077, %v3138
          %3140 = vmatmul.bf16.gmra.mxu0 %v3061
          %v3141 = vpop.f32.mrf.mxu0
          %v3142 = vadd.f32 %v3077, %v3141
          %v3143 = vpop.f32.mrf.mxu0
          %v3144 = vadd.f32 %v3077, %v3143
          %3145 = vmatmul.bf16.gmra.mxu0 %v3062
          %v3146 = vpop.f32.mrf.mxu0
          %v3147 = vadd.f32 %v3077, %v3146
          %v3148 = vpop.f32.mrf.mxu0
          %v3149 = vadd.f32 %v3077, %v3148
          %3150 = vmatmul.bf16.gmra.mxu0 %v3063
          %v3151 = vpop.f32.mrf.mxu0
          %v3152 = vadd.f32 %v3077, %v3151
          %v3153 = vpop.f32.mrf.mxu0
          %v3154 = vadd.f32 %v3077, %v3153
          %3155 = vmatmul.bf16.gmra.mxu0 %v3064
          %v3156 = vpop.f32.mrf.mxu0
          %v3157 = vadd.f32 %v3077, %v3156
          %v3158 = vpop.f32.mrf.mxu0
          %v3159 = vadd.f32 %v3077, %v3158
          %3160 = vmatmul.bf16.gmra.mxu0 %v3065
          %v3161 = vpop.f32.mrf.mxu0
          %v3162 = vadd.f32 %v3077, %v3161
          %v3163 = vpop.f32.mrf.mxu0
          %v3164 = vadd.f32 %v3077, %v3163
          %3165 = vmatmul.bf16.gmra.mxu0 %v3066
          %v3166 = vpop.f32.mrf.mxu0
          %v3167 = vadd.f32 %v3077, %v3166
          %v3168 = vpop.f32.mrf.mxu0
          %v3169 = vadd.f32 %v3077, %v3168
          %3170 = vmatmul.bf16.gmra.mxu0 %v3067
          %v3171 = vpop.f32.mrf.mxu0
          %v3172 = vadd.f32 %v3077, %v3171
          %v3173 = vpop.f32.mrf.mxu0
          %v3174 = vadd.f32 %v3077, %v3173
          %3175 = vmatmul.bf16.gmra.mxu0 %v3068
          %v3176 = vpop.f32.mrf.mxu0
          %v3177 = vadd.f32 %v3077, %v3176
          %v3178 = vpop.f32.mrf.mxu0
          %v3179 = vadd.f32 %v3077, %v3178
          %3180 = vmatmul.bf16.gmra.mxu0 %v3069
          %v3181 = vpop.f32.mrf.mxu0
          %v3182 = vadd.f32 %v3077, %v3181
          %v3183 = vpop.f32.mrf.mxu0
          %v3184 = vadd.f32 %v3077, %v3183
          %3185 = vmatmul.bf16.gmra.mxu0 %v3070
          %v3186 = vpop.f32.mrf.mxu0
          %v3187 = vadd.f32 %v3077, %v3186
          %v3188 = vpop.f32.mrf.mxu0
          %v3189 = vadd.f32 %v3077, %v3188
          %3190 = vmatmul.bf16.gmra.mxu0 %v3071
          %v3191 = vpop.f32.mrf.mxu0
          %v3192 = vadd.f32 %v3077, %v3191
          %v3193 = vpop.f32.mrf.mxu0
          %v3194 = vadd.f32 %v3077, %v3193
          %3195 = vmatmul.bf16.gmra.mxu0 %v3072
          %v3196 = vpop.f32.mrf.mxu0
          %v3197 = vadd.f32 %v3077, %v3196
          %v3198 = vpop.f32.mrf.mxu0
          %v3199 = vadd.f32 %v3077, %v3198
          %3200 = vmatmul.bf16.gmra.mxu0 %v3073
          %v3201 = vpop.f32.mrf.mxu0
          %v3202 = vadd.f32 %v3077, %v3201
          %v3203 = vpop.f32.mrf.mxu0
          %v3204 = vadd.f32 %v3077, %v3203
          %3205 = vmatmul.bf16.gmra.mxu0 %v3074
          %v3206 = vpop.f32.mrf.mxu0
          %v3207 = vadd.f32 %v3077, %v3206
          %v3208 = vpop.f32.mrf.mxu0
          %v3209 = vadd.f32 %v3077, %v3208
          %3210 = vmatmul.bf16.gmra.mxu0 %v3075
          %v3211 = vpop.f32.mrf.mxu0
          %v3212 = vadd.f32 %v3077, %v3211
          %v3213 = vpop.f32.mrf.mxu0
          %v3214 = vadd.f32 %v3077, %v3213
          %3215 = vdwg.mxu0
          %v3216 = vpack.c.bf16 %v3137, %v3137
          %v3217 = vpack.c.bf16 %v3139, %v3139
          %v3218 = vpack.c.bf16 %v3142, %v3142
          %v3219 = vpack.c.bf16 %v3144, %v3144
          %v3220 = vpack.c.bf16 %v3147, %v3147
          %v3221 = vpack.c.bf16 %v3149, %v3149
          %v3222 = vpack.c.bf16 %v3152, %v3152
          %v3223 = vpack.c.bf16 %v3154, %v3154
          %v3224 = vpack.c.bf16 %v3157, %v3157
          %v3225 = vpack.c.bf16 %v3159, %v3159
          %v3226 = vpack.c.bf16 %v3162, %v3162
          %v3227 = vpack.c.bf16 %v3164, %v3164
          %v3228 = vpack.c.bf16 %v3167, %v3167
          %v3229 = vpack.c.bf16 %v3169, %v3169
          %v3230 = vpack.c.bf16 %v3172, %v3172
          %v3231 = vpack.c.bf16 %v3174, %v3174
          %v3232 = vpack.c.bf16 %v3177, %v3177
          %v3233 = vpack.c.bf16 %v3179, %v3179
          %v3234 = vpack.c.bf16 %v3182, %v3182
          %v3235 = vpack.c.bf16 %v3184, %v3184
          %v3236 = vpack.c.bf16 %v3187, %v3187
          %v3237 = vpack.c.bf16 %v3189, %v3189
          %v3238 = vpack.c.bf16 %v3192, %v3192
          %v3239 = vpack.c.bf16 %v3194, %v3194
          %v3240 = vpack.c.bf16 %v3197, %v3197
          %v3241 = vpack.c.bf16 %v3199, %v3199
          %v3242 = vpack.c.bf16 %v3202, %v3202
          %v3243 = vpack.c.bf16 %v3204, %v3204
          %v3244 = vpack.c.bf16 %v3207, %v3207
          %v3245 = vpack.c.bf16 %v3209, %v3209
          %v3246 = vpack.c.bf16 %v3212, %v3212
          %v3247 = vpack.c.bf16 %v3214, %v3214
          %3248 = vst [vmem:[#allocation7] sm:$0xf] %v3216
          %3249 = vst [vmem:[#allocation7 + $0x4] sm:$0xf] %v3217
          %3250 = vst [vmem:[#allocation7 + $0x8] sm:$0xf] %v3218
          %3251 = vst [vmem:[#allocation7 + $0xc] sm:$0xf] %v3219
          %3252 = vst [vmem:[#allocation7 + $0x10] sm:$0xf] %v3220
          %3253 = vst [vmem:[#allocation7 + $0x14] sm:$0xf] %v3221
          %3254 = vst [vmem:[#allocation7 + $0x18] sm:$0xf] %v3222
          %3255 = vst [vmem:[#allocation7 + $0x1c] sm:$0xf] %v3223
          %3256 = vst [vmem:[#allocation7 + $0x20] sm:$0xf] %v3224
          %3257 = vst [vmem:[#allocation7 + $0x24] sm:$0xf] %v3225
          %3258 = vst [vmem:[#allocation7 + $0x28] sm:$0xf] %v3226
          %3259 = vst [vmem:[#allocation7 + $0x2c] sm:$0xf] %v3227
          %3260 = vst [vmem:[#allocation7 + $0x30] sm:$0xf] %v3228
          %3261 = vst [vmem:[#allocation7 + $0x34] sm:$0xf] %v3229
          %3262 = vst [vmem:[#allocation7 + $0x38] sm:$0xf] %v3230
          %3263 = vst [vmem:[#allocation7 + $0x3c] sm:$0xf] %v3231
          %3264 = vst [vmem:[#allocation7 + $0x40] sm:$0xf] %v3232
          %3265 = vst [vmem:[#allocation7 + $0x44] sm:$0xf] %v3233
          %3266 = vst [vmem:[#allocation7 + $0x48] sm:$0xf] %v3234
          %3267 = vst [vmem:[#allocation7 + $0x4c] sm:$0xf] %v3235
          %3268 = vst [vmem:[#allocation7 + $0x50] sm:$0xf] %v3236
          %3269 = vst [vmem:[#allocation7 + $0x54] sm:$0xf] %v3237
          %3270 = vst [vmem:[#allocation7 + $0x58] sm:$0xf] %v3238
          %3271 = vst [vmem:[#allocation7 + $0x5c] sm:$0xf] %v3239
          %3272 = vst [vmem:[#allocation7 + $0x60] sm:$0xf] %v3240
          %3273 = vst [vmem:[#allocation7 + $0x64] sm:$0xf] %v3241
          %3274 = vst [vmem:[#allocation7 + $0x68] sm:$0xf] %v3242
          %3275 = vst [vmem:[#allocation7 + $0x6c] sm:$0xf] %v3243
          %3276 = vst [vmem:[#allocation7 + $0x70] sm:$0xf] %v3244
          %3277 = vst [vmem:[#allocation7 + $0x74] sm:$0xf] %v3245
          %3278 = vst [vmem:[#allocation7 + $0x78] sm:$0xf] %v3246
          %3279 = vst [vmem:[#allocation7 + $0x7c] sm:$0xf] %v3247
          %v3280 = vld [vmem:[%s787] sm:$0xff]
          %v3281 = vld [vmem:[%s787 + $0x8] sm:$0xff]
          %v3282 = vld [vmem:[%s787 + $0x10] sm:$0xff]
          %v3283 = vld [vmem:[%s787 + $0x18] sm:$0xff]
          %v3284 = vld [vmem:[%s787 + $0x20] sm:$0xff]
          %v3285 = vld [vmem:[%s787 + $0x28] sm:$0xff]
          %v3286 = vld [vmem:[%s787 + $0x30] sm:$0xff]
          %v3287 = vld [vmem:[%s787 + $0x38] sm:$0xff]
          %v3288 = vld [vmem:[%s787 + $0x40] sm:$0xff]
          %v3289 = vld [vmem:[%s787 + $0x48] sm:$0xff]
          %v3290 = vld [vmem:[%s787 + $0x50] sm:$0xff]
          %v3291 = vld [vmem:[%s787 + $0x58] sm:$0xff]
          %v3292 = vld [vmem:[%s787 + $0x60] sm:$0xff]
          %v3293 = vld [vmem:[%s787 + $0x68] sm:$0xff]
          %v3294 = vld [vmem:[%s787 + $0x70] sm:$0xff]
          %v3295 = vld [vmem:[%s787 + $0x78] sm:$0xff]
          %v3296 = vld [vmem:[%s787 + $0x80] sm:$0xff]
          %v3297 = vld [vmem:[%s787 + $0x88] sm:$0xff]
          %v3298 = vld [vmem:[%s787 + $0x90] sm:$0xff]
          %v3299 = vld [vmem:[%s787 + $0x98] sm:$0xff]
          %v3300 = vld [vmem:[%s787 + $0xa0] sm:$0xff]
          %v3301 = vld [vmem:[%s787 + $0xa8] sm:$0xff]
          %v3302 = vld [vmem:[%s787 + $0xb0] sm:$0xff]
          %v3303 = vld [vmem:[%s787 + $0xb8] sm:$0xff]
          %v3304 = vld [vmem:[%s787 + $0xc0] sm:$0xff]
          %v3305 = vld [vmem:[%s787 + $0xc8] sm:$0xff]
          %v3306 = vld [vmem:[%s787 + $0xd0] sm:$0xff]
          %v3307 = vld [vmem:[%s787 + $0xd8] sm:$0xff]
          %v3308 = vld [vmem:[%s787 + $0xe0] sm:$0xff]
          %v3309 = vld [vmem:[%s787 + $0xe8] sm:$0xff]
          %v3310 = vld [vmem:[%s787 + $0xf0] sm:$0xff]
          %v3311 = vld [vmem:[%s787 + $0xf8] sm:$0xff]
          %v3312 = vld [vmem:[%s787 + $0x100] sm:$0xff]
          %v3313 = vld [vmem:[%s787 + $0x108] sm:$0xff]
          %v3314 = vld [vmem:[%s787 + $0x110] sm:$0xff]
          %v3315 = vld [vmem:[%s787 + $0x118] sm:$0xff]
          %v3316 = vld [vmem:[%s787 + $0x120] sm:$0xff]
          %v3317 = vld [vmem:[%s787 + $0x128] sm:$0xff]
          %v3318 = vld [vmem:[%s787 + $0x130] sm:$0xff]
          %v3319 = vld [vmem:[%s787 + $0x138] sm:$0xff]
          %v3320 = vld [vmem:[%s787 + $0x140] sm:$0xff]
          %v3321 = vld [vmem:[%s787 + $0x148] sm:$0xff]
          %v3322 = vld [vmem:[%s787 + $0x150] sm:$0xff]
          %v3323 = vld [vmem:[%s787 + $0x158] sm:$0xff]
          %v3324 = vld [vmem:[%s787 + $0x160] sm:$0xff]
          %v3325 = vld [vmem:[%s787 + $0x168] sm:$0xff]
          %v3326 = vld [vmem:[%s787 + $0x170] sm:$0xff]
          %v3327 = vld [vmem:[%s787 + $0x178] sm:$0xff]
          %v3328 = vld [vmem:[%s787 + $0x180] sm:$0xff]
          %v3329 = vld [vmem:[%s787 + $0x188] sm:$0xff]
          %v3330 = vld [vmem:[%s787 + $0x190] sm:$0xff]
          %v3331 = vld [vmem:[%s787 + $0x198] sm:$0xff]
          %v3332 = vld [vmem:[%s787 + $0x1a0] sm:$0xff]
          %v3333 = vld [vmem:[%s787 + $0x1a8] sm:$0xff]
          %v3334 = vld [vmem:[%s787 + $0x1b0] sm:$0xff]
          %v3335 = vld [vmem:[%s787 + $0x1b8] sm:$0xff]
          %v3336 = vld [vmem:[%s787 + $0x1c0] sm:$0xff]
          %v3337 = vld [vmem:[%s787 + $0x1c8] sm:$0xff]
          %v3338 = vld [vmem:[%s787 + $0x1d0] sm:$0xff]
          %v3339 = vld [vmem:[%s787 + $0x1d8] sm:$0xff]
          %v3340 = vld [vmem:[%s787 + $0x1e0] sm:$0xff]
          %v3341 = vld [vmem:[%s787 + $0x1e8] sm:$0xff]
          %v3342 = vld [vmem:[%s787 + $0x1f0] sm:$0xff]
          %v3343 = vpack.c.bf16 %v3281, %v3280
          %v3344 = vpack.c.bf16 %v3283, %v3282
          %v3345 = vpack.c.bf16 %v3285, %v3284
          %v3346 = vpack.c.bf16 %v3287, %v3286
          %v3347 = vpack.c.bf16 %v3289, %v3288
          %v3348 = vpack.c.bf16 %v3291, %v3290
          %v3349 = vpack.c.bf16 %v3293, %v3292
          %v3350 = vpack.c.bf16 %v3295, %v3294
          %v3351 = vpack.c.bf16 %v3297, %v3296
          %v3352 = vpack.c.bf16 %v3299, %v3298
          %v3353 = vpack.c.bf16 %v3301, %v3300
          %v3354 = vpack.c.bf16 %v3303, %v3302
          %v3355 = vpack.c.bf16 %v3305, %v3304
          %v3356 = vpack.c.bf16 %v3307, %v3306
          %v3357 = vpack.c.bf16 %v3309, %v3308
          %v3358 = vpack.c.bf16 %v3311, %v3310
          %v3359 = vpack.c.bf16 %v3313, %v3312
          %v3360 = vpack.c.bf16 %v3315, %v3314
          %v3361 = vpack.c.bf16 %v3317, %v3316
          %v3362 = vpack.c.bf16 %v3319, %v3318
          %v3363 = vpack.c.bf16 %v3321, %v3320
          %v3364 = vpack.c.bf16 %v3323, %v3322
          %v3365 = vpack.c.bf16 %v3325, %v3324
          %v3366 = vpack.c.bf16 %v3327, %v3326
          %v3367 = vpack.c.bf16 %v3329, %v3328
          %v3368 = vpack.c.bf16 %v3331, %v3330
          %v3369 = vpack.c.bf16 %v3333, %v3332
          %v3370 = vpack.c.bf16 %v3335, %v3334
          %v3371 = vpack.c.bf16 %v3337, %v3336
          %v3372 = vpack.c.bf16 %v3339, %v3338
          %v3373 = vpack.c.bf16 %v3341, %v3340
          %v3374 = vpack.c.bf16 %v3342, %v3342
          %v3375 = vld [vmem:[%s1] sm:$0xff]
          %v3376 = vld [vmem:[%s1 + $0x8] sm:$0xff]
          %v3377 = vld [vmem:[%s1 + $0x10] sm:$0xff]
          %v3378 = vld [vmem:[%s1 + $0x18] sm:$0xff]
          %v3379 = vld [vmem:[%s1 + $0x20] sm:$0xff]
          %v3380 = vld [vmem:[%s1 + $0x28] sm:$0xff]
          %v3381 = vld [vmem:[%s1 + $0x30] sm:$0xff]
          %v3382 = vld [vmem:[%s1 + $0x38] sm:$0xff]
          %v3383 = vld [vmem:[%s1 + $0x40] sm:$0xff]
          %v3384 = vld [vmem:[%s1 + $0x48] sm:$0xff]
          %v3385 = vld [vmem:[%s1 + $0x50] sm:$0xff]
          %v3386 = vld [vmem:[%s1 + $0x58] sm:$0xff]
          %v3387 = vld [vmem:[%s1 + $0x60] sm:$0xff]
          %v3388 = vld [vmem:[%s1 + $0x68] sm:$0xff]
          %v3389 = vld [vmem:[%s1 + $0x70] sm:$0xff]
          %v3390 = vld [vmem:[%s1 + $0x78] sm:$0xff]
          %v3391 = vld [vmem:[%s1 + $0x80] sm:$0xff]
          %v3392 = vld [vmem:[%s1 + $0x88] sm:$0xff]
          %v3393 = vld [vmem:[%s1 + $0x90] sm:$0xff]
          %v3394 = vld [vmem:[%s1 + $0x98] sm:$0xff]
          %v3395 = vld [vmem:[%s1 + $0xa0] sm:$0xff]
          %v3396 = vld [vmem:[%s1 + $0xa8] sm:$0xff]
          %v3397 = vld [vmem:[%s1 + $0xb0] sm:$0xff]
          %v3398 = vld [vmem:[%s1 + $0xb8] sm:$0xff]
          %v3399 = vld [vmem:[%s1 + $0xc0] sm:$0xff]
          %v3400 = vld [vmem:[%s1 + $0xc8] sm:$0xff]
          %v3401 = vld [vmem:[%s1 + $0xd0] sm:$0xff]
          %v3402 = vld [vmem:[%s1 + $0xd8] sm:$0xff]
          %v3403 = vld [vmem:[%s1 + $0xe0] sm:$0xff]
          %v3404 = vld [vmem:[%s1 + $0xe8] sm:$0xff]
          %v3405 = vld [vmem:[%s1 + $0xf0] sm:$0xff]
          %v3406 = vld [vmem:[%s1 + $0xf8] sm:$0xff]
          %v3407 = vld [vmem:[%s1 + $0x100] sm:$0xff]
          %v3408 = vld [vmem:[%s1 + $0x108] sm:$0xff]
          %v3409 = vld [vmem:[%s1 + $0x110] sm:$0xff]
          %v3410 = vld [vmem:[%s1 + $0x118] sm:$0xff]
          %v3411 = vld [vmem:[%s1 + $0x120] sm:$0xff]
          %v3412 = vld [vmem:[%s1 + $0x128] sm:$0xff]
          %v3413 = vld [vmem:[%s1 + $0x130] sm:$0xff]
          %v3414 = vld [vmem:[%s1 + $0x138] sm:$0xff]
          %v3415 = vld [vmem:[%s1 + $0x140] sm:$0xff]
          %v3416 = vld [vmem:[%s1 + $0x148] sm:$0xff]
          %v3417 = vld [vmem:[%s1 + $0x150] sm:$0xff]
          %v3418 = vld [vmem:[%s1 + $0x158] sm:$0xff]
          %v3419 = vld [vmem:[%s1 + $0x160] sm:$0xff]
          %v3420 = vld [vmem:[%s1 + $0x168] sm:$0xff]
          %v3421 = vld [vmem:[%s1 + $0x170] sm:$0xff]
          %v3422 = vld [vmem:[%s1 + $0x178] sm:$0xff]
          %v3423 = vld [vmem:[%s1 + $0x180] sm:$0xff]
          %v3424 = vld [vmem:[%s1 + $0x188] sm:$0xff]
          %v3425 = vld [vmem:[%s1 + $0x190] sm:$0xff]
          %v3426 = vld [vmem:[%s1 + $0x198] sm:$0xff]
          %v3427 = vld [vmem:[%s1 + $0x1a0] sm:$0xff]
          %v3428 = vld [vmem:[%s1 + $0x1a8] sm:$0xff]
          %v3429 = vld [vmem:[%s1 + $0x1b0] sm:$0xff]
          %v3430 = vld [vmem:[%s1 + $0x1b8] sm:$0xff]
          %v3431 = vld [vmem:[%s1 + $0x1c0] sm:$0xff]
          %v3432 = vld [vmem:[%s1 + $0x1c8] sm:$0xff]
          %v3433 = vld [vmem:[%s1 + $0x1d0] sm:$0xff]
          %v3434 = vld [vmem:[%s1 + $0x1d8] sm:$0xff]
          %v3435 = vld [vmem:[%s1 + $0x1e0] sm:$0xff]
          %v3436 = vld [vmem:[%s1 + $0x1e8] sm:$0xff]
          %v3437 = vld [vmem:[%s1 + $0x1f0] sm:$0xff]
          %v3438 = vld [vmem:[%s1 + $0x1f8] sm:$0xff]
          %v3503 = vunpack.c.l.b16 %v3375
          %v3504 = vunpack.c.h.b16 %v3375
          %v3505 = vunpack.c.l.b16 %v3376
          %v3506 = vunpack.c.h.b16 %v3376
          %v3507 = vunpack.c.l.b16 %v3377
          %v3508 = vunpack.c.h.b16 %v3377
          %v3509 = vunpack.c.l.b16 %v3378
          %v3510 = vunpack.c.h.b16 %v3378
          %v3511 = vunpack.c.l.b16 %v3379
          %v3512 = vunpack.c.h.b16 %v3379
          %v3513 = vunpack.c.l.b16 %v3380
          %v3514 = vunpack.c.h.b16 %v3380
          %v3515 = vunpack.c.l.b16 %v3381
          %v3516 = vunpack.c.h.b16 %v3381
          %v3517 = vunpack.c.l.b16 %v3382
          %v3518 = vunpack.c.h.b16 %v3382
          %v3519 = vunpack.c.l.b16 %v3383
          %v3520 = vunpack.c.h.b16 %v3383
          %v3521 = vunpack.c.l.b16 %v3384
          %v3522 = vunpack.c.h.b16 %v3384
          %v3523 = vunpack.c.l.b16 %v3385
          %v3524 = vunpack.c.h.b16 %v3385
          %v3525 = vunpack.c.l.b16 %v3386
          %v3526 = vunpack.c.h.b16 %v3386
          %v3527 = vunpack.c.l.b16 %v3387
          %v3528 = vunpack.c.h.b16 %v3387
          %v3529 = vunpack.c.l.b16 %v3388
          %v3530 = vunpack.c.h.b16 %v3388
          %v3531 = vunpack.c.l.b16 %v3389
          %v3532 = vunpack.c.h.b16 %v3389
          %v3533 = vunpack.c.l.b16 %v3390
          %v3534 = vunpack.c.h.b16 %v3390
          %v3535 = vunpack.c.l.b16 %v3391
          %v3536 = vunpack.c.h.b16 %v3391
          %v3537 = vunpack.c.l.b16 %v3392
          %v3538 = vunpack.c.h.b16 %v3392
          %v3539 = vunpack.c.l.b16 %v3393
          %v3540 = vunpack.c.h.b16 %v3393
          %v3541 = vunpack.c.l.b16 %v3394
          %v3542 = vunpack.c.h.b16 %v3394
          %v3543 = vunpack.c.l.b16 %v3395
          %v3544 = vunpack.c.h.b16 %v3395
          %v3545 = vunpack.c.l.b16 %v3396
          %v3546 = vunpack.c.h.b16 %v3396
          %v3547 = vunpack.c.l.b16 %v3397
          %v3548 = vunpack.c.h.b16 %v3397
          %v3549 = vunpack.c.l.b16 %v3398
          %v3550 = vunpack.c.h.b16 %v3398
          %v3551 = vunpack.c.l.b16 %v3399
          %v3552 = vunpack.c.h.b16 %v3399
          %v3553 = vunpack.c.l.b16 %v3400
          %v3554 = vunpack.c.h.b16 %v3400
          %v3555 = vunpack.c.l.b16 %v3401
          %v3556 = vunpack.c.h.b16 %v3401
          %v3557 = vunpack.c.l.b16 %v3402
          %v3558 = vunpack.c.h.b16 %v3402
          %v3559 = vunpack.c.l.b16 %v3403
          %v3560 = vunpack.c.h.b16 %v3403
          %v3561 = vunpack.c.l.b16 %v3404
          %v3562 = vunpack.c.h.b16 %v3404
          %v3563 = vunpack.c.l.b16 %v3405
          %v3564 = vunpack.c.h.b16 %v3405
          %v3565 = vunpack.c.l.b16 %v3406
          %v3566 = vunpack.c.h.b16 %v3406
          %v3567 = vunpack.c.l.b16 %v3407
          %v3568 = vunpack.c.h.b16 %v3407
          %v3569 = vunpack.c.l.b16 %v3408
          %v3570 = vunpack.c.h.b16 %v3408
          %v3571 = vunpack.c.l.b16 %v3409
          %v3572 = vunpack.c.h.b16 %v3409
          %v3573 = vunpack.c.l.b16 %v3410
          %v3574 = vunpack.c.h.b16 %v3410
          %v3575 = vunpack.c.l.b16 %v3411
          %v3576 = vunpack.c.h.b16 %v3411
          %v3577 = vunpack.c.l.b16 %v3412
          %v3578 = vunpack.c.h.b16 %v3412
          %v3579 = vunpack.c.l.b16 %v3413
          %v3580 = vunpack.c.h.b16 %v3413
          %v3581 = vunpack.c.l.b16 %v3414
          %v3582 = vunpack.c.h.b16 %v3414
          %v3583 = vunpack.c.l.b16 %v3415
          %v3584 = vunpack.c.h.b16 %v3415
          %v3585 = vunpack.c.l.b16 %v3416
          %v3586 = vunpack.c.h.b16 %v3416
          %v3587 = vunpack.c.l.b16 %v3417
          %v3588 = vunpack.c.h.b16 %v3417
          %v3589 = vunpack.c.l.b16 %v3418
          %v3590 = vunpack.c.h.b16 %v3418
          %v3591 = vunpack.c.l.b16 %v3419
          %v3592 = vunpack.c.h.b16 %v3419
          %v3593 = vunpack.c.l.b16 %v3420
          %v3594 = vunpack.c.h.b16 %v3420
          %v3595 = vunpack.c.l.b16 %v3421
          %v3596 = vunpack.c.h.b16 %v3421
          %v3597 = vunpack.c.l.b16 %v3422
          %v3598 = vunpack.c.h.b16 %v3422
          %v3599 = vunpack.c.l.b16 %v3423
          %v3600 = vunpack.c.h.b16 %v3423
          %v3601 = vunpack.c.l.b16 %v3424
          %v3602 = vunpack.c.h.b16 %v3424
          %v3603 = vunpack.c.l.b16 %v3425
          %v3604 = vunpack.c.h.b16 %v3425
          %v3605 = vunpack.c.l.b16 %v3426
          %v3606 = vunpack.c.h.b16 %v3426
          %v3607 = vunpack.c.l.b16 %v3427
          %v3608 = vunpack.c.h.b16 %v3427
          %v3609 = vunpack.c.l.b16 %v3428
          %v3610 = vunpack.c.h.b16 %v3428
          %v3611 = vunpack.c.l.b16 %v3429
          %v3612 = vunpack.c.h.b16 %v3429
          %v3613 = vunpack.c.l.b16 %v3430
          %v3614 = vunpack.c.h.b16 %v3430
          %v3615 = vunpack.c.l.b16 %v3431
          %v3616 = vunpack.c.h.b16 %v3431
          %v3617 = vunpack.c.l.b16 %v3432
          %v3618 = vunpack.c.h.b16 %v3432
          %v3619 = vunpack.c.l.b16 %v3433
          %v3620 = vunpack.c.h.b16 %v3433
          %v3621 = vunpack.c.l.b16 %v3434
          %v3622 = vunpack.c.h.b16 %v3434
          %v3623 = vunpack.c.l.b16 %v3435
          %v3624 = vunpack.c.h.b16 %v3435
          %v3625 = vunpack.c.l.b16 %v3436
          %v3626 = vunpack.c.h.b16 %v3436
          %v3627 = vunpack.c.l.b16 %v3437
          %v3628 = vunpack.c.h.b16 %v3437
          %v3629 = vunpack.c.l.b16 %v3438
          %v3630 = vunpack.c.h.b16 %v3438
          %v3631 = vpack.c.b16 %v3507, %v3503
          %v3632 = vpack.c.b16 %v3508, %v3504
          %v3633 = vpack.c.b16 %v3509, %v3505
          %v3634 = vpack.c.b16 %v3510, %v3506
          %v3635 = vpack.c.b16 %v3515, %v3511
          %v3636 = vpack.c.b16 %v3516, %v3512
          %v3637 = vpack.c.b16 %v3517, %v3513
          %v3638 = vpack.c.b16 %v3518, %v3514
          %v3639 = vpack.c.b16 %v3523, %v3519
          %v3640 = vpack.c.b16 %v3524, %v3520
          %v3641 = vpack.c.b16 %v3525, %v3521
          %v3642 = vpack.c.b16 %v3526, %v3522
          %v3643 = vpack.c.b16 %v3531, %v3527
          %v3644 = vpack.c.b16 %v3532, %v3528
          %v3645 = vpack.c.b16 %v3533, %v3529
          %v3646 = vpack.c.b16 %v3534, %v3530
          %v3647 = vpack.c.b16 %v3539, %v3535
          %v3648 = vpack.c.b16 %v3540, %v3536
          %v3649 = vpack.c.b16 %v3541, %v3537
          %v3650 = vpack.c.b16 %v3542, %v3538
          %v3651 = vpack.c.b16 %v3547, %v3543
          %v3652 = vpack.c.b16 %v3548, %v3544
          %v3653 = vpack.c.b16 %v3549, %v3545
          %v3654 = vpack.c.b16 %v3550, %v3546
          %v3655 = vpack.c.b16 %v3555, %v3551
          %v3656 = vpack.c.b16 %v3556, %v3552
          %v3657 = vpack.c.b16 %v3557, %v3553
          %v3658 = vpack.c.b16 %v3558, %v3554
          %v3659 = vpack.c.b16 %v3563, %v3559
          %v3660 = vpack.c.b16 %v3564, %v3560
          %v3661 = vpack.c.b16 %v3565, %v3561
          %v3662 = vpack.c.b16 %v3566, %v3562
          %v3663 = vpack.c.b16 %v3571, %v3567
          %v3664 = vpack.c.b16 %v3572, %v3568
          %v3665 = vpack.c.b16 %v3573, %v3569
          %v3666 = vpack.c.b16 %v3574, %v3570
          %v3667 = vpack.c.b16 %v3579, %v3575
          %v3668 = vpack.c.b16 %v3580, %v3576
          %v3669 = vpack.c.b16 %v3581, %v3577
          %v3670 = vpack.c.b16 %v3582, %v3578
          %v3671 = vpack.c.b16 %v3587, %v3583
          %v3672 = vpack.c.b16 %v3588, %v3584
          %v3673 = vpack.c.b16 %v3589, %v3585
          %v3674 = vpack.c.b16 %v3590, %v3586
          %v3675 = vpack.c.b16 %v3595, %v3591
          %v3676 = vpack.c.b16 %v3596, %v3592
          %v3677 = vpack.c.b16 %v3597, %v3593
          %v3678 = vpack.c.b16 %v3598, %v3594
          %v3679 = vpack.c.b16 %v3603, %v3599
          %v3680 = vpack.c.b16 %v3604, %v3600
          %v3681 = vpack.c.b16 %v3605, %v3601
          %v3682 = vpack.c.b16 %v3606, %v3602
          %v3683 = vpack.c.b16 %v3611, %v3607
          %v3684 = vpack.c.b16 %v3612, %v3608
          %v3685 = vpack.c.b16 %v3613, %v3609
          %v3686 = vpack.c.b16 %v3614, %v3610
          %v3687 = vpack.c.b16 %v3619, %v3615
          %v3688 = vpack.c.b16 %v3620, %v3616
          %v3689 = vpack.c.b16 %v3621, %v3617
          %v3690 = vpack.c.b16 %v3622, %v3618
          %v3691 = vpack.c.b16 %v3627, %v3623
          %v3692 = vpack.c.b16 %v3628, %v3624
          %v3693 = vpack.c.b16 %v3629, %v3625
          %v3694 = vpack.c.b16 %v3630, %v3626
          %v3744 = vsel %vm2651, %v3634, 0
          %v3747 = vsel %vm2651, %v3638, 0
          %v3750 = vsel %vm2651, %v3642, 0
          %v3753 = vsel %vm2651, %v3646, 0
          %v3756 = vsel %vm2651, %v3650, 0
          %v3759 = vsel %vm2651, %v3654, 0
          %v3762 = vsel %vm2651, %v3658, 0
          %v3765 = vsel %vm2651, %v3662, 0
          %v3768 = vsel %vm2651, %v3666, 0
          %v3771 = vsel %vm2651, %v3670, 0
          %v3774 = vsel %vm2651, %v3674, 0
          %v3777 = vsel %vm2651, %v3678, 0
          %v3780 = vsel %vm2651, %v3682, 0
          %v3783 = vsel %vm2651, %v3686, 0
          %v3786 = vsel %vm2651, %v3690, 0
          %v3789 = vsel %vm2651, %v3694, 0
          %v3792 = vsel %vm2700, %v3374, 0
          %3794 = vmatpush.bf16.msra.mxu0 %v3350
          %3795 = vmatpush.bf16.msra.mxu0 %v3349
          %3796 = vmatpush.bf16.msra.mxu0 %v3348
          %3797 = vmatpush.bf16.msra.mxu0 %v3347
          %3798 = vmatpush.bf16.msra.mxu0 %v3346
          %3799 = vmatpush.bf16.msra.mxu0 %v3345
          %3800 = vmatpush.bf16.msra.mxu0 %v3344
          %3801 = vmatpush.bf16.msra.mxu0 %v3343
          %3802 = vmatmul.bf16.gmra.mxu0 %v3631
          %v3803 = vpop.f32.mrf.mxu0
          %v3804 = vadd.f32 %v2345, %v3803
          %v3805 = vpop.f32.mrf.mxu0
          %v3806 = vadd.f32 %v2345, %v3805
          %3807 = vmatmul.bf16.gmra.mxu0 %v3635
          %v3808 = vpop.f32.mrf.mxu0
          %v3809 = vadd.f32 %v2345, %v3808
          %v3810 = vpop.f32.mrf.mxu0
          %v3811 = vadd.f32 %v2345, %v3810
          %3812 = vmatmul.bf16.gmra.mxu0 %v3639
          %v3813 = vpop.f32.mrf.mxu0
          %v3814 = vadd.f32 %v2345, %v3813
          %v3815 = vpop.f32.mrf.mxu0
          %v3816 = vadd.f32 %v2345, %v3815
          %3817 = vmatmul.bf16.gmra.mxu0 %v3643
          %v3818 = vpop.f32.mrf.mxu0
          %v3819 = vadd.f32 %v2345, %v3818
          %v3820 = vpop.f32.mrf.mxu0
          %v3821 = vadd.f32 %v2345, %v3820
          %3822 = vmatmul.bf16.gmra.mxu0 %v3647
          %v3823 = vpop.f32.mrf.mxu0
          %v3824 = vadd.f32 %v2345, %v3823
          %v3825 = vpop.f32.mrf.mxu0
          %v3826 = vadd.f32 %v2345, %v3825
          %3827 = vmatmul.bf16.gmra.mxu0 %v3651
          %v3828 = vpop.f32.mrf.mxu0
          %v3829 = vadd.f32 %v2345, %v3828
          %v3830 = vpop.f32.mrf.mxu0
          %v3831 = vadd.f32 %v2345, %v3830
          %3832 = vmatmul.bf16.gmra.mxu0 %v3655
          %v3833 = vpop.f32.mrf.mxu0
          %v3834 = vadd.f32 %v2345, %v3833
          %v3835 = vpop.f32.mrf.mxu0
          %v3836 = vadd.f32 %v2345, %v3835
          %3837 = vmatmul.bf16.gmra.mxu0 %v3659
          %v3838 = vpop.f32.mrf.mxu0
          %v3839 = vadd.f32 %v2345, %v3838
          %v3840 = vpop.f32.mrf.mxu0
          %v3841 = vadd.f32 %v2345, %v3840
          %3842 = vmatmul.bf16.gmra.mxu0 %v3663
          %v3843 = vpop.f32.mrf.mxu0
          %v3844 = vadd.f32 %v2345, %v3843
          %v3845 = vpop.f32.mrf.mxu0
          %v3846 = vadd.f32 %v2345, %v3845
          %3847 = vmatmul.bf16.gmra.mxu0 %v3667
          %v3848 = vpop.f32.mrf.mxu0
          %v3849 = vadd.f32 %v2345, %v3848
          %v3850 = vpop.f32.mrf.mxu0
          %v3851 = vadd.f32 %v2345, %v3850
          %3852 = vmatmul.bf16.gmra.mxu0 %v3671
          %v3853 = vpop.f32.mrf.mxu0
          %v3854 = vadd.f32 %v2345, %v3853
          %v3855 = vpop.f32.mrf.mxu0
          %v3856 = vadd.f32 %v2345, %v3855
          %3857 = vmatmul.bf16.gmra.mxu0 %v3675
          %v3858 = vpop.f32.mrf.mxu0
          %v3859 = vadd.f32 %v2345, %v3858
          %v3860 = vpop.f32.mrf.mxu0
          %v3861 = vadd.f32 %v2345, %v3860
          %3862 = vmatmul.bf16.gmra.mxu0 %v3679
          %v3863 = vpop.f32.mrf.mxu0
          %v3864 = vadd.f32 %v2345, %v3863
          %v3865 = vpop.f32.mrf.mxu0
          %v3866 = vadd.f32 %v2345, %v3865
          %3867 = vmatmul.bf16.gmra.mxu0 %v3683
          %v3868 = vpop.f32.mrf.mxu0
          %v3869 = vadd.f32 %v2345, %v3868
          %v3870 = vpop.f32.mrf.mxu0
          %v3871 = vadd.f32 %v2345, %v3870
          %3872 = vmatmul.bf16.gmra.mxu0 %v3687
          %v3873 = vpop.f32.mrf.mxu0
          %v3874 = vadd.f32 %v2345, %v3873
          %v3875 = vpop.f32.mrf.mxu0
          %v3876 = vadd.f32 %v2345, %v3875
          %3877 = vmatmul.bf16.gmra.mxu0 %v3691
          %v3878 = vpop.f32.mrf.mxu0
          %v3879 = vadd.f32 %v2345, %v3878
          %v3880 = vpop.f32.mrf.mxu0
          %v3881 = vadd.f32 %v2345, %v3880
          %3882 = vdwg.mxu0
          %3883 = vmatpush.bf16.msra.mxu0 %v3358
          %3884 = vmatpush.bf16.msra.mxu0 %v3357
          %3885 = vmatpush.bf16.msra.mxu0 %v3356
          %3886 = vmatpush.bf16.msra.mxu0 %v3355
          %3887 = vmatpush.bf16.msra.mxu0 %v3354
          %3888 = vmatpush.bf16.msra.mxu0 %v3353
          %3889 = vmatpush.bf16.msra.mxu0 %v3352
          %3890 = vmatpush.bf16.msra.mxu0 %v3351
          %3891 = vmatmul.bf16.gmra.mxu0 %v3632
          %v3892 = vpop.f32.mrf.mxu0
          %v3893 = vadd.f32 %v3804, %v3892
          %v3894 = vpop.f32.mrf.mxu0
          %v3895 = vadd.f32 %v3806, %v3894
          %3896 = vmatmul.bf16.gmra.mxu0 %v3636
          %v3897 = vpop.f32.mrf.mxu0
          %v3898 = vadd.f32 %v3809, %v3897
          %v3899 = vpop.f32.mrf.mxu0
          %v3900 = vadd.f32 %v3811, %v3899
          %3901 = vmatmul.bf16.gmra.mxu0 %v3640
          %v3902 = vpop.f32.mrf.mxu0
          %v3903 = vadd.f32 %v3814, %v3902
          %v3904 = vpop.f32.mrf.mxu0
          %v3905 = vadd.f32 %v3816, %v3904
          %3906 = vmatmul.bf16.gmra.mxu0 %v3644
          %v3907 = vpop.f32.mrf.mxu0
          %v3908 = vadd.f32 %v3819, %v3907
          %v3909 = vpop.f32.mrf.mxu0
          %v3910 = vadd.f32 %v3821, %v3909
          %3911 = vmatmul.bf16.gmra.mxu0 %v3648
          %v3912 = vpop.f32.mrf.mxu0
          %v3913 = vadd.f32 %v3824, %v3912
          %v3914 = vpop.f32.mrf.mxu0
          %v3915 = vadd.f32 %v3826, %v3914
          %3916 = vmatmul.bf16.gmra.mxu0 %v3652
          %v3917 = vpop.f32.mrf.mxu0
          %v3918 = vadd.f32 %v3829, %v3917
          %v3919 = vpop.f32.mrf.mxu0
          %v3920 = vadd.f32 %v3831, %v3919
          %3921 = vmatmul.bf16.gmra.mxu0 %v3656
          %v3922 = vpop.f32.mrf.mxu0
          %v3923 = vadd.f32 %v3834, %v3922
          %v3924 = vpop.f32.mrf.mxu0
          %v3925 = vadd.f32 %v3836, %v3924
          %3926 = vmatmul.bf16.gmra.mxu0 %v3660
          %v3927 = vpop.f32.mrf.mxu0
          %v3928 = vadd.f32 %v3839, %v3927
          %v3929 = vpop.f32.mrf.mxu0
          %v3930 = vadd.f32 %v3841, %v3929
          %3931 = vmatmul.bf16.gmra.mxu0 %v3664
          %v3932 = vpop.f32.mrf.mxu0
          %v3933 = vadd.f32 %v3844, %v3932
          %v3934 = vpop.f32.mrf.mxu0
          %v3935 = vadd.f32 %v3846, %v3934
          %3936 = vmatmul.bf16.gmra.mxu0 %v3668
          %v3937 = vpop.f32.mrf.mxu0
          %v3938 = vadd.f32 %v3849, %v3937
          %v3939 = vpop.f32.mrf.mxu0
          %v3940 = vadd.f32 %v3851, %v3939
          %3941 = vmatmul.bf16.gmra.mxu0 %v3672
          %v3942 = vpop.f32.mrf.mxu0
          %v3943 = vadd.f32 %v3854, %v3942
          %v3944 = vpop.f32.mrf.mxu0
          %v3945 = vadd.f32 %v3856, %v3944
          %3946 = vmatmul.bf16.gmra.mxu0 %v3676
          %v3947 = vpop.f32.mrf.mxu0
          %v3948 = vadd.f32 %v3859, %v3947
          %v3949 = vpop.f32.mrf.mxu0
          %v3950 = vadd.f32 %v3861, %v3949
          %3951 = vmatmul.bf16.gmra.mxu0 %v3680
          %v3952 = vpop.f32.mrf.mxu0
          %v3953 = vadd.f32 %v3864, %v3952
          %v3954 = vpop.f32.mrf.mxu0
          %v3955 = vadd.f32 %v3866, %v3954
          %3956 = vmatmul.bf16.gmra.mxu0 %v3684
          %v3957 = vpop.f32.mrf.mxu0
          %v3958 = vadd.f32 %v3869, %v3957
          %v3959 = vpop.f32.mrf.mxu0
          %v3960 = vadd.f32 %v3871, %v3959
          %3961 = vmatmul.bf16.gmra.mxu0 %v3688
          %v3962 = vpop.f32.mrf.mxu0
          %v3963 = vadd.f32 %v3874, %v3962
          %v3964 = vpop.f32.mrf.mxu0
          %v3965 = vadd.f32 %v3876, %v3964
          %3966 = vmatmul.bf16.gmra.mxu0 %v3692
          %v3967 = vpop.f32.mrf.mxu0
          %v3968 = vadd.f32 %v3879, %v3967
          %v3969 = vpop.f32.mrf.mxu0
          %v3970 = vadd.f32 %v3881, %v3969
          %3971 = vdwg.mxu0
          %3972 = vmatpush.bf16.msra.mxu0 %v3366
          %3973 = vmatpush.bf16.msra.mxu0 %v3365
          %3974 = vmatpush.bf16.msra.mxu0 %v3364
          %3975 = vmatpush.bf16.msra.mxu0 %v3363
          %3976 = vmatpush.bf16.msra.mxu0 %v3362
          %3977 = vmatpush.bf16.msra.mxu0 %v3361
          %3978 = vmatpush.bf16.msra.mxu0 %v3360
          %3979 = vmatpush.bf16.msra.mxu0 %v3359
          %3980 = vmatmul.bf16.gmra.mxu0 %v3633
          %v3981 = vpop.f32.mrf.mxu0
          %v3982 = vadd.f32 %v3893, %v3981
          %v3983 = vpop.f32.mrf.mxu0
          %v3984 = vadd.f32 %v3895, %v3983
          %3985 = vmatmul.bf16.gmra.mxu0 %v3637
          %v3986 = vpop.f32.mrf.mxu0
          %v3987 = vadd.f32 %v3898, %v3986
          %v3988 = vpop.f32.mrf.mxu0
          %v3989 = vadd.f32 %v3900, %v3988
          %3990 = vmatmul.bf16.gmra.mxu0 %v3641
          %v3991 = vpop.f32.mrf.mxu0
          %v3992 = vadd.f32 %v3903, %v3991
          %v3993 = vpop.f32.mrf.mxu0
          %v3994 = vadd.f32 %v3905, %v3993
          %3995 = vmatmul.bf16.gmra.mxu0 %v3645
          %v3996 = vpop.f32.mrf.mxu0
          %v3997 = vadd.f32 %v3908, %v3996
          %v3998 = vpop.f32.mrf.mxu0
          %v3999 = vadd.f32 %v3910, %v3998
          %4000 = vmatmul.bf16.gmra.mxu0 %v3649
          %v4001 = vpop.f32.mrf.mxu0
          %v4002 = vadd.f32 %v3913, %v4001
          %v4003 = vpop.f32.mrf.mxu0
          %v4004 = vadd.f32 %v3915, %v4003
          %4005 = vmatmul.bf16.gmra.mxu0 %v3653
          %v4006 = vpop.f32.mrf.mxu0
          %v4007 = vadd.f32 %v3918, %v4006
          %v4008 = vpop.f32.mrf.mxu0
          %v4009 = vadd.f32 %v3920, %v4008
          %4010 = vmatmul.bf16.gmra.mxu0 %v3657
          %v4011 = vpop.f32.mrf.mxu0
          %v4012 = vadd.f32 %v3923, %v4011
          %v4013 = vpop.f32.mrf.mxu0
          %v4014 = vadd.f32 %v3925, %v4013
          %4015 = vmatmul.bf16.gmra.mxu0 %v3661
          %v4016 = vpop.f32.mrf.mxu0
          %v4017 = vadd.f32 %v3928, %v4016
          %v4018 = vpop.f32.mrf.mxu0
          %v4019 = vadd.f32 %v3930, %v4018
          %4020 = vmatmul.bf16.gmra.mxu0 %v3665
          %v4021 = vpop.f32.mrf.mxu0
          %v4022 = vadd.f32 %v3933, %v4021
          %v4023 = vpop.f32.mrf.mxu0
          %v4024 = vadd.f32 %v3935, %v4023
          %4025 = vmatmul.bf16.gmra.mxu0 %v3669
          %v4026 = vpop.f32.mrf.mxu0
          %v4027 = vadd.f32 %v3938, %v4026
          %v4028 = vpop.f32.mrf.mxu0
          %v4029 = vadd.f32 %v3940, %v4028
          %4030 = vmatmul.bf16.gmra.mxu0 %v3673
          %v4031 = vpop.f32.mrf.mxu0
          %v4032 = vadd.f32 %v3943, %v4031
          %v4033 = vpop.f32.mrf.mxu0
          %v4034 = vadd.f32 %v3945, %v4033
          %4035 = vmatmul.bf16.gmra.mxu0 %v3677
          %v4036 = vpop.f32.mrf.mxu0
          %v4037 = vadd.f32 %v3948, %v4036
          %v4038 = vpop.f32.mrf.mxu0
          %v4039 = vadd.f32 %v3950, %v4038
          %4040 = vmatmul.bf16.gmra.mxu0 %v3681
          %v4041 = vpop.f32.mrf.mxu0
          %v4042 = vadd.f32 %v3953, %v4041
          %v4043 = vpop.f32.mrf.mxu0
          %v4044 = vadd.f32 %v3955, %v4043
          %4045 = vmatmul.bf16.gmra.mxu0 %v3685
          %v4046 = vpop.f32.mrf.mxu0
          %v4047 = vadd.f32 %v3958, %v4046
          %v4048 = vpop.f32.mrf.mxu0
          %v4049 = vadd.f32 %v3960, %v4048
          %4050 = vmatmul.bf16.gmra.mxu0 %v3689
          %v4051 = vpop.f32.mrf.mxu0
          %v4052 = vadd.f32 %v3963, %v4051
          %v4053 = vpop.f32.mrf.mxu0
          %v4054 = vadd.f32 %v3965, %v4053
          %4055 = vmatmul.bf16.gmra.mxu0 %v3693
          %v4056 = vpop.f32.mrf.mxu0
          %v4057 = vadd.f32 %v3968, %v4056
          %v4058 = vpop.f32.mrf.mxu0
          %v4059 = vadd.f32 %v3970, %v4058
          %4060 = vdwg.mxu0
          %4061 = vmatpush.bf16.msra.mxu0 %v3792
          %4062 = vmatpush.bf16.msra.mxu0 %v3373
          %4063 = vmatpush.bf16.msra.mxu0 %v3372
          %4064 = vmatpush.bf16.msra.mxu0 %v3371
          %4065 = vmatpush.bf16.msra.mxu0 %v3370
          %4066 = vmatpush.bf16.msra.mxu0 %v3369
          %4067 = vmatpush.bf16.msra.mxu0 %v3368
          %4068 = vmatpush.bf16.msra.mxu0 %v3367
          %4069 = vmatmul.bf16.gmra.mxu0 %v3744
          %v4070 = vpop.f32.mrf.mxu0
          %v4071 = vadd.f32 %v3982, %v4070
          %v4072 = vpop.f32.mrf.mxu0
          %v4073 = vadd.f32 %v3984, %v4072
          %4074 = vmatmul.bf16.gmra.mxu0 %v3747
          %v4075 = vpop.f32.mrf.mxu0
          %v4076 = vadd.f32 %v3987, %v4075
          %v4077 = vpop.f32.mrf.mxu0
          %v4078 = vadd.f32 %v3989, %v4077
          %4079 = vmatmul.bf16.gmra.mxu0 %v3750
          %v4080 = vpop.f32.mrf.mxu0
          %v4081 = vadd.f32 %v3992, %v4080
          %v4082 = vpop.f32.mrf.mxu0
          %v4083 = vadd.f32 %v3994, %v4082
          %4084 = vmatmul.bf16.gmra.mxu0 %v3753
          %v4085 = vpop.f32.mrf.mxu0
          %v4086 = vadd.f32 %v3997, %v4085
          %v4087 = vpop.f32.mrf.mxu0
          %v4088 = vadd.f32 %v3999, %v4087
          %4089 = vmatmul.bf16.gmra.mxu0 %v3756
          %v4090 = vpop.f32.mrf.mxu0
          %v4091 = vadd.f32 %v4002, %v4090
          %v4092 = vpop.f32.mrf.mxu0
          %v4093 = vadd.f32 %v4004, %v4092
          %4094 = vmatmul.bf16.gmra.mxu0 %v3759
          %v4095 = vpop.f32.mrf.mxu0
          %v4096 = vadd.f32 %v4007, %v4095
          %v4097 = vpop.f32.mrf.mxu0
          %v4098 = vadd.f32 %v4009, %v4097
          %4099 = vmatmul.bf16.gmra.mxu0 %v3762
          %v4100 = vpop.f32.mrf.mxu0
          %v4101 = vadd.f32 %v4012, %v4100
          %v4102 = vpop.f32.mrf.mxu0
          %v4103 = vadd.f32 %v4014, %v4102
          %4104 = vmatmul.bf16.gmra.mxu0 %v3765
          %v4105 = vpop.f32.mrf.mxu0
          %v4106 = vadd.f32 %v4017, %v4105
          %v4107 = vpop.f32.mrf.mxu0
          %v4108 = vadd.f32 %v4019, %v4107
          %4109 = vmatmul.bf16.gmra.mxu0 %v3768
          %v4110 = vpop.f32.mrf.mxu0
          %v4111 = vadd.f32 %v4022, %v4110
          %v4112 = vpop.f32.mrf.mxu0
          %v4113 = vadd.f32 %v4024, %v4112
          %4114 = vmatmul.bf16.gmra.mxu0 %v3771
          %v4115 = vpop.f32.mrf.mxu0
          %v4116 = vadd.f32 %v4027, %v4115
          %v4117 = vpop.f32.mrf.mxu0
          %v4118 = vadd.f32 %v4029, %v4117
          %4119 = vmatmul.bf16.gmra.mxu0 %v3774
          %v4120 = vpop.f32.mrf.mxu0
          %v4121 = vadd.f32 %v4032, %v4120
          %v4122 = vpop.f32.mrf.mxu0
          %v4123 = vadd.f32 %v4034, %v4122
          %4124 = vmatmul.bf16.gmra.mxu0 %v3777
          %v4125 = vpop.f32.mrf.mxu0
          %v4126 = vadd.f32 %v4037, %v4125
          %v4127 = vpop.f32.mrf.mxu0
          %v4128 = vadd.f32 %v4039, %v4127
          %4129 = vmatmul.bf16.gmra.mxu0 %v3780
          %v4130 = vpop.f32.mrf.mxu0
          %v4131 = vadd.f32 %v4042, %v4130
          %v4132 = vpop.f32.mrf.mxu0
          %v4133 = vadd.f32 %v4044, %v4132
          %4134 = vmatmul.bf16.gmra.mxu0 %v3783
          %v4135 = vpop.f32.mrf.mxu0
          %v4136 = vadd.f32 %v4047, %v4135
          %v4137 = vpop.f32.mrf.mxu0
          %v4138 = vadd.f32 %v4049, %v4137
          %4139 = vmatmul.bf16.gmra.mxu0 %v3786
          %v4140 = vpop.f32.mrf.mxu0
          %v4141 = vadd.f32 %v4052, %v4140
          %v4142 = vpop.f32.mrf.mxu0
          %v4143 = vadd.f32 %v4054, %v4142
          %4144 = vmatmul.bf16.gmra.mxu0 %v3789
          %v4145 = vpop.f32.mrf.mxu0
          %v4146 = vadd.f32 %v4057, %v4145
          %v4147 = vpop.f32.mrf.mxu0
          %v4148 = vadd.f32 %v4059, %v4147
          %4149 = vdwg.mxu0
          %v4150 = vpack.c.bf16 %v4073, %v4071
          %v4151 = vpack.c.bf16 %v4078, %v4076
          %v4152 = vpack.c.bf16 %v4083, %v4081
          %v4153 = vpack.c.bf16 %v4088, %v4086
          %v4154 = vpack.c.bf16 %v4093, %v4091
          %v4155 = vpack.c.bf16 %v4098, %v4096
          %v4156 = vpack.c.bf16 %v4103, %v4101
          %v4157 = vpack.c.bf16 %v4108, %v4106
          %v4158 = vpack.c.bf16 %v4113, %v4111
          %v4159 = vpack.c.bf16 %v4118, %v4116
          %v4160 = vpack.c.bf16 %v4123, %v4121
          %v4161 = vpack.c.bf16 %v4128, %v4126
          %v4162 = vpack.c.bf16 %v4133, %v4131
          %v4163 = vpack.c.bf16 %v4138, %v4136
          %v4164 = vpack.c.bf16 %v4143, %v4141
          %v4165 = vpack.c.bf16 %v4148, %v4146
          %4166 = vmatpush.bf16.msra.mxu0 %v3118
          %4167 = vmatpush.bf16.msra.mxu0 %v3117
          %4168 = vmatpush.bf16.msra.mxu0 %v3116
          %4169 = vmatpush.bf16.msra.mxu0 %v3115
          %4170 = vmatpush.bf16.msra.mxu0 %v3114
          %4171 = vmatpush.bf16.msra.mxu0 %v3113
          %4172 = vmatpush.bf16.msra.mxu0 %v3112
          %4173 = vmatpush.bf16.msra.mxu0 %v3111
          %4174 = vmatmul.bf16.gmra.mxu0 %v4150
          %v4175 = vpop.f32.mrf.mxu0
          %v4176 = vadd.f32 %v3077, %v4175
          %v4177 = vpop.f32.mrf.mxu0
          %v4178 = vadd.f32 %v3077, %v4177
          %4179 = vmatmul.bf16.gmra.mxu0 %v4151
          %v4180 = vpop.f32.mrf.mxu0
          %v4181 = vadd.f32 %v3077, %v4180
          %v4182 = vpop.f32.mrf.mxu0
          %v4183 = vadd.f32 %v3077, %v4182
          %4184 = vmatmul.bf16.gmra.mxu0 %v4152
          %v4185 = vpop.f32.mrf.mxu0
          %v4186 = vadd.f32 %v3077, %v4185
          %v4187 = vpop.f32.mrf.mxu0
          %v4188 = vadd.f32 %v3077, %v4187
          %4189 = vmatmul.bf16.gmra.mxu0 %v4153
          %v4190 = vpop.f32.mrf.mxu0
          %v4191 = vadd.f32 %v3077, %v4190
          %v4192 = vpop.f32.mrf.mxu0
          %v4193 = vadd.f32 %v3077, %v4192
          %4194 = vmatmul.bf16.gmra.mxu0 %v4154
          %v4195 = vpop.f32.mrf.mxu0
          %v4196 = vadd.f32 %v3077, %v4195
          %v4197 = vpop.f32.mrf.mxu0
          %v4198 = vadd.f32 %v3077, %v4197
          %4199 = vmatmul.bf16.gmra.mxu0 %v4155
          %v4200 = vpop.f32.mrf.mxu0
          %v4201 = vadd.f32 %v3077, %v4200
          %v4202 = vpop.f32.mrf.mxu0
          %v4203 = vadd.f32 %v3077, %v4202
          %4204 = vmatmul.bf16.gmra.mxu0 %v4156
          %v4205 = vpop.f32.mrf.mxu0
          %v4206 = vadd.f32 %v3077, %v4205
          %v4207 = vpop.f32.mrf.mxu0
          %v4208 = vadd.f32 %v3077, %v4207
          %4209 = vmatmul.bf16.gmra.mxu0 %v4157
          %v4210 = vpop.f32.mrf.mxu0
          %v4211 = vadd.f32 %v3077, %v4210
          %v4212 = vpop.f32.mrf.mxu0
          %v4213 = vadd.f32 %v3077, %v4212
          %4214 = vmatmul.bf16.gmra.mxu0 %v4158
          %v4215 = vpop.f32.mrf.mxu0
          %v4216 = vadd.f32 %v3077, %v4215
          %v4217 = vpop.f32.mrf.mxu0
          %v4218 = vadd.f32 %v3077, %v4217
          %4219 = vmatmul.bf16.gmra.mxu0 %v4159
          %v4220 = vpop.f32.mrf.mxu0
          %v4221 = vadd.f32 %v3077, %v4220
          %v4222 = vpop.f32.mrf.mxu0
          %v4223 = vadd.f32 %v3077, %v4222
          %4224 = vmatmul.bf16.gmra.mxu0 %v4160
          %v4225 = vpop.f32.mrf.mxu0
          %v4226 = vadd.f32 %v3077, %v4225
          %v4227 = vpop.f32.mrf.mxu0
          %v4228 = vadd.f32 %v3077, %v4227
          %4229 = vmatmul.bf16.gmra.mxu0 %v4161
          %v4230 = vpop.f32.mrf.mxu0
          %v4231 = vadd.f32 %v3077, %v4230
          %v4232 = vpop.f32.mrf.mxu0
          %v4233 = vadd.f32 %v3077, %v4232
          %4234 = vmatmul.bf16.gmra.mxu0 %v4162
          %v4235 = vpop.f32.mrf.mxu0
          %v4236 = vadd.f32 %v3077, %v4235
          %v4237 = vpop.f32.mrf.mxu0
          %v4238 = vadd.f32 %v3077, %v4237
          %4239 = vmatmul.bf16.gmra.mxu0 %v4163
          %v4240 = vpop.f32.mrf.mxu0
          %v4241 = vadd.f32 %v3077, %v4240
          %v4242 = vpop.f32.mrf.mxu0
          %v4243 = vadd.f32 %v3077, %v4242
          %4244 = vmatmul.bf16.gmra.mxu0 %v4164
          %v4245 = vpop.f32.mrf.mxu0
          %v4246 = vadd.f32 %v3077, %v4245
          %v4247 = vpop.f32.mrf.mxu0
          %v4248 = vadd.f32 %v3077, %v4247
          %4249 = vmatmul.bf16.gmra.mxu0 %v4165
          %v4250 = vpop.f32.mrf.mxu0
          %v4251 = vadd.f32 %v3077, %v4250
          %v4252 = vpop.f32.mrf.mxu0
          %v4253 = vadd.f32 %v3077, %v4252
          %4254 = vdwg.mxu0
          %v4255 = vpack.c.bf16 %v4176, %v4176
          %v4256 = vpack.c.bf16 %v4178, %v4178
          %v4257 = vpack.c.bf16 %v4181, %v4181
          %v4258 = vpack.c.bf16 %v4183, %v4183
          %v4259 = vpack.c.bf16 %v4186, %v4186
          %v4260 = vpack.c.bf16 %v4188, %v4188
          %v4261 = vpack.c.bf16 %v4191, %v4191
          %v4262 = vpack.c.bf16 %v4193, %v4193
          %v4263 = vpack.c.bf16 %v4196, %v4196
          %v4264 = vpack.c.bf16 %v4198, %v4198
          %v4265 = vpack.c.bf16 %v4201, %v4201
          %v4266 = vpack.c.bf16 %v4203, %v4203
          %v4267 = vpack.c.bf16 %v4206, %v4206
          %v4268 = vpack.c.bf16 %v4208, %v4208
          %v4269 = vpack.c.bf16 %v4211, %v4211
          %v4270 = vpack.c.bf16 %v4213, %v4213
          %v4271 = vpack.c.bf16 %v4216, %v4216
          %v4272 = vpack.c.bf16 %v4218, %v4218
          %v4273 = vpack.c.bf16 %v4221, %v4221
          %v4274 = vpack.c.bf16 %v4223, %v4223
          %v4275 = vpack.c.bf16 %v4226, %v4226
          %v4276 = vpack.c.bf16 %v4228, %v4228
          %v4277 = vpack.c.bf16 %v4231, %v4231
          %v4278 = vpack.c.bf16 %v4233, %v4233
          %v4279 = vpack.c.bf16 %v4236, %v4236
          %v4280 = vpack.c.bf16 %v4238, %v4238
          %v4281 = vpack.c.bf16 %v4241, %v4241
          %v4282 = vpack.c.bf16 %v4243, %v4243
          %v4283 = vpack.c.bf16 %v4246, %v4246
          %v4284 = vpack.c.bf16 %v4248, %v4248
          %v4285 = vpack.c.bf16 %v4251, %v4251
          %v4286 = vpack.c.bf16 %v4253, %v4253
          %s4287 = scalar_lea.vmem [#allocation7], 128
          %4288 = vst [vmem:[%s4287] sm:$0xf] %v4255
          %4289 = vst [vmem:[%s4287 + $0x4] sm:$0xf] %v4256
          %4290 = vst [vmem:[%s4287 + $0x8] sm:$0xf] %v4257
          %4291 = vst [vmem:[%s4287 + $0xc] sm:$0xf] %v4258
          %4292 = vst [vmem:[%s4287 + $0x10] sm:$0xf] %v4259
          %4293 = vst [vmem:[%s4287 + $0x14] sm:$0xf] %v4260
          %4294 = vst [vmem:[%s4287 + $0x18] sm:$0xf] %v4261
          %4295 = vst [vmem:[%s4287 + $0x1c] sm:$0xf] %v4262
          %4296 = vst [vmem:[%s4287 + $0x20] sm:$0xf] %v4263
          %4297 = vst [vmem:[%s4287 + $0x24] sm:$0xf] %v4264
          %4298 = vst [vmem:[%s4287 + $0x28] sm:$0xf] %v4265
          %4299 = vst [vmem:[%s4287 + $0x2c] sm:$0xf] %v4266
          %4300 = vst [vmem:[%s4287 + $0x30] sm:$0xf] %v4267
          %4301 = vst [vmem:[%s4287 + $0x34] sm:$0xf] %v4268
          %4302 = vst [vmem:[%s4287 + $0x38] sm:$0xf] %v4269
          %4303 = vst [vmem:[%s4287 + $0x3c] sm:$0xf] %v4270
          %4304 = vst [vmem:[%s4287 + $0x40] sm:$0xf] %v4271
          %4305 = vst [vmem:[%s4287 + $0x44] sm:$0xf] %v4272
          %4306 = vst [vmem:[%s4287 + $0x48] sm:$0xf] %v4273
          %4307 = vst [vmem:[%s4287 + $0x4c] sm:$0xf] %v4274
          %4308 = vst [vmem:[%s4287 + $0x50] sm:$0xf] %v4275
          %4309 = vst [vmem:[%s4287 + $0x54] sm:$0xf] %v4276
          %4310 = vst [vmem:[%s4287 + $0x58] sm:$0xf] %v4277
          %4311 = vst [vmem:[%s4287 + $0x5c] sm:$0xf] %v4278
          %4312 = vst [vmem:[%s4287 + $0x60] sm:$0xf] %v4279
          %4313 = vst [vmem:[%s4287 + $0x64] sm:$0xf] %v4280
          %4314 = vst [vmem:[%s4287 + $0x68] sm:$0xf] %v4281
          %4315 = vst [vmem:[%s4287 + $0x6c] sm:$0xf] %v4282
          %4316 = vst [vmem:[%s4287 + $0x70] sm:$0xf] %v4283
          %4317 = vst [vmem:[%s4287 + $0x74] sm:$0xf] %v4284
          %4318 = vst [vmem:[%s4287 + $0x78] sm:$0xf] %v4285
          %4319 = vst [vmem:[%s4287 + $0x7c] sm:$0xf] %v4286
        $region97: #{tpu_custom_call.1} parent=80 // pred_fallthru
          _
        %s4320 = sand.u32 %s212, 1
        %s4321 = scalar_lea.sflag [#allocation9], %s4320
        %s4322 = sand.u32 %s212, 1
        %s4323 = smul.addr %s4322, 2
        %s4324 = scalar_lea.vmem [#allocation8], %s4323
        // Predicated region
        $region98: #{tpu_custom_call.1} parent=80 // pred_check
          %p4325 = pneg %p194
        $region99: #{tpu_custom_call.1} parent=80 // pred_check_branch
          %4327 = sbr.rel (%p4325) target = $region101
        $region100: #{tpu_custom_call.1} parent=80 // pred_region
          %s4328 = smul.u32 2, %s30
          %4330 = vsyncadd [#allocation6], 0
          %s4331 = smul.addr %s4328, 32
          %s4332 = smul.addr %s4331, 4
          %s4333 = scalar_lea.hbm %s6, %s4332
          %s4334 = sshll.u32 [#allocation7], 4
          %s4335 = int_to_ptr.vmem [resolvable:$true] %s4334
          %s4336 = sshll.u32 %s4333, 4
          %s4337 = int_to_ptr.hbm [resolvable:$true] %s4336
          %4342 = dma.vmem_to_hbm [thread:$0]  %s4335, 4096, %s4337, [#allocation6], 64, 64, 4
        $region101: #{tpu_custom_call.1} parent=80 // pred_fallthru
          _
        // Predicated region
        $region102: #{tpu_custom_call.1} parent=80 // pred_check
          %p4343 = pneg %p222
        $region103: #{tpu_custom_call.1} parent=80 // pred_check_branch
          %4345 = sbr.rel (%p4343) target = $region105
        $region104: #{tpu_custom_call.1} parent=80 // pred_region
          %s4346 = smul.u32 2, %s30
          %4348 = vsyncadd %s4321, 0
          %s4349 = smul.addr %s4346, 2
          %s4350 = sadd.s32 %s31, %s4349
          %s4351 = scalar_lea.hbm %s7, %s4350
          %s4352 = sshll.u32 %s4324, 4
          %s4353 = int_to_ptr.vmem [resolvable:$true] %s4352
          %s4354 = sshll.u32 %s4351, 4
          %s4355 = int_to_ptr.hbm [resolvable:$true] %s4354
          %4360 = dma.vmem_to_hbm [thread:$0]  %s4353, 32, %s4355, %s4321, 16, 32, 1
        $region105: #{tpu_custom_call.1} parent=80 // pred_fallthru
          _
        // Predicated region
        $region106: #{tpu_custom_call.1} parent=80 // pred_check
          %p4361 = pneg %p194
        $region107: #{tpu_custom_call.1} parent=80 // pred_check_branch
          %4363 = sbr.rel (%p4361) target = $region109
        $region108: #{tpu_custom_call.1} parent=80 // pred_region
          %4365 = dma.done [#allocation6], 4096
        $region109: #{tpu_custom_call.1} parent=80 // pred_fallthru
          _
      $region81: #{tpu_custom_call.1} parent=5 // pred_fallthru
        _
      %p4366 = scmp.le.s32.totalorder 2, %s21
      // Predicated region
      $region110: #{tpu_custom_call.1} parent=5 // pred_check
        %p4367 = pneg %p4366
      $region111: #{tpu_custom_call.1} parent=5 // pred_check_branch
        %4369 = sbr.rel (%p4367) target = $region113
      $region112: #{tpu_custom_call.1} parent=5 // pred_region
        %s4370 = ssub.s32 %s21, 2
        // Predicated region
        $region114: #{tpu_custom_call.1} parent=112 // pred_check
          %p4371 = pneg %p228
        $region115: #{tpu_custom_call.1} parent=112 // pred_check_branch
          %4373 = sbr.rel (%p4371) target = $region117
        $region116: #{tpu_custom_call.1} parent=112 // pred_region
          %s4374 = sand.u32 %s213, 1
          %s4375 = scalar_lea.sflag [#allocation9], %s4374
          %s4376 = sand.u32 %s213, 1
          %s4377 = smul.addr %s4376, 2
          %s4378 = scalar_lea.vmem [#allocation8], %s4377
          %4380 = dma.done %s4375, 32
        $region117: #{tpu_custom_call.1} parent=112 // pred_fallthru
          _
      $region113: #{tpu_custom_call.1} parent=5 // pred_fallthru
        _
    $region6: #{tpu_custom_call.1} parent=1 // loop_footer
      %s25 = sadd.s32 1, %s21
    $region7: #{tpu_custom_call.1} parent=1 // loop_footer_branch
      %20 = sbr.rel target = $region3
    $region8: #{tpu_custom_call.1} parent=1 // loop_exit
      _
    %4381 = vsyncpa [#allocation5], 1
    %s4382 = scalar_lea.sflag [#allocation5], 1
    %4383 = vsyncpa %s4382, 1
    %4384 = vsyncpa [#allocation6], 1
    %s4385 = scalar_lea.sflag [#allocation6], 1
    %4386 = vsyncpa %s4385, 1
    %4387 = vsyncpa [#allocation9], 1
    %s4388 = scalar_lea.sflag [#allocation9], 1
    %4389 = vsyncpa %s4388, 1

</llo_original>
